<compile_context>
chip_gen: v7x
topology: tpu7x:2x2x1
jax: 0.10.0
libtpu: 0.0.40
codegen_flags: <defaults>
</compile_context>

<pallas_src>
import functools

import jax
import jax.numpy as jnp
from jax import lax
from jax.experimental import pallas as pl
from jax.experimental.pallas import tpu as pltpu

_EPS = 1e-6  # LayerNorm2d eps in NAFNet

# ----------------------------------------------------------------------------
# Packed (stacked over num_naf) NAFBlock parameter indices
#   mat2  : (NB, 2, 2C, C)  1x1-conv expansion weights (out, in) layout
#   mat1  : (NB, 3, C, C)   (C,C) 1x1-conv weights
#   vec2c : (NB, 3, 2C, 1)  biases of the 2C-wide stages
#   vecc  : (NB, 9, C, 1)   per-channel vectors (LN affine, biases, beta, gamma)
#   dww   : (NB, 2C, 9)     fused depthwise 3x3 weights, col = ky*3 + kx
# ----------------------------------------------------------------------------
MW1, MW4 = 0, 1                       # mat2 rows
MSCA, MW3, MW5 = 0, 1, 2              # mat1 rows
VB1, VBDW, VB4 = 0, 1, 2              # vec2c rows
(VLN1_W, VLN1_B, VLN2_W, VLN2_B,
 VBSCA, VB3, VB5, VBETA, VGAMMA) = range(9)   # vecc rows


def _device_tuning():
    """Perf-only knobs chosen from the device kind (safe fallbacks)."""
    try:
        kind = jax.devices()[0].device_kind.lower()
    except Exception:  # pragma: no cover - defensive
        kind = ""
    is_v7 = "7" in kind                                   # 2 TensorCores / chip
    is_v6 = ("v6" in kind) or ("6e" in kind) or ("6 lite" in kind)
    return {
        "batch_grid": is_v7,          # grid over B only when both TCs can take a step
        "dw_bf16": is_v6 or is_v7,    # bf16 VPU path only where the VALU is bf16-native
    }


# ----------------------------------------------------------------------------
# Fused NAFBlock-chain kernel.
# Feature map view inside the kernel: (C, HW) / (2C, HW) -- channels on
# sublanes, HW (multiple of 128) on lanes, so every store is lane-dense.
# ----------------------------------------------------------------------------
def naf_chain_kernel(x_ref, mat2_ref, mat1_ref, vec2c_ref, vecc_ref, dww_ref,
                     o_ref, *, H, W, num_naf, dw_bf16):
    C = x_ref.shape[1]
    HW = H * W
    log2w = W.bit_length() - 1          # W is a power of two
    dw_dtype = jnp.bfloat16 if dw_bf16 else jnp.float32

    pos = lax.broadcasted_iota(jnp.int32, (1, HW), 1)
    row_i = pos >> log2w
    col_j = pos & (W - 1)

    # 3x3 tap geometry, hoisted: lane-roll shift + 0/1 validity mask per tap.
    # The center tap needs no mask; masks are materialized exactly once.
    taps = []
    for dy in (-1, 0, 1):
        for dx in (-1, 0, 1):
            shift = (-(dy * W + dx)) % HW
            if dy == 0 and dx == 0:
                mask = None
            else:
                ii = row_i + dy
                jj = col_j + dx
                mask = ((ii >= 0) & (ii < H) & (jj >= 0) & (jj < W)).astype(dw_dtype)
            taps.append((shift, mask, (dy + 1) * 3 + (dx + 1)))

    def cmix(w, v):
        """(O, K) x (K, N) channel mix.  Tiny K -> unrolled VPU broadcast-MACs
        (an MXU op here would use <1% of the array and round-trip the result
        FIFO); large K would go to the MXU in bf16."""
        K = v.shape[0]
        if K > 8:
            return jnp.dot(w.astype(jnp.bfloat16), v.astype(jnp.bfloat16),
                           preferred_element_type=jnp.float32)
        acc = w[:, 0:1] * v[0:1, :]
        for k in range(1, K):
            acc = acc + w[:, k:k + 1] * v[k:k + 1, :]
        return acc

    def layernorm(v, w, b):             # LayerNorm2d: normalize over channels
        mu = jnp.mean(v, axis=0, keepdims=True)
        d = v - mu
        var = jnp.mean(d * d, axis=0, keepdims=True)
        return d * lax.rsqrt(var + _EPS) * w + b

    def dwconv3x3(h, dww):              # fused depthwise 3x3 (2C channels)
        h_ = h.astype(dw_dtype)
        dww_ = dww.astype(dw_dtype)
        acc = None
        for shift, mask, k in taps:
            r = h_ if shift == 0 else pltpu.roll(h_, shift=shift, axis=1)
            if mask is not None:
                r = r * mask            # zero-padded borders
            term = r * dww_[:, k:k + 1]
            acc = term if acc is None else acc + term
        return acc.astype(jnp.float32)

    # Load every block's weights exactly once (independent of the batch block).
    wts = []
    for n in range(num_naf):
        wts.append(dict(
            w1=mat2_ref[n, MW1], w4=mat2_ref[n, MW4],
            wsca=mat1_ref[n, MSCA], w3=mat1_ref[n, MW3], w5=mat1_ref[n, MW5],
            b1=vec2c_ref[n, VB1], bdw=vec2c_ref[n, VBDW], b4=vec2c_ref[n, VB4],
            ln1w=vecc_ref[n, VLN1_W], ln1b=vecc_ref[n, VLN1_B],
            ln2w=vecc_ref[n, VLN2_W], ln2b=vecc_ref[n, VLN2_B],
            bsca=vecc_ref[n, VBSCA], b3=vecc_ref[n, VB3], b5=vecc_ref[n, VB5],
            beta=vecc_ref[n, VBETA], gamma=vecc_ref[n, VGAMMA],
            dww=dww_ref[n]))

    for b in range(x_ref.shape[0]):      # unrolled over the batch block
        x = x_ref[b]                     # (C, HW)
        for n in range(num_naf):         # unrolled over the fused NAFBlocks
            p = wts[n]
            # LN -> 1x1 (C->2C) -> dw3x3 -> SimpleGate -> SCA -> 1x1 -> +x*beta
            xn = layernorm(x, p["ln1w"], p["ln1b"])
            h = cmix(p["w1"], xn) + p["b1"]              # (2C, HW)
            h = dwconv3x3(h, p["dww"]) + p["bdw"]
            g = h[:C] * h[C:]                            # SimpleGate (C, HW)
            pooled = jnp.mean(g, axis=1, keepdims=True)  # (C, 1)
            att = cmix(p["wsca"], pooled) + p["bsca"]    # SCA 1x1 on pooled
            g = g * att
            y = x + (cmix(p["w3"], g) + p["b3"]) * p["beta"]
            # FFN: LN -> 1x1 (C->2C) -> SimpleGate -> 1x1 -> +y*gamma
            yn = layernorm(y, p["ln2w"], p["ln2b"])
            f = cmix(p["w4"], yn) + p["b4"]
            f = f[:C] * f[C:]
            x = y + (cmix(p["w5"], f) + p["b5"]) * p["gamma"]
        o_ref[b] = x


def naf_chain_pallas(x, p, H, W, tune):
    B, C, HW = x.shape
    NB, _, C2, _ = p["mat2"].shape
    bb = 1 if (tune["batch_grid"] and B > 1) else B      # batch block size

    kernel = functools.partial(naf_chain_kernel, H=H, W=W, num_naf=NB,
                               dw_bf16=tune["dw_bf16"])
    w_bytes = sum(4 * int(v.size) for v in p.values())
    macs = B * NB * HW * (2 * C2 * C + C2 * 9 + 2 * C * C) + B * NB * C * C
    cost = pl.CostEstimate(flops=2 * macs + B * NB * HW * 30 * C,
                           transcendentals=B * NB * 2 * HW,
                           bytes_accessed=8 * B * C * HW + w_bytes)

    return pl.pallas_call(
        kernel,
        out_shape=jax.ShapeDtypeStruct((B, C, HW), jnp.float32),
        grid=(B // bb,),
        in_specs=[
            pl.BlockSpec((bb, C, HW), lambda b: (b, 0, 0)),
            pl.BlockSpec(p["mat2"].shape, lambda b: (0, 0, 0, 0)),
            pl.BlockSpec(p["mat1"].shape, lambda b: (0, 0, 0, 0)),
            pl.BlockSpec(p["vec2c"].shape, lambda b: (0, 0, 0, 0)),
            pl.BlockSpec(p["vecc"].shape, lambda b: (0, 0, 0, 0)),
            pl.BlockSpec(p["dww"].shape, lambda b: (0, 0, 0)),
        ],
        out_specs=pl.BlockSpec((bb, C, HW), lambda b: (b, 0, 0)),
        compiler_params=pltpu.CompilerParams(
            dimension_semantics=("parallel",),
            vmem_limit_bytes=32 * 1024 * 1024),
        cost_estimate=cost,
    )(x, p["mat2"], p["mat1"], p["vec2c"], p["vecc"], p["dww"])


# ----------------------------------------------------------------------------
# STN warp kernel: F.affine_grid + bilinear F.grid_sample (zeros padding,
# align_corners=False).  One unweighted source one-hot; the other three taps
# are roll-derived; one f32 MXU matmul per (batch, column-tile) step.
# ----------------------------------------------------------------------------
def grid_sample_kernel(theta_ref, x_ref, o_ref, *, H, W, col_tile):
    b = pl.program_id(0)
    t = pl.program_id(1)
    HW = H * W
    log2w = W.bit_length() - 1

    # Global flat index of the output positions handled by this column tile.
    pos = lax.broadcasted_iota(jnp.int32, (1, col_tile), 1) + t * col_tile
    ii = (pos >> log2w).astype(jnp.float32)      # output row
    jj = (pos & (W - 1)).astype(jnp.float32)     # output col

    t00 = theta_ref[b, 0]; t01 = theta_ref[b, 1]; t02 = theta_ref[b, 2]
    t10 = theta_ref[b, 3]; t11 = theta_ref[b, 4]; t12 = theta_ref[b, 5]

    # F.affine_grid base grid at pixel centers (align_corners=False)
    xb = (2.0 * jj + 1.0) / W - 1.0
    yb = (2.0 * ii + 1.0) / H - 1.0
    xs = t00 * xb + t01 * yb + t02
    ys = t10 * xb + t11 * yb + t12
    # F.grid_sample un-normalization (align_corners=False)
    ix = ((xs + 1.0) * W - 1.0) * 0.5
    iy = ((ys + 1.0) * H - 1.0) * 0.5

    ix0f = jnp.floor(ix)
    iy0f = jnp.floor(iy)
    wx1 = ix - ix0f
    wx0 = 1.0 - wx1
    wy1 = iy - iy0f
    wy0 = 1.0 - wy1
    ix0 = ix0f.astype(jnp.int32)
    iy0 = iy0f.astype(jnp.int32)

    def tap_weight(dy, dx, wgt):                 # zeros padding outside the image
        yy = iy0 + dy
        xx = ix0 + dx
        valid = (yy >= 0) & (yy < H) & (xx >= 0) & (xx < W)
        return jnp.where(valid, wgt, 0.0)

    # Base (0,0) one-hot at the mod-HW flat source index.  The other three taps
    # are XLU sublane-rolls of it by 1, W, W+1: whenever a tap is in-bounds the
    # rolled row equals its true source row, and out-of-bounds taps carry zero
    # weight, so wrap rows never contribute.
    flat00 = (iy0 * W + ix0) % HW                              # (1, col_tile)
    src_ids = lax.broadcasted_iota(jnp.int32, (HW, col_tile), 0)
    onehot = (src_ids == flat00).astype(jnp.float32)           # (HW, col_tile)

    m = onehot * tap_weight(0, 0, wy0 * wx0)                   # init from tap 0
    for dy, dx, wgt in ((0, 1, wy0 * wx1),
                        (1, 0, wy1 * wx0),
                        (1, 1, wy1 * wx1)):
        m = m + pltpu.roll(onehot, shift=dy * W + dx, axis=0) * tap_weight(dy, dx, wgt)

    # Warp matmul kept in f32 for F.grid_sample parity (M=C is tiny, so the
    # multi-pass f32 MXU cost is negligible; bf16 m would trade accuracy).
    o_ref[0] = jnp.dot(x_ref[0], m, preferred_element_type=jnp.float32)


def grid_sample_pallas(x, theta, H, W):
    B, C, HW = x.shape
    col_tile = min(HW, 512)      # cap the (HW, tile) slab so it fits v7x VMEM
    n_col = HW // col_tile       # at production R; single step at R=16
    kernel = functools.partial(grid_sample_kernel, H=H, W=W, col_tile=col_tile)
    cost = pl.CostEstimate(flops=2 * B * C * HW * HW + 60 * B * HW,
                           transcendentals=0,
                           bytes_accessed=8 * B * C * HW + 24 * B)
    return pl.pallas_call(
        kernel,
        out_shape=jax.ShapeDtypeStruct((B, C, HW), jnp.float32),
        grid=(B, n_col),
        in_specs=[
            pl.BlockSpec(memory_space=pltpu.MemorySpace.SMEM),   # theta (B, 6)
            pl.BlockSpec((1, C, HW), lambda b, t: (b, 0, 0)),
        ],
        out_specs=pl.BlockSpec((1, C, col_tile), lambda b, t: (b, 0, t)),
        compiler_params=pltpu.CompilerParams(
            dimension_semantics=("parallel", "parallel"),
            vmem_limit_bytes=32 * 1024 * 1024),
        cost_estimate=cost,
    )(theta, x)


# ----------------------------------------------------------------------------
# STN localization branch (plain JAX glue -- tiny side path producing 6 scalars
# per batch element).  NCHW dimension numbers: no transpose, and the flatten
# order matches PyTorch's x.view(B, -1).
# TODO(synk): fold this CNN+FC into a Pallas kernel to remove the serialized
#             XLA glue between the NAF call and the warp call.
# ----------------------------------------------------------------------------
def stn_localization(x_nchw, p):
    dn = ("NCHW", "OIHW", "NCHW")
    y = lax.conv_general_dilated(x_nchw, p["c1_w"], (1, 1), [(3, 3), (3, 3)],
                                 dimension_numbers=dn)
    y = y + p["c1_b"][None, :, None, None]
    y = lax.reduce_window(y, -jnp.inf, lax.max, (1, 1, 2, 2), (1, 1, 2, 2), "VALID")
    y = jax.nn.relu(y)
    y = lax.conv_general_dilated(y, p["c2_w"], (1, 1), [(2, 2), (2, 2)],
                                 dimension_numbers=dn)
    y = y + p["c2_b"][None, :, None, None]
    y = lax.reduce_window(y, -jnp.inf, lax.max, (1, 1, 2, 2), (1, 1, 2, 2), "VALID")
    y = jax.nn.relu(y)
    feat = y.reshape(y.shape[0], -1)             # NCHW flatten, matches .view(B,-1)
    h = jax.nn.relu(feat @ p["fc1_w"] + p["fc1_b"])
    return h @ p["fc2_w"] + p["fc2_b"]           # theta (B, 6), row-major 2x3


# ----------------------------------------------------------------------------
# Full NAF_STN_Block forward
# ----------------------------------------------------------------------------
def naf_stn_block_forward(x_nchw, params, tune=None):
    if tune is None:
        tune = _device_tuning()
    B, C, H, W = x_nchw.shape
    assert (H & (H - 1)) == 0 and (W & (W - 1)) == 0, "kernels assume pow2 spatial dims"
    # NCHW flattened: channels -> sublanes, HW (multiple of 128) -> lanes.
    x = x_nchw.reshape(B, C, H * W)

    x = naf_chain_pallas(x, params["naf"], H, W, tune)    # self.nfbs (all blocks fused)

    theta = stn_localization(x.reshape(B, C, H, W), params["stn"])
    x = grid_sample_pallas(x, theta, H, W)                # self.stn (warp)

    # self.sampling == nn.Identity()  (sampling=None)
    return x.reshape(B, C, H, W)


# ----------------------------------------------------------------------------
# Deterministic parameter initialization (stacked over num_naf)
# ----------------------------------------------------------------------------
def init_params(key, C, R, num_naf):
    keys = iter(jax.random.split(key, 64))

    def nrm(shape, scale):
        return scale * jax.random.normal(next(keys), shape, jnp.float32)

    C2 = 2 * C
    mat2 = nrm((num_naf, 2, C2, C), 0.3)          # conv1 / conv4 weights
    mat1 = nrm((num_naf, 3, C, C), 0.3)           # SCA / conv3 / conv5 weights
    vec2c = nrm((num_naf, 3, C2, 1), 0.05)        # b1 / b_dw / b4
    vecc = jnp.zeros((num_naf, 9, C, 1), jnp.float32)
    vecc = vecc.at[:, VLN1_W].set(1.0).at[:, VLN2_W].set(1.0)
    vecc = vecc.at[:, VBSCA].set(nrm((num_naf, C, 1), 0.05))
    vecc = vecc.at[:, VB3].set(nrm((num_naf, C, 1), 0.05))
    vecc = vecc.at[:, VB5].set(nrm((num_naf, C, 1), 0.05))
    vecc = vecc.at[:, VBETA].set(nrm((num_naf, C, 1), 0.1))
    vecc = vecc.at[:, VGAMMA].set(nrm((num_naf, C, 1), 0.1))
    dww = nrm((num_naf, C2, 9), 0.3)              # depthwise 3x3 taps
    naf = {"mat2": mat2, "mat1": mat1, "vec2c": vec2c, "vecc": vecc, "dww": dww}

    r4 = R // 4
    stn = {
        "c1_w": nrm((8, C, 7, 7), 0.05), "c1_b": nrm((8,), 0.01),     # OIHW
        "c2_w": nrm((10, 8, 5, 5), 0.05), "c2_b": nrm((10,), 0.01),
        "fc1_w": nrm((10 * r4 * r4, 32), 0.05), "fc1_b": nrm((32,), 0.01),
        "fc2_w": nrm((32, 6), 0.01),
        "fc2_b": jnp.array([1.0, 0.0, 0.0, 0.0, 1.0, 0.0], jnp.float32),  # near-identity warp
    }
    return {"naf": naf, "stn": stn}


if __name__ == "__main__":
    B, C, R = 2, 4, 16        # batch, in_channel, in_resolution
    NUM_NAF = 2               # num_naf

    key = jax.random.PRNGKey(0)
    kx, kp = jax.random.split(key)
    x = jax.random.normal(kx, (B, C, R, R), jnp.float32)
    params = init_params(kp, C, R, NUM_NAF)

    fwd = jax.jit(naf_stn_block_forward)
    out = jax.block_until_ready(fwd(x, params))

    assert out.shape == (B, C, R, R), out.shape
    assert bool(jnp.all(jnp.isfinite(out)))
    print("KERNEL_OK")
</pallas_src>

<mosaic_0001>
module attributes {stable_mosaic.version = 11 : i64} {
  func.func @naf_chain_kernel(%arg0: i32, %arg1: memref<2x4x256xf32, #tpu.memory_space<vmem>>, %arg2: memref<2x2x8x4xf32, #tpu.memory_space<vmem>>, %arg3: memref<2x3x4x4xf32, #tpu.memory_space<vmem>>, %arg4: memref<2x3x8x1xf32, #tpu.memory_space<vmem>>, %arg5: memref<2x9x4x1xf32, #tpu.memory_space<vmem>>, %arg6: memref<2x8x9xf32, #tpu.memory_space<vmem>>, %arg7: memref<2x4x256xf32, #tpu.memory_space<vmem>>) attributes {dimension_semantics = [#tpu.dimension_semantics<parallel>], iteration_bounds = array<i64: 1>, scalar_prefetch = 0 : i64, scratch_operands = 0 : i64, tpu.core_type = #tpu.core_type<tc>, window_params = [{transform_indices = @transform_0, window_bounds = array<i64: 2, 4, 256>}, {pipeline_mode = #tpu.pipeline_mode<synchronous>, transform_indices = @transform_1, window_bounds = array<i64: 2, 2, 8, 4>}, {pipeline_mode = #tpu.pipeline_mode<synchronous>, transform_indices = @transform_2, window_bounds = array<i64: 2, 3, 4, 4>}, {pipeline_mode = #tpu.pipeline_mode<synchronous>, transform_indices = @transform_3, window_bounds = array<i64: 2, 3, 8, 1>}, {pipeline_mode = #tpu.pipeline_mode<synchronous>, transform_indices = @transform_4, window_bounds = array<i64: 2, 9, 4, 1>}, {pipeline_mode = #tpu.pipeline_mode<synchronous>, transform_indices = @transform_5, window_bounds = array<i64: 2, 8, 9>}, {transform_indices = @transform_6, window_bounds = array<i64: 2, 4, 256>}]} {
    %0 = tpu.iota {dimensions = array<i32: 1>} : vector<1x256xi32>
    %c4_i32 = arith.constant 4 : i32
    %1 = vector.broadcast %c4_i32 : i32 to vector<1x256xi32>
    %2 = arith.shrsi %0, %1 : vector<1x256xi32>
    %c15_i32 = arith.constant 15 : i32
    %3 = vector.broadcast %c15_i32 : i32 to vector<1x256xi32>
    %4 = arith.andi %0, %3 : vector<1x256xi32>
    %c-1_i32 = arith.constant -1 : i32
    %5 = vector.broadcast %c-1_i32 : i32 to vector<1x256xi32>
    %6 = arith.addi %2, %5 : vector<1x256xi32>
    %c-1_i32_0 = arith.constant -1 : i32
    %7 = vector.broadcast %c-1_i32_0 : i32 to vector<1x256xi32>
    %8 = arith.addi %4, %7 : vector<1x256xi32>
    %c0_i32 = arith.constant 0 : i32
    %9 = vector.broadcast %c0_i32 : i32 to vector<1x256xi32>
    %10 = arith.cmpi sge, %6, %9 : vector<1x256xi32>
    %c16_i32 = arith.constant 16 : i32
    %11 = vector.broadcast %c16_i32 : i32 to vector<1x256xi32>
    %12 = arith.cmpi slt, %6, %11 : vector<1x256xi32>
    %13 = arith.andi %10, %12 : vector<1x256xi1>
    %c0_i32_1 = arith.constant 0 : i32
    %14 = vector.broadcast %c0_i32_1 : i32 to vector<1x256xi32>
    %15 = arith.cmpi sge, %8, %14 : vector<1x256xi32>
    %16 = arith.andi %13, %15 : vector<1x256xi1>
    %c16_i32_2 = arith.constant 16 : i32
    %17 = vector.broadcast %c16_i32_2 : i32 to vector<1x256xi32>
    %18 = arith.cmpi slt, %8, %17 : vector<1x256xi32>
    %19 = arith.andi %16, %18 : vector<1x256xi1>
    %20 = arith.extui %19 : vector<1x256xi1> to vector<1x256xi32>
    %21 = arith.sitofp %20 : vector<1x256xi32> to vector<1x256xf32>
    %c-1_i32_3 = arith.constant -1 : i32
    %22 = vector.broadcast %c-1_i32_3 : i32 to vector<1x256xi32>
    %23 = arith.addi %2, %22 : vector<1x256xi32>
    %c0_i32_4 = arith.constant 0 : i32
    %24 = vector.broadcast %c0_i32_4 : i32 to vector<1x256xi32>
    %25 = arith.addi %4, %24 : vector<1x256xi32>
    %c0_i32_5 = arith.constant 0 : i32
    %26 = vector.broadcast %c0_i32_5 : i32 to vector<1x256xi32>
    %27 = arith.cmpi sge, %23, %26 : vector<1x256xi32>
    %c16_i32_6 = arith.constant 16 : i32
    %28 = vector.broadcast %c16_i32_6 : i32 to vector<1x256xi32>
    %29 = arith.cmpi slt, %23, %28 : vector<1x256xi32>
    %30 = arith.andi %27, %29 : vector<1x256xi1>
    %c0_i32_7 = arith.constant 0 : i32
    %31 = vector.broadcast %c0_i32_7 : i32 to vector<1x256xi32>
    %32 = arith.cmpi sge, %25, %31 : vector<1x256xi32>
    %33 = arith.andi %30, %32 : vector<1x256xi1>
    %c16_i32_8 = arith.constant 16 : i32
    %34 = vector.broadcast %c16_i32_8 : i32 to vector<1x256xi32>
    %35 = arith.cmpi slt, %25, %34 : vector<1x256xi32>
    %36 = arith.andi %33, %35 : vector<1x256xi1>
    %37 = arith.extui %36 : vector<1x256xi1> to vector<1x256xi32>
    %38 = arith.sitofp %37 : vector<1x256xi32> to vector<1x256xf32>
    %c-1_i32_9 = arith.constant -1 : i32
    %39 = vector.broadcast %c-1_i32_9 : i32 to vector<1x256xi32>
    %40 = arith.addi %2, %39 : vector<1x256xi32>
    %c1_i32 = arith.constant 1 : i32
    %41 = vector.broadcast %c1_i32 : i32 to vector<1x256xi32>
    %42 = arith.addi %4, %41 : vector<1x256xi32>
    %c0_i32_10 = arith.constant 0 : i32
    %43 = vector.broadcast %c0_i32_10 : i32 to vector<1x256xi32>
    %44 = arith.cmpi sge, %40, %43 : vector<1x256xi32>
    %c16_i32_11 = arith.constant 16 : i32
    %45 = vector.broadcast %c16_i32_11 : i32 to vector<1x256xi32>
    %46 = arith.cmpi slt, %40, %45 : vector<1x256xi32>
    %47 = arith.andi %44, %46 : vector<1x256xi1>
    %c0_i32_12 = arith.constant 0 : i32
    %48 = vector.broadcast %c0_i32_12 : i32 to vector<1x256xi32>
    %49 = arith.cmpi sge, %42, %48 : vector<1x256xi32>
    %50 = arith.andi %47, %49 : vector<1x256xi1>
    %c16_i32_13 = arith.constant 16 : i32
    %51 = vector.broadcast %c16_i32_13 : i32 to vector<1x256xi32>
    %52 = arith.cmpi slt, %42, %51 : vector<1x256xi32>
    %53 = arith.andi %50, %52 : vector<1x256xi1>
    %54 = arith.extui %53 : vector<1x256xi1> to vector<1x256xi32>
    %55 = arith.sitofp %54 : vector<1x256xi32> to vector<1x256xf32>
    %c0_i32_14 = arith.constant 0 : i32
    %56 = vector.broadcast %c0_i32_14 : i32 to vector<1x256xi32>
    %57 = arith.addi %2, %56 : vector<1x256xi32>
    %c-1_i32_15 = arith.constant -1 : i32
    %58 = vector.broadcast %c-1_i32_15 : i32 to vector<1x256xi32>
    %59 = arith.addi %4, %58 : vector<1x256xi32>
    %c0_i32_16 = arith.constant 0 : i32
    %60 = vector.broadcast %c0_i32_16 : i32 to vector<1x256xi32>
    %61 = arith.cmpi sge, %57, %60 : vector<1x256xi32>
    %c16_i32_17 = arith.constant 16 : i32
    %62 = vector.broadcast %c16_i32_17 : i32 to vector<1x256xi32>
    %63 = arith.cmpi slt, %57, %62 : vector<1x256xi32>
    %64 = arith.andi %61, %63 : vector<1x256xi1>
    %c0_i32_18 = arith.constant 0 : i32
    %65 = vector.broadcast %c0_i32_18 : i32 to vector<1x256xi32>
    %66 = arith.cmpi sge, %59, %65 : vector<1x256xi32>
    %67 = arith.andi %64, %66 : vector<1x256xi1>
    %c16_i32_19 = arith.constant 16 : i32
    %68 = vector.broadcast %c16_i32_19 : i32 to vector<1x256xi32>
    %69 = arith.cmpi slt, %59, %68 : vector<1x256xi32>
    %70 = arith.andi %67, %69 : vector<1x256xi1>
    %71 = arith.extui %70 : vector<1x256xi1> to vector<1x256xi32>
    %72 = arith.sitofp %71 : vector<1x256xi32> to vector<1x256xf32>
    %c0_i32_20 = arith.constant 0 : i32
    %73 = vector.broadcast %c0_i32_20 : i32 to vector<1x256xi32>
    %74 = arith.addi %2, %73 : vector<1x256xi32>
    %c1_i32_21 = arith.constant 1 : i32
    %75 = vector.broadcast %c1_i32_21 : i32 to vector<1x256xi32>
    %76 = arith.addi %4, %75 : vector<1x256xi32>
    %c0_i32_22 = arith.constant 0 : i32
    %77 = vector.broadcast %c0_i32_22 : i32 to vector<1x256xi32>
    %78 = arith.cmpi sge, %74, %77 : vector<1x256xi32>
    %c16_i32_23 = arith.constant 16 : i32
    %79 = vector.broadcast %c16_i32_23 : i32 to vector<1x256xi32>
    %80 = arith.cmpi slt, %74, %79 : vector<1x256xi32>
    %81 = arith.andi %78, %80 : vector<1x256xi1>
    %c0_i32_24 = arith.constant 0 : i32
    %82 = vector.broadcast %c0_i32_24 : i32 to vector<1x256xi32>
    %83 = arith.cmpi sge, %76, %82 : vector<1x256xi32>
    %84 = arith.andi %81, %83 : vector<1x256xi1>
    %c16_i32_25 = arith.constant 16 : i32
    %85 = vector.broadcast %c16_i32_25 : i32 to vector<1x256xi32>
    %86 = arith.cmpi slt, %76, %85 : vector<1x256xi32>
    %87 = arith.andi %84, %86 : vector<1x256xi1>
    %88 = arith.extui %87 : vector<1x256xi1> to vector<1x256xi32>
    %89 = arith.sitofp %88 : vector<1x256xi32> to vector<1x256xf32>
    %c1_i32_26 = arith.constant 1 : i32
    %90 = vector.broadcast %c1_i32_26 : i32 to vector<1x256xi32>
    %91 = arith.addi %2, %90 : vector<1x256xi32>
    %c-1_i32_27 = arith.constant -1 : i32
    %92 = vector.broadcast %c-1_i32_27 : i32 to vector<1x256xi32>
    %93 = arith.addi %4, %92 : vector<1x256xi32>
    %c0_i32_28 = arith.constant 0 : i32
    %94 = vector.broadcast %c0_i32_28 : i32 to vector<1x256xi32>
    %95 = arith.cmpi sge, %91, %94 : vector<1x256xi32>
    %c16_i32_29 = arith.constant 16 : i32
    %96 = vector.broadcast %c16_i32_29 : i32 to vector<1x256xi32>
    %97 = arith.cmpi slt, %91, %96 : vector<1x256xi32>
    %98 = arith.andi %95, %97 : vector<1x256xi1>
    %c0_i32_30 = arith.constant 0 : i32
    %99 = vector.broadcast %c0_i32_30 : i32 to vector<1x256xi32>
    %100 = arith.cmpi sge, %93, %99 : vector<1x256xi32>
    %101 = arith.andi %98, %100 : vector<1x256xi1>
    %c16_i32_31 = arith.constant 16 : i32
    %102 = vector.broadcast %c16_i32_31 : i32 to vector<1x256xi32>
    %103 = arith.cmpi slt, %93, %102 : vector<1x256xi32>
    %104 = arith.andi %101, %103 : vector<1x256xi1>
    %105 = arith.extui %104 : vector<1x256xi1> to vector<1x256xi32>
    %106 = arith.sitofp %105 : vector<1x256xi32> to vector<1x256xf32>
    %c1_i32_32 = arith.constant 1 : i32
    %107 = vector.broadcast %c1_i32_32 : i32 to vector<1x256xi32>
    %108 = arith.addi %2, %107 : vector<1x256xi32>
    %c0_i32_33 = arith.constant 0 : i32
    %109 = vector.broadcast %c0_i32_33 : i32 to vector<1x256xi32>
    %110 = arith.addi %4, %109 : vector<1x256xi32>
    %c0_i32_34 = arith.constant 0 : i32
    %111 = vector.broadcast %c0_i32_34 : i32 to vector<1x256xi32>
    %112 = arith.cmpi sge, %108, %111 : vector<1x256xi32>
    %c16_i32_35 = arith.constant 16 : i32
    %113 = vector.broadcast %c16_i32_35 : i32 to vector<1x256xi32>
    %114 = arith.cmpi slt, %108, %113 : vector<1x256xi32>
    %115 = arith.andi %112, %114 : vector<1x256xi1>
    %c0_i32_36 = arith.constant 0 : i32
    %116 = vector.broadcast %c0_i32_36 : i32 to vector<1x256xi32>
    %117 = arith.cmpi sge, %110, %116 : vector<1x256xi32>
    %118 = arith.andi %115, %117 : vector<1x256xi1>
    %c16_i32_37 = arith.constant 16 : i32
    %119 = vector.broadcast %c16_i32_37 : i32 to vector<1x256xi32>
    %120 = arith.cmpi slt, %110, %119 : vector<1x256xi32>
    %121 = arith.andi %118, %120 : vector<1x256xi1>
    %122 = arith.extui %121 : vector<1x256xi1> to vector<1x256xi32>
    %123 = arith.sitofp %122 : vector<1x256xi32> to vector<1x256xf32>
    %c1_i32_38 = arith.constant 1 : i32
    %124 = vector.broadcast %c1_i32_38 : i32 to vector<1x256xi32>
    %125 = arith.addi %2, %124 : vector<1x256xi32>
    %c1_i32_39 = arith.constant 1 : i32
    %126 = vector.broadcast %c1_i32_39 : i32 to vector<1x256xi32>
    %127 = arith.addi %4, %126 : vector<1x256xi32>
    %c0_i32_40 = arith.constant 0 : i32
    %128 = vector.broadcast %c0_i32_40 : i32 to vector<1x256xi32>
    %129 = arith.cmpi sge, %125, %128 : vector<1x256xi32>
    %c16_i32_41 = arith.constant 16 : i32
    %130 = vector.broadcast %c16_i32_41 : i32 to vector<1x256xi32>
    %131 = arith.cmpi slt, %125, %130 : vector<1x256xi32>
    %132 = arith.andi %129, %131 : vector<1x256xi1>
    %c0_i32_42 = arith.constant 0 : i32
    %133 = vector.broadcast %c0_i32_42 : i32 to vector<1x256xi32>
    %134 = arith.cmpi sge, %127, %133 : vector<1x256xi32>
    %135 = arith.andi %132, %134 : vector<1x256xi1>
    %c16_i32_43 = arith.constant 16 : i32
    %136 = vector.broadcast %c16_i32_43 : i32 to vector<1x256xi32>
    %137 = arith.cmpi slt, %127, %136 : vector<1x256xi32>
    %138 = arith.andi %135, %137 : vector<1x256xi1>
    %139 = arith.extui %138 : vector<1x256xi1> to vector<1x256xi32>
    %140 = arith.sitofp %139 : vector<1x256xi32> to vector<1x256xf32>
    %c0 = arith.constant 0 : index
    %c0_44 = arith.constant 0 : index
    %c0_45 = arith.constant 0 : index
    %c0_46 = arith.constant 0 : index
    %141 = vector.load %arg2[%c0, %c0_44, %c0_45, %c0_46] : memref<2x2x8x4xf32, #tpu.memory_space<vmem>>, vector<1x1x8x4xf32>
    %142 = vector.shape_cast %141 : vector<1x1x8x4xf32> to vector<8x4xf32>
    %c0_47 = arith.constant 0 : index
    %c1 = arith.constant 1 : index
    %c0_48 = arith.constant 0 : index
    %c0_49 = arith.constant 0 : index
    %143 = vector.load %arg2[%c0_47, %c1, %c0_48, %c0_49] : memref<2x2x8x4xf32, #tpu.memory_space<vmem>>, vector<1x1x8x4xf32>
    %144 = vector.shape_cast %143 : vector<1x1x8x4xf32> to vector<8x4xf32>
    %c0_50 = arith.constant 0 : index
    %c0_51 = arith.constant 0 : index
    %c0_52 = arith.constant 0 : index
    %c0_53 = arith.constant 0 : index
    %145 = vector.load %arg3[%c0_50, %c0_51, %c0_52, %c0_53] : memref<2x3x4x4xf32, #tpu.memory_space<vmem>>, vector<1x1x4x4xf32>
    %146 = vector.shape_cast %145 : vector<1x1x4x4xf32> to vector<4x4xf32>
    %c0_54 = arith.constant 0 : index
    %c1_55 = arith.constant 1 : index
    %c0_56 = arith.constant 0 : index
    %c0_57 = arith.constant 0 : index
    %147 = vector.load %arg3[%c0_54, %c1_55, %c0_56, %c0_57] : memref<2x3x4x4xf32, #tpu.memory_space<vmem>>, vector<1x1x4x4xf32>
    %148 = vector.shape_cast %147 : vector<1x1x4x4xf32> to vector<4x4xf32>
    %c0_58 = arith.constant 0 : index
    %c2 = arith.constant 2 : index
    %c0_59 = arith.constant 0 : index
    %c0_60 = arith.constant 0 : index
    %149 = vector.load %arg3[%c0_58, %c2, %c0_59, %c0_60] : memref<2x3x4x4xf32, #tpu.memory_space<vmem>>, vector<1x1x4x4xf32>
    %150 = vector.shape_cast %149 : vector<1x1x4x4xf32> to vector<4x4xf32>
    %c0_61 = arith.constant 0 : index
    %c0_62 = arith.constant 0 : index
    %c0_63 = arith.constant 0 : index
    %c0_64 = arith.constant 0 : index
    %151 = vector.load %arg4[%c0_61, %c0_62, %c0_63, %c0_64] : memref<2x3x8x1xf32, #tpu.memory_space<vmem>>, vector<1x1x8x1xf32>
    %152 = vector.shape_cast %151 : vector<1x1x8x1xf32> to vector<8x1xf32>
    %c0_65 = arith.constant 0 : index
    %c1_66 = arith.constant 1 : index
    %c0_67 = arith.constant 0 : index
    %c0_68 = arith.constant 0 : index
    %153 = vector.load %arg4[%c0_65, %c1_66, %c0_67, %c0_68] : memref<2x3x8x1xf32, #tpu.memory_space<vmem>>, vector<1x1x8x1xf32>
    %154 = vector.shape_cast %153 : vector<1x1x8x1xf32> to vector<8x1xf32>
    %c0_69 = arith.constant 0 : index
    %c2_70 = arith.constant 2 : index
    %c0_71 = arith.constant 0 : index
    %c0_72 = arith.constant 0 : index
    %155 = vector.load %arg4[%c0_69, %c2_70, %c0_71, %c0_72] : memref<2x3x8x1xf32, #tpu.memory_space<vmem>>, vector<1x1x8x1xf32>
    %156 = vector.shape_cast %155 : vector<1x1x8x1xf32> to vector<8x1xf32>
    %c0_73 = arith.constant 0 : index
    %c0_74 = arith.constant 0 : index
    %c0_75 = arith.constant 0 : index
    %c0_76 = arith.constant 0 : index
    %157 = vector.load %arg5[%c0_73, %c0_74, %c0_75, %c0_76] : memref<2x9x4x1xf32, #tpu.memory_space<vmem>>, vector<1x1x4x1xf32>
    %158 = vector.shape_cast %157 : vector<1x1x4x1xf32> to vector<4x1xf32>
    %c0_77 = arith.constant 0 : index
    %c1_78 = arith.constant 1 : index
    %c0_79 = arith.constant 0 : index
    %c0_80 = arith.constant 0 : index
    %159 = vector.load %arg5[%c0_77, %c1_78, %c0_79, %c0_80] : memref<2x9x4x1xf32, #tpu.memory_space<vmem>>, vector<1x1x4x1xf32>
    %160 = vector.shape_cast %159 : vector<1x1x4x1xf32> to vector<4x1xf32>
    %c0_81 = arith.constant 0 : index
    %c2_82 = arith.constant 2 : index
    %c0_83 = arith.constant 0 : index
    %c0_84 = arith.constant 0 : index
    %161 = vector.load %arg5[%c0_81, %c2_82, %c0_83, %c0_84] : memref<2x9x4x1xf32, #tpu.memory_space<vmem>>, vector<1x1x4x1xf32>
    %162 = vector.shape_cast %161 : vector<1x1x4x1xf32> to vector<4x1xf32>
    %c0_85 = arith.constant 0 : index
    %c3 = arith.constant 3 : index
    %c0_86 = arith.constant 0 : index
    %c0_87 = arith.constant 0 : index
    %163 = vector.load %arg5[%c0_85, %c3, %c0_86, %c0_87] : memref<2x9x4x1xf32, #tpu.memory_space<vmem>>, vector<1x1x4x1xf32>
    %164 = vector.shape_cast %163 : vector<1x1x4x1xf32> to vector<4x1xf32>
    %c0_88 = arith.constant 0 : index
    %c4 = arith.constant 4 : index
    %c0_89 = arith.constant 0 : index
    %c0_90 = arith.constant 0 : index
    %165 = vector.load %arg5[%c0_88, %c4, %c0_89, %c0_90] : memref<2x9x4x1xf32, #tpu.memory_space<vmem>>, vector<1x1x4x1xf32>
    %166 = vector.shape_cast %165 : vector<1x1x4x1xf32> to vector<4x1xf32>
    %c0_91 = arith.constant 0 : index
    %c5 = arith.constant 5 : index
    %c0_92 = arith.constant 0 : index
    %c0_93 = arith.constant 0 : index
    %167 = vector.load %arg5[%c0_91, %c5, %c0_92, %c0_93] : memref<2x9x4x1xf32, #tpu.memory_space<vmem>>, vector<1x1x4x1xf32>
    %168 = vector.shape_cast %167 : vector<1x1x4x1xf32> to vector<4x1xf32>
    %c0_94 = arith.constant 0 : index
    %c6 = arith.constant 6 : index
    %c0_95 = arith.constant 0 : index
    %c0_96 = arith.constant 0 : index
    %169 = vector.load %arg5[%c0_94, %c6, %c0_95, %c0_96] : memref<2x9x4x1xf32, #tpu.memory_space<vmem>>, vector<1x1x4x1xf32>
    %170 = vector.shape_cast %169 : vector<1x1x4x1xf32> to vector<4x1xf32>
    %c0_97 = arith.constant 0 : index
    %c7 = arith.constant 7 : index
    %c0_98 = arith.constant 0 : index
    %c0_99 = arith.constant 0 : index
    %171 = vector.load %arg5[%c0_97, %c7, %c0_98, %c0_99] : memref<2x9x4x1xf32, #tpu.memory_space<vmem>>, vector<1x1x4x1xf32>
    %172 = vector.shape_cast %171 : vector<1x1x4x1xf32> to vector<4x1xf32>
    %c0_100 = arith.constant 0 : index
    %c8 = arith.constant 8 : index
    %c0_101 = arith.constant 0 : index
    %c0_102 = arith.constant 0 : index
    %173 = vector.load %arg5[%c0_100, %c8, %c0_101, %c0_102] : memref<2x9x4x1xf32, #tpu.memory_space<vmem>>, vector<1x1x4x1xf32>
    %174 = vector.shape_cast %173 : vector<1x1x4x1xf32> to vector<4x1xf32>
    %c0_103 = arith.constant 0 : index
    %c0_104 = arith.constant 0 : index
    %c0_105 = arith.constant 0 : index
    %175 = vector.load %arg6[%c0_103, %c0_104, %c0_105] : memref<2x8x9xf32, #tpu.memory_space<vmem>>, vector<1x8x9xf32>
    %176 = vector.shape_cast %175 : vector<1x8x9xf32> to vector<8x9xf32>
    %c1_106 = arith.constant 1 : index
    %c0_107 = arith.constant 0 : index
    %c0_108 = arith.constant 0 : index
    %c0_109 = arith.constant 0 : index
    %177 = vector.load %arg2[%c1_106, %c0_107, %c0_108, %c0_109] : memref<2x2x8x4xf32, #tpu.memory_space<vmem>>, vector<1x1x8x4xf32>
    %178 = vector.shape_cast %177 : vector<1x1x8x4xf32> to vector<8x4xf32>
    %c1_110 = arith.constant 1 : index
    %c1_111 = arith.constant 1 : index
    %c0_112 = arith.constant 0 : index
    %c0_113 = arith.constant 0 : index
    %179 = vector.load %arg2[%c1_110, %c1_111, %c0_112, %c0_113] : memref<2x2x8x4xf32, #tpu.memory_space<vmem>>, vector<1x1x8x4xf32>
    %180 = vector.shape_cast %179 : vector<1x1x8x4xf32> to vector<8x4xf32>
    %c1_114 = arith.constant 1 : index
    %c0_115 = arith.constant 0 : index
    %c0_116 = arith.constant 0 : index
    %c0_117 = arith.constant 0 : index
    %181 = vector.load %arg3[%c1_114, %c0_115, %c0_116, %c0_117] : memref<2x3x4x4xf32, #tpu.memory_space<vmem>>, vector<1x1x4x4xf32>
    %182 = vector.shape_cast %181 : vector<1x1x4x4xf32> to vector<4x4xf32>
    %c1_118 = arith.constant 1 : index
    %c1_119 = arith.constant 1 : index
    %c0_120 = arith.constant 0 : index
    %c0_121 = arith.constant 0 : index
    %183 = vector.load %arg3[%c1_118, %c1_119, %c0_120, %c0_121] : memref<2x3x4x4xf32, #tpu.memory_space<vmem>>, vector<1x1x4x4xf32>
    %184 = vector.shape_cast %183 : vector<1x1x4x4xf32> to vector<4x4xf32>
    %c1_122 = arith.constant 1 : index
    %c2_123 = arith.constant 2 : index
    %c0_124 = arith.constant 0 : index
    %c0_125 = arith.constant 0 : index
    %185 = vector.load %arg3[%c1_122, %c2_123, %c0_124, %c0_125] : memref<2x3x4x4xf32, #tpu.memory_space<vmem>>, vector<1x1x4x4xf32>
    %186 = vector.shape_cast %185 : vector<1x1x4x4xf32> to vector<4x4xf32>
    %c1_126 = arith.constant 1 : index
    %c0_127 = arith.constant 0 : index
    %c0_128 = arith.constant 0 : index
    %c0_129 = arith.constant 0 : index
    %187 = vector.load %arg4[%c1_126, %c0_127, %c0_128, %c0_129] : memref<2x3x8x1xf32, #tpu.memory_space<vmem>>, vector<1x1x8x1xf32>
    %188 = vector.shape_cast %187 : vector<1x1x8x1xf32> to vector<8x1xf32>
    %c1_130 = arith.constant 1 : index
    %c1_131 = arith.constant 1 : index
    %c0_132 = arith.constant 0 : index
    %c0_133 = arith.constant 0 : index
    %189 = vector.load %arg4[%c1_130, %c1_131, %c0_132, %c0_133] : memref<2x3x8x1xf32, #tpu.memory_space<vmem>>, vector<1x1x8x1xf32>
    %190 = vector.shape_cast %189 : vector<1x1x8x1xf32> to vector<8x1xf32>
    %c1_134 = arith.constant 1 : index
    %c2_135 = arith.constant 2 : index
    %c0_136 = arith.constant 0 : index
    %c0_137 = arith.constant 0 : index
    %191 = vector.load %arg4[%c1_134, %c2_135, %c0_136, %c0_137] : memref<2x3x8x1xf32, #tpu.memory_space<vmem>>, vector<1x1x8x1xf32>
    %192 = vector.shape_cast %191 : vector<1x1x8x1xf32> to vector<8x1xf32>
    %c1_138 = arith.constant 1 : index
    %c0_139 = arith.constant 0 : index
    %c0_140 = arith.constant 0 : index
    %c0_141 = arith.constant 0 : index
    %193 = vector.load %arg5[%c1_138, %c0_139, %c0_140, %c0_141] : memref<2x9x4x1xf32, #tpu.memory_space<vmem>>, vector<1x1x4x1xf32>
    %194 = vector.shape_cast %193 : vector<1x1x4x1xf32> to vector<4x1xf32>
    %c1_142 = arith.constant 1 : index
    %c1_143 = arith.constant 1 : index
    %c0_144 = arith.constant 0 : index
    %c0_145 = arith.constant 0 : index
    %195 = vector.load %arg5[%c1_142, %c1_143, %c0_144, %c0_145] : memref<2x9x4x1xf32, #tpu.memory_space<vmem>>, vector<1x1x4x1xf32>
    %196 = vector.shape_cast %195 : vector<1x1x4x1xf32> to vector<4x1xf32>
    %c1_146 = arith.constant 1 : index
    %c2_147 = arith.constant 2 : index
    %c0_148 = arith.constant 0 : index
    %c0_149 = arith.constant 0 : index
    %197 = vector.load %arg5[%c1_146, %c2_147, %c0_148, %c0_149] : memref<2x9x4x1xf32, #tpu.memory_space<vmem>>, vector<1x1x4x1xf32>
    %198 = vector.shape_cast %197 : vector<1x1x4x1xf32> to vector<4x1xf32>
    %c1_150 = arith.constant 1 : index
    %c3_151 = arith.constant 3 : index
    %c0_152 = arith.constant 0 : index
    %c0_153 = arith.constant 0 : index
    %199 = vector.load %arg5[%c1_150, %c3_151, %c0_152, %c0_153] : memref<2x9x4x1xf32, #tpu.memory_space<vmem>>, vector<1x1x4x1xf32>
    %200 = vector.shape_cast %199 : vector<1x1x4x1xf32> to vector<4x1xf32>
    %c1_154 = arith.constant 1 : index
    %c4_155 = arith.constant 4 : index
    %c0_156 = arith.constant 0 : index
    %c0_157 = arith.constant 0 : index
    %201 = vector.load %arg5[%c1_154, %c4_155, %c0_156, %c0_157] : memref<2x9x4x1xf32, #tpu.memory_space<vmem>>, vector<1x1x4x1xf32>
    %202 = vector.shape_cast %201 : vector<1x1x4x1xf32> to vector<4x1xf32>
    %c1_158 = arith.constant 1 : index
    %c5_159 = arith.constant 5 : index
    %c0_160 = arith.constant 0 : index
    %c0_161 = arith.constant 0 : index
    %203 = vector.load %arg5[%c1_158, %c5_159, %c0_160, %c0_161] : memref<2x9x4x1xf32, #tpu.memory_space<vmem>>, vector<1x1x4x1xf32>
    %204 = vector.shape_cast %203 : vector<1x1x4x1xf32> to vector<4x1xf32>
    %c1_162 = arith.constant 1 : index
    %c6_163 = arith.constant 6 : index
    %c0_164 = arith.constant 0 : index
    %c0_165 = arith.constant 0 : index
    %205 = vector.load %arg5[%c1_162, %c6_163, %c0_164, %c0_165] : memref<2x9x4x1xf32, #tpu.memory_space<vmem>>, vector<1x1x4x1xf32>
    %206 = vector.shape_cast %205 : vector<1x1x4x1xf32> to vector<4x1xf32>
    %c1_166 = arith.constant 1 : index
    %c7_167 = arith.constant 7 : index
    %c0_168 = arith.constant 0 : index
    %c0_169 = arith.constant 0 : index
    %207 = vector.load %arg5[%c1_166, %c7_167, %c0_168, %c0_169] : memref<2x9x4x1xf32, #tpu.memory_space<vmem>>, vector<1x1x4x1xf32>
    %208 = vector.shape_cast %207 : vector<1x1x4x1xf32> to vector<4x1xf32>
    %c1_170 = arith.constant 1 : index
    %c8_171 = arith.constant 8 : index
    %c0_172 = arith.constant 0 : index
    %c0_173 = arith.constant 0 : index
    %209 = vector.load %arg5[%c1_170, %c8_171, %c0_172, %c0_173] : memref<2x9x4x1xf32, #tpu.memory_space<vmem>>, vector<1x1x4x1xf32>
    %210 = vector.shape_cast %209 : vector<1x1x4x1xf32> to vector<4x1xf32>
    %c1_174 = arith.constant 1 : index
    %c0_175 = arith.constant 0 : index
    %c0_176 = arith.constant 0 : index
    %211 = vector.load %arg6[%c1_174, %c0_175, %c0_176] : memref<2x8x9xf32, #tpu.memory_space<vmem>>, vector<1x8x9xf32>
    %212 = vector.shape_cast %211 : vector<1x8x9xf32> to vector<8x9xf32>
    %c0_177 = arith.constant 0 : index
    %c0_178 = arith.constant 0 : index
    %c0_179 = arith.constant 0 : index
    %213 = vector.load %arg1[%c0_177, %c0_178, %c0_179] : memref<2x4x256xf32, #tpu.memory_space<vmem>>, vector<1x4x256xf32>
    %214 = vector.shape_cast %213 : vector<1x4x256xf32> to vector<4x256xf32>
    %cst = arith.constant dense<0.000000e+00> : vector<256xf32>
    %215 = vector.multi_reduction <add>, %214, %cst [0] : vector<4x256xf32> to vector<256xf32>
    %216 = vector.shape_cast %215 : vector<256xf32> to vector<1x256xf32>
    %cst_180 = arith.constant 4.000000e+00 : f32
    %217 = vector.broadcast %cst_180 : f32 to vector<1x256xf32>
    %218 = arith.divf %216, %217 : vector<1x256xf32>
    %219 = vector.broadcast %218 : vector<1x256xf32> to vector<4x256xf32>
    %220 = arith.subf %214, %219 : vector<4x256xf32>
    %221 = arith.mulf %220, %220 : vector<4x256xf32>
    %cst_181 = arith.constant dense<0.000000e+00> : vector<256xf32>
    %222 = vector.multi_reduction <add>, %221, %cst_181 [0] : vector<4x256xf32> to vector<256xf32>
    %223 = vector.shape_cast %222 : vector<256xf32> to vector<1x256xf32>
    %cst_182 = arith.constant 4.000000e+00 : f32
    %224 = vector.broadcast %cst_182 : f32 to vector<1x256xf32>
    %225 = arith.divf %223, %224 : vector<1x256xf32>
    %cst_183 = arith.constant 9.99999997E-7 : f32
    %226 = vector.broadcast %cst_183 : f32 to vector<1x256xf32>
    %227 = arith.addf %225, %226 : vector<1x256xf32>
    %228 = math.rsqrt %227 : vector<1x256xf32>
    %229 = vector.broadcast %228 : vector<1x256xf32> to vector<4x256xf32>
    %230 = arith.mulf %220, %229 : vector<4x256xf32>
    %231 = vector.broadcast %158 : vector<4x1xf32> to vector<4x256xf32>
    %232 = arith.mulf %230, %231 : vector<4x256xf32>
    %233 = vector.broadcast %160 : vector<4x1xf32> to vector<4x256xf32>
    %234 = arith.addf %232, %233 : vector<4x256xf32>
    %235 = vector.extract_strided_slice %142 {offsets = [0, 0], sizes = [8, 1], strides = [1, 1]} : vector<8x4xf32> to vector<8x1xf32>
    %236 = vector.extract_strided_slice %234 {offsets = [0, 0], sizes = [1, 256], strides = [1, 1]} : vector<4x256xf32> to vector<1x256xf32>
    %237 = vector.broadcast %235 : vector<8x1xf32> to vector<8x256xf32>
    %238 = vector.broadcast %236 : vector<1x256xf32> to vector<8x256xf32>
    %239 = arith.mulf %237, %238 : vector<8x256xf32>
    %240 = vector.extract_strided_slice %142 {offsets = [0, 1], sizes = [8, 1], strides = [1, 1]} : vector<8x4xf32> to vector<8x1xf32>
    %241 = vector.extract_strided_slice %234 {offsets = [1, 0], sizes = [1, 256], strides = [1, 1]} : vector<4x256xf32> to vector<1x256xf32>
    %242 = vector.broadcast %240 : vector<8x1xf32> to vector<8x256xf32>
    %243 = vector.broadcast %241 : vector<1x256xf32> to vector<8x256xf32>
    %244 = arith.mulf %242, %243 : vector<8x256xf32>
    %245 = arith.addf %239, %244 : vector<8x256xf32>
    %246 = vector.extract_strided_slice %142 {offsets = [0, 2], sizes = [8, 1], strides = [1, 1]} : vector<8x4xf32> to vector<8x1xf32>
    %247 = vector.extract_strided_slice %234 {offsets = [2, 0], sizes = [1, 256], strides = [1, 1]} : vector<4x256xf32> to vector<1x256xf32>
    %248 = vector.broadcast %246 : vector<8x1xf32> to vector<8x256xf32>
    %249 = vector.broadcast %247 : vector<1x256xf32> to vector<8x256xf32>
    %250 = arith.mulf %248, %249 : vector<8x256xf32>
    %251 = arith.addf %245, %250 : vector<8x256xf32>
    %252 = vector.extract_strided_slice %142 {offsets = [0, 3], sizes = [8, 1], strides = [1, 1]} : vector<8x4xf32> to vector<8x1xf32>
    %253 = vector.extract_strided_slice %234 {offsets = [3, 0], sizes = [1, 256], strides = [1, 1]} : vector<4x256xf32> to vector<1x256xf32>
    %254 = vector.broadcast %252 : vector<8x1xf32> to vector<8x256xf32>
    %255 = vector.broadcast %253 : vector<1x256xf32> to vector<8x256xf32>
    %256 = arith.mulf %254, %255 : vector<8x256xf32>
    %257 = arith.addf %251, %256 : vector<8x256xf32>
    %258 = vector.broadcast %152 : vector<8x1xf32> to vector<8x256xf32>
    %259 = arith.addf %257, %258 : vector<8x256xf32>
    %c17_i32 = arith.constant 17 : i32
    %260 = tpu.dynamic_rotate %259 by %c17_i32 dim 1 : vector<8x256xf32>, i32 -> vector<8x256xf32>
    %261 = vector.broadcast %21 : vector<1x256xf32> to vector<8x256xf32>
    %262 = arith.mulf %260, %261 : vector<8x256xf32>
    %263 = vector.extract_strided_slice %176 {offsets = [0, 0], sizes = [8, 1], strides = [1, 1]} : vector<8x9xf32> to vector<8x1xf32>
    %264 = vector.broadcast %263 : vector<8x1xf32> to vector<8x256xf32>
    %265 = arith.mulf %262, %264 : vector<8x256xf32>
    %c16_i32_184 = arith.constant 16 : i32
    %266 = tpu.dynamic_rotate %259 by %c16_i32_184 dim 1 : vector<8x256xf32>, i32 -> vector<8x256xf32>
    %267 = vector.broadcast %38 : vector<1x256xf32> to vector<8x256xf32>
    %268 = arith.mulf %266, %267 : vector<8x256xf32>
    %269 = vector.extract_strided_slice %176 {offsets = [0, 1], sizes = [8, 1], strides = [1, 1]} : vector<8x9xf32> to vector<8x1xf32>
    %270 = vector.broadcast %269 : vector<8x1xf32> to vector<8x256xf32>
    %271 = arith.mulf %268, %270 : vector<8x256xf32>
    %272 = arith.addf %265, %271 : vector<8x256xf32>
    %c15_i32_185 = arith.constant 15 : i32
    %273 = tpu.dynamic_rotate %259 by %c15_i32_185 dim 1 : vector<8x256xf32>, i32 -> vector<8x256xf32>
    %274 = vector.broadcast %55 : vector<1x256xf32> to vector<8x256xf32>
    %275 = arith.mulf %273, %274 : vector<8x256xf32>
    %276 = vector.extract_strided_slice %176 {offsets = [0, 2], sizes = [8, 1], strides = [1, 1]} : vector<8x9xf32> to vector<8x1xf32>
    %277 = vector.broadcast %276 : vector<8x1xf32> to vector<8x256xf32>
    %278 = arith.mulf %275, %277 : vector<8x256xf32>
    %279 = arith.addf %272, %278 : vector<8x256xf32>
    %c1_i32_186 = arith.constant 1 : i32
    %280 = tpu.dynamic_rotate %259 by %c1_i32_186 dim 1 : vector<8x256xf32>, i32 -> vector<8x256xf32>
    %281 = vector.broadcast %72 : vector<1x256xf32> to vector<8x256xf32>
    %282 = arith.mulf %280, %281 : vector<8x256xf32>
    %283 = vector.extract_strided_slice %176 {offsets = [0, 3], sizes = [8, 1], strides = [1, 1]} : vector<8x9xf32> to vector<8x1xf32>
    %284 = vector.broadcast %283 : vector<8x1xf32> to vector<8x256xf32>
    %285 = arith.mulf %282, %284 : vector<8x256xf32>
    %286 = arith.addf %279, %285 : vector<8x256xf32>
    %287 = vector.extract_strided_slice %176 {offsets = [0, 4], sizes = [8, 1], strides = [1, 1]} : vector<8x9xf32> to vector<8x1xf32>
    %288 = vector.broadcast %287 : vector<8x1xf32> to vector<8x256xf32>
    %289 = arith.mulf %259, %288 : vector<8x256xf32>
    %290 = arith.addf %286, %289 : vector<8x256xf32>
    %c255_i32 = arith.constant 255 : i32
    %291 = tpu.dynamic_rotate %259 by %c255_i32 dim 1 : vector<8x256xf32>, i32 -> vector<8x256xf32>
    %292 = vector.broadcast %89 : vector<1x256xf32> to vector<8x256xf32>
    %293 = arith.mulf %291, %292 : vector<8x256xf32>
    %294 = vector.extract_strided_slice %176 {offsets = [0, 5], sizes = [8, 1], strides = [1, 1]} : vector<8x9xf32> to vector<8x1xf32>
    %295 = vector.broadcast %294 : vector<8x1xf32> to vector<8x256xf32>
    %296 = arith.mulf %293, %295 : vector<8x256xf32>
    %297 = arith.addf %290, %296 : vector<8x256xf32>
    %c241_i32 = arith.constant 241 : i32
    %298 = tpu.dynamic_rotate %259 by %c241_i32 dim 1 : vector<8x256xf32>, i32 -> vector<8x256xf32>
    %299 = vector.broadcast %106 : vector<1x256xf32> to vector<8x256xf32>
    %300 = arith.mulf %298, %299 : vector<8x256xf32>
    %301 = vector.extract_strided_slice %176 {offsets = [0, 6], sizes = [8, 1], strides = [1, 1]} : vector<8x9xf32> to vector<8x1xf32>
    %302 = vector.broadcast %301 : vector<8x1xf32> to vector<8x256xf32>
    %303 = arith.mulf %300, %302 : vector<8x256xf32>
    %304 = arith.addf %297, %303 : vector<8x256xf32>
    %c240_i32 = arith.constant 240 : i32
    %305 = tpu.dynamic_rotate %259 by %c240_i32 dim 1 : vector<8x256xf32>, i32 -> vector<8x256xf32>
    %306 = vector.broadcast %123 : vector<1x256xf32> to vector<8x256xf32>
    %307 = arith.mulf %305, %306 : vector<8x256xf32>
    %308 = vector.extract_strided_slice %176 {offsets = [0, 7], sizes = [8, 1], strides = [1, 1]} : vector<8x9xf32> to vector<8x1xf32>
    %309 = vector.broadcast %308 : vector<8x1xf32> to vector<8x256xf32>
    %310 = arith.mulf %307, %309 : vector<8x256xf32>
    %311 = arith.addf %304, %310 : vector<8x256xf32>
    %c239_i32 = arith.constant 239 : i32
    %312 = tpu.dynamic_rotate %259 by %c239_i32 dim 1 : vector<8x256xf32>, i32 -> vector<8x256xf32>
    %313 = vector.broadcast %140 : vector<1x256xf32> to vector<8x256xf32>
    %314 = arith.mulf %312, %313 : vector<8x256xf32>
    %315 = vector.extract_strided_slice %176 {offsets = [0, 8], sizes = [8, 1], strides = [1, 1]} : vector<8x9xf32> to vector<8x1xf32>
    %316 = vector.broadcast %315 : vector<8x1xf32> to vector<8x256xf32>
    %317 = arith.mulf %314, %316 : vector<8x256xf32>
    %318 = arith.addf %311, %317 : vector<8x256xf32>
    %319 = vector.broadcast %154 : vector<8x1xf32> to vector<8x256xf32>
    %320 = arith.addf %318, %319 : vector<8x256xf32>
    %321 = vector.extract_strided_slice %320 {offsets = [0, 0], sizes = [4, 256], strides = [1, 1]} : vector<8x256xf32> to vector<4x256xf32>
    %322 = vector.extract_strided_slice %320 {offsets = [4, 0], sizes = [4, 256], strides = [1, 1]} : vector<8x256xf32> to vector<4x256xf32>
    %323 = arith.mulf %321, %322 : vector<4x256xf32>
    %cst_187 = arith.constant dense<0.000000e+00> : vector<4xf32>
    %324 = vector.multi_reduction <add>, %323, %cst_187 [1] : vector<4x256xf32> to vector<4xf32>
    %325 = vector.shape_cast %324 : vector<4xf32> to vector<4x1xf32>
    %cst_188 = arith.constant 2.560000e+02 : f32
    %326 = vector.broadcast %cst_188 : f32 to vector<4x1xf32>
    %327 = arith.divf %325, %326 : vector<4x1xf32>
    %328 = vector.extract_strided_slice %146 {offsets = [0, 0], sizes = [4, 1], strides = [1, 1]} : vector<4x4xf32> to vector<4x1xf32>
    %329 = vector.extract_strided_slice %327 {offsets = [0, 0], sizes = [1, 1], strides = [1, 1]} : vector<4x1xf32> to vector<1x1xf32>
    %330 = vector.broadcast %329 : vector<1x1xf32> to vector<4x1xf32>
    %331 = arith.mulf %328, %330 : vector<4x1xf32>
    %332 = vector.extract_strided_slice %146 {offsets = [0, 1], sizes = [4, 1], strides = [1, 1]} : vector<4x4xf32> to vector<4x1xf32>
    %333 = vector.extract_strided_slice %327 {offsets = [1, 0], sizes = [1, 1], strides = [1, 1]} : vector<4x1xf32> to vector<1x1xf32>
    %334 = vector.broadcast %333 : vector<1x1xf32> to vector<4x1xf32>
    %335 = arith.mulf %332, %334 : vector<4x1xf32>
    %336 = arith.addf %331, %335 : vector<4x1xf32>
    %337 = vector.extract_strided_slice %146 {offsets = [0, 2], sizes = [4, 1], strides = [1, 1]} : vector<4x4xf32> to vector<4x1xf32>
    %338 = vector.extract_strided_slice %327 {offsets = [2, 0], sizes = [1, 1], strides = [1, 1]} : vector<4x1xf32> to vector<1x1xf32>
    %339 = vector.broadcast %338 : vector<1x1xf32> to vector<4x1xf32>
    %340 = arith.mulf %337, %339 : vector<4x1xf32>
    %341 = arith.addf %336, %340 : vector<4x1xf32>
    %342 = vector.extract_strided_slice %146 {offsets = [0, 3], sizes = [4, 1], strides = [1, 1]} : vector<4x4xf32> to vector<4x1xf32>
    %343 = vector.extract_strided_slice %327 {offsets = [3, 0], sizes = [1, 1], strides = [1, 1]} : vector<4x1xf32> to vector<1x1xf32>
    %344 = vector.broadcast %343 : vector<1x1xf32> to vector<4x1xf32>
    %345 = arith.mulf %342, %344 : vector<4x1xf32>
    %346 = arith.addf %341, %345 : vector<4x1xf32>
    %347 = arith.addf %346, %166 : vector<4x1xf32>
    %348 = vector.broadcast %347 : vector<4x1xf32> to vector<4x256xf32>
    %349 = arith.mulf %323, %348 : vector<4x256xf32>
    %350 = vector.extract_strided_slice %148 {offsets = [0, 0], sizes = [4, 1], strides = [1, 1]} : vector<4x4xf32> to vector<4x1xf32>
    %351 = vector.extract_strided_slice %349 {offsets = [0, 0], sizes = [1, 256], strides = [1, 1]} : vector<4x256xf32> to vector<1x256xf32>
    %352 = vector.broadcast %350 : vector<4x1xf32> to vector<4x256xf32>
    %353 = vector.broadcast %351 : vector<1x256xf32> to vector<4x256xf32>
    %354 = arith.mulf %352, %353 : vector<4x256xf32>
    %355 = vector.extract_strided_slice %148 {offsets = [0, 1], sizes = [4, 1], strides = [1, 1]} : vector<4x4xf32> to vector<4x1xf32>
    %356 = vector.extract_strided_slice %349 {offsets = [1, 0], sizes = [1, 256], strides = [1, 1]} : vector<4x256xf32> to vector<1x256xf32>
    %357 = vector.broadcast %355 : vector<4x1xf32> to vector<4x256xf32>
    %358 = vector.broadcast %356 : vector<1x256xf32> to vector<4x256xf32>
    %359 = arith.mulf %357, %358 : vector<4x256xf32>
    %360 = arith.addf %354, %359 : vector<4x256xf32>
    %361 = vector.extract_strided_slice %148 {offsets = [0, 2], sizes = [4, 1], strides = [1, 1]} : vector<4x4xf32> to vector<4x1xf32>
    %362 = vector.extract_strided_slice %349 {offsets = [2, 0], sizes = [1, 256], strides = [1, 1]} : vector<4x256xf32> to vector<1x256xf32>
    %363 = vector.broadcast %361 : vector<4x1xf32> to vector<4x256xf32>
    %364 = vector.broadcast %362 : vector<1x256xf32> to vector<4x256xf32>
    %365 = arith.mulf %363, %364 : vector<4x256xf32>
    %366 = arith.addf %360, %365 : vector<4x256xf32>
    %367 = vector.extract_strided_slice %148 {offsets = [0, 3], sizes = [4, 1], strides = [1, 1]} : vector<4x4xf32> to vector<4x1xf32>
    %368 = vector.extract_strided_slice %349 {offsets = [3, 0], sizes = [1, 256], strides = [1, 1]} : vector<4x256xf32> to vector<1x256xf32>
    %369 = vector.broadcast %367 : vector<4x1xf32> to vector<4x256xf32>
    %370 = vector.broadcast %368 : vector<1x256xf32> to vector<4x256xf32>
    %371 = arith.mulf %369, %370 : vector<4x256xf32>
    %372 = arith.addf %366, %371 : vector<4x256xf32>
    %373 = vector.broadcast %168 : vector<4x1xf32> to vector<4x256xf32>
    %374 = arith.addf %372, %373 : vector<4x256xf32>
    %375 = vector.broadcast %172 : vector<4x1xf32> to vector<4x256xf32>
    %376 = arith.mulf %374, %375 : vector<4x256xf32>
    %377 = arith.addf %214, %376 : vector<4x256xf32>
    %cst_189 = arith.constant dense<0.000000e+00> : vector<256xf32>
    %378 = vector.multi_reduction <add>, %377, %cst_189 [0] : vector<4x256xf32> to vector<256xf32>
    %379 = vector.shape_cast %378 : vector<256xf32> to vector<1x256xf32>
    %cst_190 = arith.constant 4.000000e+00 : f32
    %380 = vector.broadcast %cst_190 : f32 to vector<1x256xf32>
    %381 = arith.divf %379, %380 : vector<1x256xf32>
    %382 = vector.broadcast %381 : vector<1x256xf32> to vector<4x256xf32>
    %383 = arith.subf %377, %382 : vector<4x256xf32>
    %384 = arith.mulf %383, %383 : vector<4x256xf32>
    %cst_191 = arith.constant dense<0.000000e+00> : vector<256xf32>
    %385 = vector.multi_reduction <add>, %384, %cst_191 [0] : vector<4x256xf32> to vector<256xf32>
    %386 = vector.shape_cast %385 : vector<256xf32> to vector<1x256xf32>
    %cst_192 = arith.constant 4.000000e+00 : f32
    %387 = vector.broadcast %cst_192 : f32 to vector<1x256xf32>
    %388 = arith.divf %386, %387 : vector<1x256xf32>
    %cst_193 = arith.constant 9.99999997E-7 : f32
    %389 = vector.broadcast %cst_193 : f32 to vector<1x256xf32>
    %390 = arith.addf %388, %389 : vector<1x256xf32>
    %391 = math.rsqrt %390 : vector<1x256xf32>
    %392 = vector.broadcast %391 : vector<1x256xf32> to vector<4x256xf32>
    %393 = arith.mulf %383, %392 : vector<4x256xf32>
    %394 = vector.broadcast %162 : vector<4x1xf32> to vector<4x256xf32>
    %395 = arith.mulf %393, %394 : vector<4x256xf32>
    %396 = vector.broadcast %164 : vector<4x1xf32> to vector<4x256xf32>
    %397 = arith.addf %395, %396 : vector<4x256xf32>
    %398 = vector.extract_strided_slice %144 {offsets = [0, 0], sizes = [8, 1], strides = [1, 1]} : vector<8x4xf32> to vector<8x1xf32>
    %399 = vector.extract_strided_slice %397 {offsets = [0, 0], sizes = [1, 256], strides = [1, 1]} : vector<4x256xf32> to vector<1x256xf32>
    %400 = vector.broadcast %398 : vector<8x1xf32> to vector<8x256xf32>
    %401 = vector.broadcast %399 : vector<1x256xf32> to vector<8x256xf32>
    %402 = arith.mulf %400, %401 : vector<8x256xf32>
    %403 = vector.extract_strided_slice %144 {offsets = [0, 1], sizes = [8, 1], strides = [1, 1]} : vector<8x4xf32> to vector<8x1xf32>
    %404 = vector.extract_strided_slice %397 {offsets = [1, 0], sizes = [1, 256], strides = [1, 1]} : vector<4x256xf32> to vector<1x256xf32>
    %405 = vector.broadcast %403 : vector<8x1xf32> to vector<8x256xf32>
    %406 = vector.broadcast %404 : vector<1x256xf32> to vector<8x256xf32>
    %407 = arith.mulf %405, %406 : vector<8x256xf32>
    %408 = arith.addf %402, %407 : vector<8x256xf32>
    %409 = vector.extract_strided_slice %144 {offsets = [0, 2], sizes = [8, 1], strides = [1, 1]} : vector<8x4xf32> to vector<8x1xf32>
    %410 = vector.extract_strided_slice %397 {offsets = [2, 0], sizes = [1, 256], strides = [1, 1]} : vector<4x256xf32> to vector<1x256xf32>
    %411 = vector.broadcast %409 : vector<8x1xf32> to vector<8x256xf32>
    %412 = vector.broadcast %410 : vector<1x256xf32> to vector<8x256xf32>
    %413 = arith.mulf %411, %412 : vector<8x256xf32>
    %414 = arith.addf %408, %413 : vector<8x256xf32>
    %415 = vector.extract_strided_slice %144 {offsets = [0, 3], sizes = [8, 1], strides = [1, 1]} : vector<8x4xf32> to vector<8x1xf32>
    %416 = vector.extract_strided_slice %397 {offsets = [3, 0], sizes = [1, 256], strides = [1, 1]} : vector<4x256xf32> to vector<1x256xf32>
    %417 = vector.broadcast %415 : vector<8x1xf32> to vector<8x256xf32>
    %418 = vector.broadcast %416 : vector<1x256xf32> to vector<8x256xf32>
    %419 = arith.mulf %417, %418 : vector<8x256xf32>
    %420 = arith.addf %414, %419 : vector<8x256xf32>
    %421 = vector.broadcast %156 : vector<8x1xf32> to vector<8x256xf32>
    %422 = arith.addf %420, %421 : vector<8x256xf32>
    %423 = vector.extract_strided_slice %422 {offsets = [0, 0], sizes = [4, 256], strides = [1, 1]} : vector<8x256xf32> to vector<4x256xf32>
    %424 = vector.extract_strided_slice %422 {offsets = [4, 0], sizes = [4, 256], strides = [1, 1]} : vector<8x256xf32> to vector<4x256xf32>
    %425 = arith.mulf %423, %424 : vector<4x256xf32>
    %426 = vector.extract_strided_slice %150 {offsets = [0, 0], sizes = [4, 1], strides = [1, 1]} : vector<4x4xf32> to vector<4x1xf32>
    %427 = vector.extract_strided_slice %425 {offsets = [0, 0], sizes = [1, 256], strides = [1, 1]} : vector<4x256xf32> to vector<1x256xf32>
    %428 = vector.broadcast %426 : vector<4x1xf32> to vector<4x256xf32>
    %429 = vector.broadcast %427 : vector<1x256xf32> to vector<4x256xf32>
    %430 = arith.mulf %428, %429 : vector<4x256xf32>
    %431 = vector.extract_strided_slice %150 {offsets = [0, 1], sizes = [4, 1], strides = [1, 1]} : vector<4x4xf32> to vector<4x1xf32>
    %432 = vector.extract_strided_slice %425 {offsets = [1, 0], sizes = [1, 256], strides = [1, 1]} : vector<4x256xf32> to vector<1x256xf32>
    %433 = vector.broadcast %431 : vector<4x1xf32> to vector<4x256xf32>
    %434 = vector.broadcast %432 : vector<1x256xf32> to vector<4x256xf32>
    %435 = arith.mulf %433, %434 : vector<4x256xf32>
    %436 = arith.addf %430, %435 : vector<4x256xf32>
    %437 = vector.extract_strided_slice %150 {offsets = [0, 2], sizes = [4, 1], strides = [1, 1]} : vector<4x4xf32> to vector<4x1xf32>
    %438 = vector.extract_strided_slice %425 {offsets = [2, 0], sizes = [1, 256], strides = [1, 1]} : vector<4x256xf32> to vector<1x256xf32>
    %439 = vector.broadcast %437 : vector<4x1xf32> to vector<4x256xf32>
    %440 = vector.broadcast %438 : vector<1x256xf32> to vector<4x256xf32>
    %441 = arith.mulf %439, %440 : vector<4x256xf32>
    %442 = arith.addf %436, %441 : vector<4x256xf32>
    %443 = vector.extract_strided_slice %150 {offsets = [0, 3], sizes = [4, 1], strides = [1, 1]} : vector<4x4xf32> to vector<4x1xf32>
    %444 = vector.extract_strided_slice %425 {offsets = [3, 0], sizes = [1, 256], strides = [1, 1]} : vector<4x256xf32> to vector<1x256xf32>
    %445 = vector.broadcast %443 : vector<4x1xf32> to vector<4x256xf32>
    %446 = vector.broadcast %444 : vector<1x256xf32> to vector<4x256xf32>
    %447 = arith.mulf %445, %446 : vector<4x256xf32>
    %448 = arith.addf %442, %447 : vector<4x256xf32>
    %449 = vector.broadcast %170 : vector<4x1xf32> to vector<4x256xf32>
    %450 = arith.addf %448, %449 : vector<4x256xf32>
    %451 = vector.broadcast %174 : vector<4x1xf32> to vector<4x256xf32>
    %452 = arith.mulf %450, %451 : vector<4x256xf32>
    %453 = arith.addf %377, %452 : vector<4x256xf32>
    %cst_194 = arith.constant dense<0.000000e+00> : vector<256xf32>
    %454 = vector.multi_reduction <add>, %453, %cst_194 [0] : vector<4x256xf32> to vector<256xf32>
    %455 = vector.shape_cast %454 : vector<256xf32> to vector<1x256xf32>
    %cst_195 = arith.constant 4.000000e+00 : f32
    %456 = vector.broadcast %cst_195 : f32 to vector<1x256xf32>
    %457 = arith.divf %455, %456 : vector<1x256xf32>
    %458 = vector.broadcast %457 : vector<1x256xf32> to vector<4x256xf32>
    %459 = arith.subf %453, %458 : vector<4x256xf32>
    %460 = arith.mulf %459, %459 : vector<4x256xf32>
    %cst_196 = arith.constant dense<0.000000e+00> : vector<256xf32>
    %461 = vector.multi_reduction <add>, %460, %cst_196 [0] : vector<4x256xf32> to vector<256xf32>
    %462 = vector.shape_cast %461 : vector<256xf32> to vector<1x256xf32>
    %cst_197 = arith.constant 4.000000e+00 : f32
    %463 = vector.broadcast %cst_197 : f32 to vector<1x256xf32>
    %464 = arith.divf %462, %463 : vector<1x256xf32>
    %cst_198 = arith.constant 9.99999997E-7 : f32
    %465 = vector.broadcast %cst_198 : f32 to vector<1x256xf32>
    %466 = arith.addf %464, %465 : vector<1x256xf32>
    %467 = math.rsqrt %466 : vector<1x256xf32>
    %468 = vector.broadcast %467 : vector<1x256xf32> to vector<4x256xf32>
    %469 = arith.mulf %459, %468 : vector<4x256xf32>
    %470 = vector.broadcast %194 : vector<4x1xf32> to vector<4x256xf32>
    %471 = arith.mulf %469, %470 : vector<4x256xf32>
    %472 = vector.broadcast %196 : vector<4x1xf32> to vector<4x256xf32>
    %473 = arith.addf %471, %472 : vector<4x256xf32>
    %474 = vector.extract_strided_slice %178 {offsets = [0, 0], sizes = [8, 1], strides = [1, 1]} : vector<8x4xf32> to vector<8x1xf32>
    %475 = vector.extract_strided_slice %473 {offsets = [0, 0], sizes = [1, 256], strides = [1, 1]} : vector<4x256xf32> to vector<1x256xf32>
    %476 = vector.broadcast %474 : vector<8x1xf32> to vector<8x256xf32>
    %477 = vector.broadcast %475 : vector<1x256xf32> to vector<8x256xf32>
    %478 = arith.mulf %476, %477 : vector<8x256xf32>
    %479 = vector.extract_strided_slice %178 {offsets = [0, 1], sizes = [8, 1], strides = [1, 1]} : vector<8x4xf32> to vector<8x1xf32>
    %480 = vector.extract_strided_slice %473 {offsets = [1, 0], sizes = [1, 256], strides = [1, 1]} : vector<4x256xf32> to vector<1x256xf32>
    %481 = vector.broadcast %479 : vector<8x1xf32> to vector<8x256xf32>
    %482 = vector.broadcast %480 : vector<1x256xf32> to vector<8x256xf32>
    %483 = arith.mulf %481, %482 : vector<8x256xf32>
    %484 = arith.addf %478, %483 : vector<8x256xf32>
    %485 = vector.extract_strided_slice %178 {offsets = [0, 2], sizes = [8, 1], strides = [1, 1]} : vector<8x4xf32> to vector<8x1xf32>
    %486 = vector.extract_strided_slice %473 {offsets = [2, 0], sizes = [1, 256], strides = [1, 1]} : vector<4x256xf32> to vector<1x256xf32>
    %487 = vector.broadcast %485 : vector<8x1xf32> to vector<8x256xf32>
    %488 = vector.broadcast %486 : vector<1x256xf32> to vector<8x256xf32>
    %489 = arith.mulf %487, %488 : vector<8x256xf32>
    %490 = arith.addf %484, %489 : vector<8x256xf32>
    %491 = vector.extract_strided_slice %178 {offsets = [0, 3], sizes = [8, 1], strides = [1, 1]} : vector<8x4xf32> to vector<8x1xf32>
    %492 = vector.extract_strided_slice %473 {offsets = [3, 0], sizes = [1, 256], strides = [1, 1]} : vector<4x256xf32> to vector<1x256xf32>
    %493 = vector.broadcast %491 : vector<8x1xf32> to vector<8x256xf32>
    %494 = vector.broadcast %492 : vector<1x256xf32> to vector<8x256xf32>
    %495 = arith.mulf %493, %494 : vector<8x256xf32>
    %496 = arith.addf %490, %495 : vector<8x256xf32>
    %497 = vector.broadcast %188 : vector<8x1xf32> to vector<8x256xf32>
    %498 = arith.addf %496, %497 : vector<8x256xf32>
    %c17_i32_199 = arith.constant 17 : i32
    %499 = tpu.dynamic_rotate %498 by %c17_i32_199 dim 1 : vector<8x256xf32>, i32 -> vector<8x256xf32>
    %500 = vector.broadcast %21 : vector<1x256xf32> to vector<8x256xf32>
    %501 = arith.mulf %499, %500 : vector<8x256xf32>
    %502 = vector.extract_strided_slice %212 {offsets = [0, 0], sizes = [8, 1], strides = [1, 1]} : vector<8x9xf32> to vector<8x1xf32>
    %503 = vector.broadcast %502 : vector<8x1xf32> to vector<8x256xf32>
    %504 = arith.mulf %501, %503 : vector<8x256xf32>
    %c16_i32_200 = arith.constant 16 : i32
    %505 = tpu.dynamic_rotate %498 by %c16_i32_200 dim 1 : vector<8x256xf32>, i32 -> vector<8x256xf32>
    %506 = vector.broadcast %38 : vector<1x256xf32> to vector<8x256xf32>
    %507 = arith.mulf %505, %506 : vector<8x256xf32>
    %508 = vector.extract_strided_slice %212 {offsets = [0, 1], sizes = [8, 1], strides = [1, 1]} : vector<8x9xf32> to vector<8x1xf32>
    %509 = vector.broadcast %508 : vector<8x1xf32> to vector<8x256xf32>
    %510 = arith.mulf %507, %509 : vector<8x256xf32>
    %511 = arith.addf %504, %510 : vector<8x256xf32>
    %c15_i32_201 = arith.constant 15 : i32
    %512 = tpu.dynamic_rotate %498 by %c15_i32_201 dim 1 : vector<8x256xf32>, i32 -> vector<8x256xf32>
    %513 = vector.broadcast %55 : vector<1x256xf32> to vector<8x256xf32>
    %514 = arith.mulf %512, %513 : vector<8x256xf32>
    %515 = vector.extract_strided_slice %212 {offsets = [0, 2], sizes = [8, 1], strides = [1, 1]} : vector<8x9xf32> to vector<8x1xf32>
    %516 = vector.broadcast %515 : vector<8x1xf32> to vector<8x256xf32>
    %517 = arith.mulf %514, %516 : vector<8x256xf32>
    %518 = arith.addf %511, %517 : vector<8x256xf32>
    %c1_i32_202 = arith.constant 1 : i32
    %519 = tpu.dynamic_rotate %498 by %c1_i32_202 dim 1 : vector<8x256xf32>, i32 -> vector<8x256xf32>
    %520 = vector.broadcast %72 : vector<1x256xf32> to vector<8x256xf32>
    %521 = arith.mulf %519, %520 : vector<8x256xf32>
    %522 = vector.extract_strided_slice %212 {offsets = [0, 3], sizes = [8, 1], strides = [1, 1]} : vector<8x9xf32> to vector<8x1xf32>
    %523 = vector.broadcast %522 : vector<8x1xf32> to vector<8x256xf32>
    %524 = arith.mulf %521, %523 : vector<8x256xf32>
    %525 = arith.addf %518, %524 : vector<8x256xf32>
    %526 = vector.extract_strided_slice %212 {offsets = [0, 4], sizes = [8, 1], strides = [1, 1]} : vector<8x9xf32> to vector<8x1xf32>
    %527 = vector.broadcast %526 : vector<8x1xf32> to vector<8x256xf32>
    %528 = arith.mulf %498, %527 : vector<8x256xf32>
    %529 = arith.addf %525, %528 : vector<8x256xf32>
    %c255_i32_203 = arith.constant 255 : i32
    %530 = tpu.dynamic_rotate %498 by %c255_i32_203 dim 1 : vector<8x256xf32>, i32 -> vector<8x256xf32>
    %531 = vector.broadcast %89 : vector<1x256xf32> to vector<8x256xf32>
    %532 = arith.mulf %530, %531 : vector<8x256xf32>
    %533 = vector.extract_strided_slice %212 {offsets = [0, 5], sizes = [8, 1], strides = [1, 1]} : vector<8x9xf32> to vector<8x1xf32>
    %534 = vector.broadcast %533 : vector<8x1xf32> to vector<8x256xf32>
    %535 = arith.mulf %532, %534 : vector<8x256xf32>
    %536 = arith.addf %529, %535 : vector<8x256xf32>
    %c241_i32_204 = arith.constant 241 : i32
    %537 = tpu.dynamic_rotate %498 by %c241_i32_204 dim 1 : vector<8x256xf32>, i32 -> vector<8x256xf32>
    %538 = vector.broadcast %106 : vector<1x256xf32> to vector<8x256xf32>
    %539 = arith.mulf %537, %538 : vector<8x256xf32>
    %540 = vector.extract_strided_slice %212 {offsets = [0, 6], sizes = [8, 1], strides = [1, 1]} : vector<8x9xf32> to vector<8x1xf32>
    %541 = vector.broadcast %540 : vector<8x1xf32> to vector<8x256xf32>
    %542 = arith.mulf %539, %541 : vector<8x256xf32>
    %543 = arith.addf %536, %542 : vector<8x256xf32>
    %c240_i32_205 = arith.constant 240 : i32
    %544 = tpu.dynamic_rotate %498 by %c240_i32_205 dim 1 : vector<8x256xf32>, i32 -> vector<8x256xf32>
    %545 = vector.broadcast %123 : vector<1x256xf32> to vector<8x256xf32>
    %546 = arith.mulf %544, %545 : vector<8x256xf32>
    %547 = vector.extract_strided_slice %212 {offsets = [0, 7], sizes = [8, 1], strides = [1, 1]} : vector<8x9xf32> to vector<8x1xf32>
    %548 = vector.broadcast %547 : vector<8x1xf32> to vector<8x256xf32>
    %549 = arith.mulf %546, %548 : vector<8x256xf32>
    %550 = arith.addf %543, %549 : vector<8x256xf32>
    %c239_i32_206 = arith.constant 239 : i32
    %551 = tpu.dynamic_rotate %498 by %c239_i32_206 dim 1 : vector<8x256xf32>, i32 -> vector<8x256xf32>
    %552 = vector.broadcast %140 : vector<1x256xf32> to vector<8x256xf32>
    %553 = arith.mulf %551, %552 : vector<8x256xf32>
    %554 = vector.extract_strided_slice %212 {offsets = [0, 8], sizes = [8, 1], strides = [1, 1]} : vector<8x9xf32> to vector<8x1xf32>
    %555 = vector.broadcast %554 : vector<8x1xf32> to vector<8x256xf32>
    %556 = arith.mulf %553, %555 : vector<8x256xf32>
    %557 = arith.addf %550, %556 : vector<8x256xf32>
    %558 = vector.broadcast %190 : vector<8x1xf32> to vector<8x256xf32>
    %559 = arith.addf %557, %558 : vector<8x256xf32>
    %560 = vector.extract_strided_slice %559 {offsets = [0, 0], sizes = [4, 256], strides = [1, 1]} : vector<8x256xf32> to vector<4x256xf32>
    %561 = vector.extract_strided_slice %559 {offsets = [4, 0], sizes = [4, 256], strides = [1, 1]} : vector<8x256xf32> to vector<4x256xf32>
    %562 = arith.mulf %560, %561 : vector<4x256xf32>
    %cst_207 = arith.constant dense<0.000000e+00> : vector<4xf32>
    %563 = vector.multi_reduction <add>, %562, %cst_207 [1] : vector<4x256xf32> to vector<4xf32>
    %564 = vector.shape_cast %563 : vector<4xf32> to vector<4x1xf32>
    %cst_208 = arith.constant 2.560000e+02 : f32
    %565 = vector.broadcast %cst_208 : f32 to vector<4x1xf32>
    %566 = arith.divf %564, %565 : vector<4x1xf32>
    %567 = vector.extract_strided_slice %182 {offsets = [0, 0], sizes = [4, 1], strides = [1, 1]} : vector<4x4xf32> to vector<4x1xf32>
    %568 = vector.extract_strided_slice %566 {offsets = [0, 0], sizes = [1, 1], strides = [1, 1]} : vector<4x1xf32> to vector<1x1xf32>
    %569 = vector.broadcast %568 : vector<1x1xf32> to vector<4x1xf32>
    %570 = arith.mulf %567, %569 : vector<4x1xf32>
    %571 = vector.extract_strided_slice %182 {offsets = [0, 1], sizes = [4, 1], strides = [1, 1]} : vector<4x4xf32> to vector<4x1xf32>
    %572 = vector.extract_strided_slice %566 {offsets = [1, 0], sizes = [1, 1], strides = [1, 1]} : vector<4x1xf32> to vector<1x1xf32>
    %573 = vector.broadcast %572 : vector<1x1xf32> to vector<4x1xf32>
    %574 = arith.mulf %571, %573 : vector<4x1xf32>
    %575 = arith.addf %570, %574 : vector<4x1xf32>
    %576 = vector.extract_strided_slice %182 {offsets = [0, 2], sizes = [4, 1], strides = [1, 1]} : vector<4x4xf32> to vector<4x1xf32>
    %577 = vector.extract_strided_slice %566 {offsets = [2, 0], sizes = [1, 1], strides = [1, 1]} : vector<4x1xf32> to vector<1x1xf32>
    %578 = vector.broadcast %577 : vector<1x1xf32> to vector<4x1xf32>
    %579 = arith.mulf %576, %578 : vector<4x1xf32>
    %580 = arith.addf %575, %579 : vector<4x1xf32>
    %581 = vector.extract_strided_slice %182 {offsets = [0, 3], sizes = [4, 1], strides = [1, 1]} : vector<4x4xf32> to vector<4x1xf32>
    %582 = vector.extract_strided_slice %566 {offsets = [3, 0], sizes = [1, 1], strides = [1, 1]} : vector<4x1xf32> to vector<1x1xf32>
    %583 = vector.broadcast %582 : vector<1x1xf32> to vector<4x1xf32>
    %584 = arith.mulf %581, %583 : vector<4x1xf32>
    %585 = arith.addf %580, %584 : vector<4x1xf32>
    %586 = arith.addf %585, %202 : vector<4x1xf32>
    %587 = vector.broadcast %586 : vector<4x1xf32> to vector<4x256xf32>
    %588 = arith.mulf %562, %587 : vector<4x256xf32>
    %589 = vector.extract_strided_slice %184 {offsets = [0, 0], sizes = [4, 1], strides = [1, 1]} : vector<4x4xf32> to vector<4x1xf32>
    %590 = vector.extract_strided_slice %588 {offsets = [0, 0], sizes = [1, 256], strides = [1, 1]} : vector<4x256xf32> to vector<1x256xf32>
    %591 = vector.broadcast %589 : vector<4x1xf32> to vector<4x256xf32>
    %592 = vector.broadcast %590 : vector<1x256xf32> to vector<4x256xf32>
    %593 = arith.mulf %591, %592 : vector<4x256xf32>
    %594 = vector.extract_strided_slice %184 {offsets = [0, 1], sizes = [4, 1], strides = [1, 1]} : vector<4x4xf32> to vector<4x1xf32>
    %595 = vector.extract_strided_slice %588 {offsets = [1, 0], sizes = [1, 256], strides = [1, 1]} : vector<4x256xf32> to vector<1x256xf32>
    %596 = vector.broadcast %594 : vector<4x1xf32> to vector<4x256xf32>
    %597 = vector.broadcast %595 : vector<1x256xf32> to vector<4x256xf32>
    %598 = arith.mulf %596, %597 : vector<4x256xf32>
    %599 = arith.addf %593, %598 : vector<4x256xf32>
    %600 = vector.extract_strided_slice %184 {offsets = [0, 2], sizes = [4, 1], strides = [1, 1]} : vector<4x4xf32> to vector<4x1xf32>
    %601 = vector.extract_strided_slice %588 {offsets = [2, 0], sizes = [1, 256], strides = [1, 1]} : vector<4x256xf32> to vector<1x256xf32>
    %602 = vector.broadcast %600 : vector<4x1xf32> to vector<4x256xf32>
    %603 = vector.broadcast %601 : vector<1x256xf32> to vector<4x256xf32>
    %604 = arith.mulf %602, %603 : vector<4x256xf32>
    %605 = arith.addf %599, %604 : vector<4x256xf32>
    %606 = vector.extract_strided_slice %184 {offsets = [0, 3], sizes = [4, 1], strides = [1, 1]} : vector<4x4xf32> to vector<4x1xf32>
    %607 = vector.extract_strided_slice %588 {offsets = [3, 0], sizes = [1, 256], strides = [1, 1]} : vector<4x256xf32> to vector<1x256xf32>
    %608 = vector.broadcast %606 : vector<4x1xf32> to vector<4x256xf32>
    %609 = vector.broadcast %607 : vector<1x256xf32> to vector<4x256xf32>
    %610 = arith.mulf %608, %609 : vector<4x256xf32>
    %611 = arith.addf %605, %610 : vector<4x256xf32>
    %612 = vector.broadcast %204 : vector<4x1xf32> to vector<4x256xf32>
    %613 = arith.addf %611, %612 : vector<4x256xf32>
    %614 = vector.broadcast %208 : vector<4x1xf32> to vector<4x256xf32>
    %615 = arith.mulf %613, %614 : vector<4x256xf32>
    %616 = arith.addf %453, %615 : vector<4x256xf32>
    %cst_209 = arith.constant dense<0.000000e+00> : vector<256xf32>
    %617 = vector.multi_reduction <add>, %616, %cst_209 [0] : vector<4x256xf32> to vector<256xf32>
    %618 = vector.shape_cast %617 : vector<256xf32> to vector<1x256xf32>
    %cst_210 = arith.constant 4.000000e+00 : f32
    %619 = vector.broadcast %cst_210 : f32 to vector<1x256xf32>
    %620 = arith.divf %618, %619 : vector<1x256xf32>
    %621 = vector.broadcast %620 : vector<1x256xf32> to vector<4x256xf32>
    %622 = arith.subf %616, %621 : vector<4x256xf32>
    %623 = arith.mulf %622, %622 : vector<4x256xf32>
    %cst_211 = arith.constant dense<0.000000e+00> : vector<256xf32>
    %624 = vector.multi_reduction <add>, %623, %cst_211 [0] : vector<4x256xf32> to vector<256xf32>
    %625 = vector.shape_cast %624 : vector<256xf32> to vector<1x256xf32>
    %cst_212 = arith.constant 4.000000e+00 : f32
    %626 = vector.broadcast %cst_212 : f32 to vector<1x256xf32>
    %627 = arith.divf %625, %626 : vector<1x256xf32>
    %cst_213 = arith.constant 9.99999997E-7 : f32
    %628 = vector.broadcast %cst_213 : f32 to vector<1x256xf32>
    %629 = arith.addf %627, %628 : vector<1x256xf32>
    %630 = math.rsqrt %629 : vector<1x256xf32>
    %631 = vector.broadcast %630 : vector<1x256xf32> to vector<4x256xf32>
    %632 = arith.mulf %622, %631 : vector<4x256xf32>
    %633 = vector.broadcast %198 : vector<4x1xf32> to vector<4x256xf32>
    %634 = arith.mulf %632, %633 : vector<4x256xf32>
    %635 = vector.broadcast %200 : vector<4x1xf32> to vector<4x256xf32>
    %636 = arith.addf %634, %635 : vector<4x256xf32>
    %637 = vector.extract_strided_slice %180 {offsets = [0, 0], sizes = [8, 1], strides = [1, 1]} : vector<8x4xf32> to vector<8x1xf32>
    %638 = vector.extract_strided_slice %636 {offsets = [0, 0], sizes = [1, 256], strides = [1, 1]} : vector<4x256xf32> to vector<1x256xf32>
    %639 = vector.broadcast %637 : vector<8x1xf32> to vector<8x256xf32>
    %640 = vector.broadcast %638 : vector<1x256xf32> to vector<8x256xf32>
    %641 = arith.mulf %639, %640 : vector<8x256xf32>
    %642 = vector.extract_strided_slice %180 {offsets = [0, 1], sizes = [8, 1], strides = [1, 1]} : vector<8x4xf32> to vector<8x1xf32>
    %643 = vector.extract_strided_slice %636 {offsets = [1, 0], sizes = [1, 256], strides = [1, 1]} : vector<4x256xf32> to vector<1x256xf32>
    %644 = vector.broadcast %642 : vector<8x1xf32> to vector<8x256xf32>
    %645 = vector.broadcast %643 : vector<1x256xf32> to vector<8x256xf32>
    %646 = arith.mulf %644, %645 : vector<8x256xf32>
    %647 = arith.addf %641, %646 : vector<8x256xf32>
    %648 = vector.extract_strided_slice %180 {offsets = [0, 2], sizes = [8, 1], strides = [1, 1]} : vector<8x4xf32> to vector<8x1xf32>
    %649 = vector.extract_strided_slice %636 {offsets = [2, 0], sizes = [1, 256], strides = [1, 1]} : vector<4x256xf32> to vector<1x256xf32>
    %650 = vector.broadcast %648 : vector<8x1xf32> to vector<8x256xf32>
    %651 = vector.broadcast %649 : vector<1x256xf32> to vector<8x256xf32>
    %652 = arith.mulf %650, %651 : vector<8x256xf32>
    %653 = arith.addf %647, %652 : vector<8x256xf32>
    %654 = vector.extract_strided_slice %180 {offsets = [0, 3], sizes = [8, 1], strides = [1, 1]} : vector<8x4xf32> to vector<8x1xf32>
    %655 = vector.extract_strided_slice %636 {offsets = [3, 0], sizes = [1, 256], strides = [1, 1]} : vector<4x256xf32> to vector<1x256xf32>
    %656 = vector.broadcast %654 : vector<8x1xf32> to vector<8x256xf32>
    %657 = vector.broadcast %655 : vector<1x256xf32> to vector<8x256xf32>
    %658 = arith.mulf %656, %657 : vector<8x256xf32>
    %659 = arith.addf %653, %658 : vector<8x256xf32>
    %660 = vector.broadcast %192 : vector<8x1xf32> to vector<8x256xf32>
    %661 = arith.addf %659, %660 : vector<8x256xf32>
    %662 = vector.extract_strided_slice %661 {offsets = [0, 0], sizes = [4, 256], strides = [1, 1]} : vector<8x256xf32> to vector<4x256xf32>
    %663 = vector.extract_strided_slice %661 {offsets = [4, 0], sizes = [4, 256], strides = [1, 1]} : vector<8x256xf32> to vector<4x256xf32>
    %664 = arith.mulf %662, %663 : vector<4x256xf32>
    %665 = vector.extract_strided_slice %186 {offsets = [0, 0], sizes = [4, 1], strides = [1, 1]} : vector<4x4xf32> to vector<4x1xf32>
    %666 = vector.extract_strided_slice %664 {offsets = [0, 0], sizes = [1, 256], strides = [1, 1]} : vector<4x256xf32> to vector<1x256xf32>
    %667 = vector.broadcast %665 : vector<4x1xf32> to vector<4x256xf32>
    %668 = vector.broadcast %666 : vector<1x256xf32> to vector<4x256xf32>
    %669 = arith.mulf %667, %668 : vector<4x256xf32>
    %670 = vector.extract_strided_slice %186 {offsets = [0, 1], sizes = [4, 1], strides = [1, 1]} : vector<4x4xf32> to vector<4x1xf32>
    %671 = vector.extract_strided_slice %664 {offsets = [1, 0], sizes = [1, 256], strides = [1, 1]} : vector<4x256xf32> to vector<1x256xf32>
    %672 = vector.broadcast %670 : vector<4x1xf32> to vector<4x256xf32>
    %673 = vector.broadcast %671 : vector<1x256xf32> to vector<4x256xf32>
    %674 = arith.mulf %672, %673 : vector<4x256xf32>
    %675 = arith.addf %669, %674 : vector<4x256xf32>
    %676 = vector.extract_strided_slice %186 {offsets = [0, 2], sizes = [4, 1], strides = [1, 1]} : vector<4x4xf32> to vector<4x1xf32>
    %677 = vector.extract_strided_slice %664 {offsets = [2, 0], sizes = [1, 256], strides = [1, 1]} : vector<4x256xf32> to vector<1x256xf32>
    %678 = vector.broadcast %676 : vector<4x1xf32> to vector<4x256xf32>
    %679 = vector.broadcast %677 : vector<1x256xf32> to vector<4x256xf32>
    %680 = arith.mulf %678, %679 : vector<4x256xf32>
    %681 = arith.addf %675, %680 : vector<4x256xf32>
    %682 = vector.extract_strided_slice %186 {offsets = [0, 3], sizes = [4, 1], strides = [1, 1]} : vector<4x4xf32> to vector<4x1xf32>
    %683 = vector.extract_strided_slice %664 {offsets = [3, 0], sizes = [1, 256], strides = [1, 1]} : vector<4x256xf32> to vector<1x256xf32>
    %684 = vector.broadcast %682 : vector<4x1xf32> to vector<4x256xf32>
    %685 = vector.broadcast %683 : vector<1x256xf32> to vector<4x256xf32>
    %686 = arith.mulf %684, %685 : vector<4x256xf32>
    %687 = arith.addf %681, %686 : vector<4x256xf32>
    %688 = vector.broadcast %206 : vector<4x1xf32> to vector<4x256xf32>
    %689 = arith.addf %687, %688 : vector<4x256xf32>
    %690 = vector.broadcast %210 : vector<4x1xf32> to vector<4x256xf32>
    %691 = arith.mulf %689, %690 : vector<4x256xf32>
    %692 = arith.addf %616, %691 : vector<4x256xf32>
    %c0_214 = arith.constant 0 : index
    %c0_215 = arith.constant 0 : index
    %c0_216 = arith.constant 0 : index
    %693 = vector.load %arg7[%c0_214, %c0_215, %c0_216] : memref<2x4x256xf32, #tpu.memory_space<vmem>>, vector<1x4x256xf32>
    %694 = vector.shape_cast %693 : vector<1x4x256xf32> to vector<4x256xf32>
    %695 = vector.shape_cast %692 : vector<4x256xf32> to vector<1x4x256xf32>
    tpu.vector_store %arg7[%c0_214, %c0_215, %c0_216], %695 {strides = array<i32>} : memref<2x4x256xf32, #tpu.memory_space<vmem>>, vector<1x4x256xf32>,
    %c1_217 = arith.constant 1 : index
    %c0_218 = arith.constant 0 : index
    %c0_219 = arith.constant 0 : index
    %696 = vector.load %arg1[%c1_217, %c0_218, %c0_219] : memref<2x4x256xf32, #tpu.memory_space<vmem>>, vector<1x4x256xf32>
    %697 = vector.shape_cast %696 : vector<1x4x256xf32> to vector<4x256xf32>
    %cst_220 = arith.constant dense<0.000000e+00> : vector<256xf32>
    %698 = vector.multi_reduction <add>, %697, %cst_220 [0] : vector<4x256xf32> to vector<256xf32>
    %699 = vector.shape_cast %698 : vector<256xf32> to vector<1x256xf32>
    %cst_221 = arith.constant 4.000000e+00 : f32
    %700 = vector.broadcast %cst_221 : f32 to vector<1x256xf32>
    %701 = arith.divf %699, %700 : vector<1x256xf32>
    %702 = vector.broadcast %701 : vector<1x256xf32> to vector<4x256xf32>
    %703 = arith.subf %697, %702 : vector<4x256xf32>
    %704 = arith.mulf %703, %703 : vector<4x256xf32>
    %cst_222 = arith.constant dense<0.000000e+00> : vector<256xf32>
    %705 = vector.multi_reduction <add>, %704, %cst_222 [0] : vector<4x256xf32> to vector<256xf32>
    %706 = vector.shape_cast %705 : vector<256xf32> to vector<1x256xf32>
    %cst_223 = arith.constant 4.000000e+00 : f32
    %707 = vector.broadcast %cst_223 : f32 to vector<1x256xf32>
    %708 = arith.divf %706, %707 : vector<1x256xf32>
    %cst_224 = arith.constant 9.99999997E-7 : f32
    %709 = vector.broadcast %cst_224 : f32 to vector<1x256xf32>
    %710 = arith.addf %708, %709 : vector<1x256xf32>
    %711 = math.rsqrt %710 : vector<1x256xf32>
    %712 = vector.broadcast %711 : vector<1x256xf32> to vector<4x256xf32>
    %713 = arith.mulf %703, %712 : vector<4x256xf32>
    %714 = vector.broadcast %158 : vector<4x1xf32> to vector<4x256xf32>
    %715 = arith.mulf %713, %714 : vector<4x256xf32>
    %716 = vector.broadcast %160 : vector<4x1xf32> to vector<4x256xf32>
    %717 = arith.addf %715, %716 : vector<4x256xf32>
    %718 = vector.extract_strided_slice %142 {offsets = [0, 0], sizes = [8, 1], strides = [1, 1]} : vector<8x4xf32> to vector<8x1xf32>
    %719 = vector.extract_strided_slice %717 {offsets = [0, 0], sizes = [1, 256], strides = [1, 1]} : vector<4x256xf32> to vector<1x256xf32>
    %720 = vector.broadcast %718 : vector<8x1xf32> to vector<8x256xf32>
    %721 = vector.broadcast %719 : vector<1x256xf32> to vector<8x256xf32>
    %722 = arith.mulf %720, %721 : vector<8x256xf32>
    %723 = vector.extract_strided_slice %142 {offsets = [0, 1], sizes = [8, 1], strides = [1, 1]} : vector<8x4xf32> to vector<8x1xf32>
    %724 = vector.extract_strided_slice %717 {offsets = [1, 0], sizes = [1, 256], strides = [1, 1]} : vector<4x256xf32> to vector<1x256xf32>
    %725 = vector.broadcast %723 : vector<8x1xf32> to vector<8x256xf32>
    %726 = vector.broadcast %724 : vector<1x256xf32> to vector<8x256xf32>
    %727 = arith.mulf %725, %726 : vector<8x256xf32>
    %728 = arith.addf %722, %727 : vector<8x256xf32>
    %729 = vector.extract_strided_slice %142 {offsets = [0, 2], sizes = [8, 1], strides = [1, 1]} : vector<8x4xf32> to vector<8x1xf32>
    %730 = vector.extract_strided_slice %717 {offsets = [2, 0], sizes = [1, 256], strides = [1, 1]} : vector<4x256xf32> to vector<1x256xf32>
    %731 = vector.broadcast %729 : vector<8x1xf32> to vector<8x256xf32>
    %732 = vector.broadcast %730 : vector<1x256xf32> to vector<8x256xf32>
    %733 = arith.mulf %731, %732 : vector<8x256xf32>
    %734 = arith.addf %728, %733 : vector<8x256xf32>
    %735 = vector.extract_strided_slice %142 {offsets = [0, 3], sizes = [8, 1], strides = [1, 1]} : vector<8x4xf32> to vector<8x1xf32>
    %736 = vector.extract_strided_slice %717 {offsets = [3, 0], sizes = [1, 256], strides = [1, 1]} : vector<4x256xf32> to vector<1x256xf32>
    %737 = vector.broadcast %735 : vector<8x1xf32> to vector<8x256xf32>
    %738 = vector.broadcast %736 : vector<1x256xf32> to vector<8x256xf32>
    %739 = arith.mulf %737, %738 : vector<8x256xf32>
    %740 = arith.addf %734, %739 : vector<8x256xf32>
    %741 = vector.broadcast %152 : vector<8x1xf32> to vector<8x256xf32>
    %742 = arith.addf %740, %741 : vector<8x256xf32>
    %c17_i32_225 = arith.constant 17 : i32
    %743 = tpu.dynamic_rotate %742 by %c17_i32_225 dim 1 : vector<8x256xf32>, i32 -> vector<8x256xf32>
    %744 = vector.broadcast %21 : vector<1x256xf32> to vector<8x256xf32>
    %745 = arith.mulf %743, %744 : vector<8x256xf32>
    %746 = vector.extract_strided_slice %176 {offsets = [0, 0], sizes = [8, 1], strides = [1, 1]} : vector<8x9xf32> to vector<8x1xf32>
    %747 = vector.broadcast %746 : vector<8x1xf32> to vector<8x256xf32>
    %748 = arith.mulf %745, %747 : vector<8x256xf32>
    %c16_i32_226 = arith.constant 16 : i32
    %749 = tpu.dynamic_rotate %742 by %c16_i32_226 dim 1 : vector<8x256xf32>, i32 -> vector<8x256xf32>
    %750 = vector.broadcast %38 : vector<1x256xf32> to vector<8x256xf32>
    %751 = arith.mulf %749, %750 : vector<8x256xf32>
    %752 = vector.extract_strided_slice %176 {offsets = [0, 1], sizes = [8, 1], strides = [1, 1]} : vector<8x9xf32> to vector<8x1xf32>
    %753 = vector.broadcast %752 : vector<8x1xf32> to vector<8x256xf32>
    %754 = arith.mulf %751, %753 : vector<8x256xf32>
    %755 = arith.addf %748, %754 : vector<8x256xf32>
    %c15_i32_227 = arith.constant 15 : i32
    %756 = tpu.dynamic_rotate %742 by %c15_i32_227 dim 1 : vector<8x256xf32>, i32 -> vector<8x256xf32>
    %757 = vector.broadcast %55 : vector<1x256xf32> to vector<8x256xf32>
    %758 = arith.mulf %756, %757 : vector<8x256xf32>
    %759 = vector.extract_strided_slice %176 {offsets = [0, 2], sizes = [8, 1], strides = [1, 1]} : vector<8x9xf32> to vector<8x1xf32>
    %760 = vector.broadcast %759 : vector<8x1xf32> to vector<8x256xf32>
    %761 = arith.mulf %758, %760 : vector<8x256xf32>
    %762 = arith.addf %755, %761 : vector<8x256xf32>
    %c1_i32_228 = arith.constant 1 : i32
    %763 = tpu.dynamic_rotate %742 by %c1_i32_228 dim 1 : vector<8x256xf32>, i32 -> vector<8x256xf32>
    %764 = vector.broadcast %72 : vector<1x256xf32> to vector<8x256xf32>
    %765 = arith.mulf %763, %764 : vector<8x256xf32>
    %766 = vector.extract_strided_slice %176 {offsets = [0, 3], sizes = [8, 1], strides = [1, 1]} : vector<8x9xf32> to vector<8x1xf32>
    %767 = vector.broadcast %766 : vector<8x1xf32> to vector<8x256xf32>
    %768 = arith.mulf %765, %767 : vector<8x256xf32>
    %769 = arith.addf %762, %768 : vector<8x256xf32>
    %770 = vector.extract_strided_slice %176 {offsets = [0, 4], sizes = [8, 1], strides = [1, 1]} : vector<8x9xf32> to vector<8x1xf32>
    %771 = vector.broadcast %770 : vector<8x1xf32> to vector<8x256xf32>
    %772 = arith.mulf %742, %771 : vector<8x256xf32>
    %773 = arith.addf %769, %772 : vector<8x256xf32>
    %c255_i32_229 = arith.constant 255 : i32
    %774 = tpu.dynamic_rotate %742 by %c255_i32_229 dim 1 : vector<8x256xf32>, i32 -> vector<8x256xf32>
    %775 = vector.broadcast %89 : vector<1x256xf32> to vector<8x256xf32>
    %776 = arith.mulf %774, %775 : vector<8x256xf32>
    %777 = vector.extract_strided_slice %176 {offsets = [0, 5], sizes = [8, 1], strides = [1, 1]} : vector<8x9xf32> to vector<8x1xf32>
    %778 = vector.broadcast %777 : vector<8x1xf32> to vector<8x256xf32>
    %779 = arith.mulf %776, %778 : vector<8x256xf32>
    %780 = arith.addf %773, %779 : vector<8x256xf32>
    %c241_i32_230 = arith.constant 241 : i32
    %781 = tpu.dynamic_rotate %742 by %c241_i32_230 dim 1 : vector<8x256xf32>, i32 -> vector<8x256xf32>
    %782 = vector.broadcast %106 : vector<1x256xf32> to vector<8x256xf32>
    %783 = arith.mulf %781, %782 : vector<8x256xf32>
    %784 = vector.extract_strided_slice %176 {offsets = [0, 6], sizes = [8, 1], strides = [1, 1]} : vector<8x9xf32> to vector<8x1xf32>
    %785 = vector.broadcast %784 : vector<8x1xf32> to vector<8x256xf32>
    %786 = arith.mulf %783, %785 : vector<8x256xf32>
    %787 = arith.addf %780, %786 : vector<8x256xf32>
    %c240_i32_231 = arith.constant 240 : i32
    %788 = tpu.dynamic_rotate %742 by %c240_i32_231 dim 1 : vector<8x256xf32>, i32 -> vector<8x256xf32>
    %789 = vector.broadcast %123 : vector<1x256xf32> to vector<8x256xf32>
    %790 = arith.mulf %788, %789 : vector<8x256xf32>
    %791 = vector.extract_strided_slice %176 {offsets = [0, 7], sizes = [8, 1], strides = [1, 1]} : vector<8x9xf32> to vector<8x1xf32>
    %792 = vector.broadcast %791 : vector<8x1xf32> to vector<8x256xf32>
    %793 = arith.mulf %790, %792 : vector<8x256xf32>
    %794 = arith.addf %787, %793 : vector<8x256xf32>
    %c239_i32_232 = arith.constant 239 : i32
    %795 = tpu.dynamic_rotate %742 by %c239_i32_232 dim 1 : vector<8x256xf32>, i32 -> vector<8x256xf32>
    %796 = vector.broadcast %140 : vector<1x256xf32> to vector<8x256xf32>
    %797 = arith.mulf %795, %796 : vector<8x256xf32>
    %798 = vector.extract_strided_slice %176 {offsets = [0, 8], sizes = [8, 1], strides = [1, 1]} : vector<8x9xf32> to vector<8x1xf32>
    %799 = vector.broadcast %798 : vector<8x1xf32> to vector<8x256xf32>
    %800 = arith.mulf %797, %799 : vector<8x256xf32>
    %801 = arith.addf %794, %800 : vector<8x256xf32>
    %802 = vector.broadcast %154 : vector<8x1xf32> to vector<8x256xf32>
    %803 = arith.addf %801, %802 : vector<8x256xf32>
    %804 = vector.extract_strided_slice %803 {offsets = [0, 0], sizes = [4, 256], strides = [1, 1]} : vector<8x256xf32> to vector<4x256xf32>
    %805 = vector.extract_strided_slice %803 {offsets = [4, 0], sizes = [4, 256], strides = [1, 1]} : vector<8x256xf32> to vector<4x256xf32>
    %806 = arith.mulf %804, %805 : vector<4x256xf32>
    %cst_233 = arith.constant dense<0.000000e+00> : vector<4xf32>
    %807 = vector.multi_reduction <add>, %806, %cst_233 [1] : vector<4x256xf32> to vector<4xf32>
    %808 = vector.shape_cast %807 : vector<4xf32> to vector<4x1xf32>
    %cst_234 = arith.constant 2.560000e+02 : f32
    %809 = vector.broadcast %cst_234 : f32 to vector<4x1xf32>
    %810 = arith.divf %808, %809 : vector<4x1xf32>
    %811 = vector.extract_strided_slice %146 {offsets = [0, 0], sizes = [4, 1], strides = [1, 1]} : vector<4x4xf32> to vector<4x1xf32>
    %812 = vector.extract_strided_slice %810 {offsets = [0, 0], sizes = [1, 1], strides = [1, 1]} : vector<4x1xf32> to vector<1x1xf32>
    %813 = vector.broadcast %812 : vector<1x1xf32> to vector<4x1xf32>
    %814 = arith.mulf %811, %813 : vector<4x1xf32>
    %815 = vector.extract_strided_slice %146 {offsets = [0, 1], sizes = [4, 1], strides = [1, 1]} : vector<4x4xf32> to vector<4x1xf32>
    %816 = vector.extract_strided_slice %810 {offsets = [1, 0], sizes = [1, 1], strides = [1, 1]} : vector<4x1xf32> to vector<1x1xf32>
    %817 = vector.broadcast %816 : vector<1x1xf32> to vector<4x1xf32>
    %818 = arith.mulf %815, %817 : vector<4x1xf32>
    %819 = arith.addf %814, %818 : vector<4x1xf32>
    %820 = vector.extract_strided_slice %146 {offsets = [0, 2], sizes = [4, 1], strides = [1, 1]} : vector<4x4xf32> to vector<4x1xf32>
    %821 = vector.extract_strided_slice %810 {offsets = [2, 0], sizes = [1, 1], strides = [1, 1]} : vector<4x1xf32> to vector<1x1xf32>
    %822 = vector.broadcast %821 : vector<1x1xf32> to vector<4x1xf32>
    %823 = arith.mulf %820, %822 : vector<4x1xf32>
    %824 = arith.addf %819, %823 : vector<4x1xf32>
    %825 = vector.extract_strided_slice %146 {offsets = [0, 3], sizes = [4, 1], strides = [1, 1]} : vector<4x4xf32> to vector<4x1xf32>
    %826 = vector.extract_strided_slice %810 {offsets = [3, 0], sizes = [1, 1], strides = [1, 1]} : vector<4x1xf32> to vector<1x1xf32>
    %827 = vector.broadcast %826 : vector<1x1xf32> to vector<4x1xf32>
    %828 = arith.mulf %825, %827 : vector<4x1xf32>
    %829 = arith.addf %824, %828 : vector<4x1xf32>
    %830 = arith.addf %829, %166 : vector<4x1xf32>
    %831 = vector.broadcast %830 : vector<4x1xf32> to vector<4x256xf32>
    %832 = arith.mulf %806, %831 : vector<4x256xf32>
    %833 = vector.extract_strided_slice %148 {offsets = [0, 0], sizes = [4, 1], strides = [1, 1]} : vector<4x4xf32> to vector<4x1xf32>
    %834 = vector.extract_strided_slice %832 {offsets = [0, 0], sizes = [1, 256], strides = [1, 1]} : vector<4x256xf32> to vector<1x256xf32>
    %835 = vector.broadcast %833 : vector<4x1xf32> to vector<4x256xf32>
    %836 = vector.broadcast %834 : vector<1x256xf32> to vector<4x256xf32>
    %837 = arith.mulf %835, %836 : vector<4x256xf32>
    %838 = vector.extract_strided_slice %148 {offsets = [0, 1], sizes = [4, 1], strides = [1, 1]} : vector<4x4xf32> to vector<4x1xf32>
    %839 = vector.extract_strided_slice %832 {offsets = [1, 0], sizes = [1, 256], strides = [1, 1]} : vector<4x256xf32> to vector<1x256xf32>
    %840 = vector.broadcast %838 : vector<4x1xf32> to vector<4x256xf32>
    %841 = vector.broadcast %839 : vector<1x256xf32> to vector<4x256xf32>
    %842 = arith.mulf %840, %841 : vector<4x256xf32>
    %843 = arith.addf %837, %842 : vector<4x256xf32>
    %844 = vector.extract_strided_slice %148 {offsets = [0, 2], sizes = [4, 1], strides = [1, 1]} : vector<4x4xf32> to vector<4x1xf32>
    %845 = vector.extract_strided_slice %832 {offsets = [2, 0], sizes = [1, 256], strides = [1, 1]} : vector<4x256xf32> to vector<1x256xf32>
    %846 = vector.broadcast %844 : vector<4x1xf32> to vector<4x256xf32>
    %847 = vector.broadcast %845 : vector<1x256xf32> to vector<4x256xf32>
    %848 = arith.mulf %846, %847 : vector<4x256xf32>
    %849 = arith.addf %843, %848 : vector<4x256xf32>
    %850 = vector.extract_strided_slice %148 {offsets = [0, 3], sizes = [4, 1], strides = [1, 1]} : vector<4x4xf32> to vector<4x1xf32>
    %851 = vector.extract_strided_slice %832 {offsets = [3, 0], sizes = [1, 256], strides = [1, 1]} : vector<4x256xf32> to vector<1x256xf32>
    %852 = vector.broadcast %850 : vector<4x1xf32> to vector<4x256xf32>
    %853 = vector.broadcast %851 : vector<1x256xf32> to vector<4x256xf32>
    %854 = arith.mulf %852, %853 : vector<4x256xf32>
    %855 = arith.addf %849, %854 : vector<4x256xf32>
    %856 = vector.broadcast %168 : vector<4x1xf32> to vector<4x256xf32>
    %857 = arith.addf %855, %856 : vector<4x256xf32>
    %858 = vector.broadcast %172 : vector<4x1xf32> to vector<4x256xf32>
    %859 = arith.mulf %857, %858 : vector<4x256xf32>
    %860 = arith.addf %697, %859 : vector<4x256xf32>
    %cst_235 = arith.constant dense<0.000000e+00> : vector<256xf32>
    %861 = vector.multi_reduction <add>, %860, %cst_235 [0] : vector<4x256xf32> to vector<256xf32>
    %862 = vector.shape_cast %861 : vector<256xf32> to vector<1x256xf32>
    %cst_236 = arith.constant 4.000000e+00 : f32
    %863 = vector.broadcast %cst_236 : f32 to vector<1x256xf32>
    %864 = arith.divf %862, %863 : vector<1x256xf32>
    %865 = vector.broadcast %864 : vector<1x256xf32> to vector<4x256xf32>
    %866 = arith.subf %860, %865 : vector<4x256xf32>
    %867 = arith.mulf %866, %866 : vector<4x256xf32>
    %cst_237 = arith.constant dense<0.000000e+00> : vector<256xf32>
    %868 = vector.multi_reduction <add>, %867, %cst_237 [0] : vector<4x256xf32> to vector<256xf32>
    %869 = vector.shape_cast %868 : vector<256xf32> to vector<1x256xf32>
    %cst_238 = arith.constant 4.000000e+00 : f32
    %870 = vector.broadcast %cst_238 : f32 to vector<1x256xf32>
    %871 = arith.divf %869, %870 : vector<1x256xf32>
    %cst_239 = arith.constant 9.99999997E-7 : f32
    %872 = vector.broadcast %cst_239 : f32 to vector<1x256xf32>
    %873 = arith.addf %871, %872 : vector<1x256xf32>
    %874 = math.rsqrt %873 : vector<1x256xf32>
    %875 = vector.broadcast %874 : vector<1x256xf32> to vector<4x256xf32>
    %876 = arith.mulf %866, %875 : vector<4x256xf32>
    %877 = vector.broadcast %162 : vector<4x1xf32> to vector<4x256xf32>
    %878 = arith.mulf %876, %877 : vector<4x256xf32>
    %879 = vector.broadcast %164 : vector<4x1xf32> to vector<4x256xf32>
    %880 = arith.addf %878, %879 : vector<4x256xf32>
    %881 = vector.extract_strided_slice %144 {offsets = [0, 0], sizes = [8, 1], strides = [1, 1]} : vector<8x4xf32> to vector<8x1xf32>
    %882 = vector.extract_strided_slice %880 {offsets = [0, 0], sizes = [1, 256], strides = [1, 1]} : vector<4x256xf32> to vector<1x256xf32>
    %883 = vector.broadcast %881 : vector<8x1xf32> to vector<8x256xf32>
    %884 = vector.broadcast %882 : vector<1x256xf32> to vector<8x256xf32>
    %885 = arith.mulf %883, %884 : vector<8x256xf32>
    %886 = vector.extract_strided_slice %144 {offsets = [0, 1], sizes = [8, 1], strides = [1, 1]} : vector<8x4xf32> to vector<8x1xf32>
    %887 = vector.extract_strided_slice %880 {offsets = [1, 0], sizes = [1, 256], strides = [1, 1]} : vector<4x256xf32> to vector<1x256xf32>
    %888 = vector.broadcast %886 : vector<8x1xf32> to vector<8x256xf32>
    %889 = vector.broadcast %887 : vector<1x256xf32> to vector<8x256xf32>
    %890 = arith.mulf %888, %889 : vector<8x256xf32>
    %891 = arith.addf %885, %890 : vector<8x256xf32>
    %892 = vector.extract_strided_slice %144 {offsets = [0, 2], sizes = [8, 1], strides = [1, 1]} : vector<8x4xf32> to vector<8x1xf32>
    %893 = vector.extract_strided_slice %880 {offsets = [2, 0], sizes = [1, 256], strides = [1, 1]} : vector<4x256xf32> to vector<1x256xf32>
    %894 = vector.broadcast %892 : vector<8x1xf32> to vector<8x256xf32>
    %895 = vector.broadcast %893 : vector<1x256xf32> to vector<8x256xf32>
    %896 = arith.mulf %894, %895 : vector<8x256xf32>
    %897 = arith.addf %891, %896 : vector<8x256xf32>
    %898 = vector.extract_strided_slice %144 {offsets = [0, 3], sizes = [8, 1], strides = [1, 1]} : vector<8x4xf32> to vector<8x1xf32>
    %899 = vector.extract_strided_slice %880 {offsets = [3, 0], sizes = [1, 256], strides = [1, 1]} : vector<4x256xf32> to vector<1x256xf32>
    %900 = vector.broadcast %898 : vector<8x1xf32> to vector<8x256xf32>
    %901 = vector.broadcast %899 : vector<1x256xf32> to vector<8x256xf32>
    %902 = arith.mulf %900, %901 : vector<8x256xf32>
    %903 = arith.addf %897, %902 : vector<8x256xf32>
    %904 = vector.broadcast %156 : vector<8x1xf32> to vector<8x256xf32>
    %905 = arith.addf %903, %904 : vector<8x256xf32>
    %906 = vector.extract_strided_slice %905 {offsets = [0, 0], sizes = [4, 256], strides = [1, 1]} : vector<8x256xf32> to vector<4x256xf32>
    %907 = vector.extract_strided_slice %905 {offsets = [4, 0], sizes = [4, 256], strides = [1, 1]} : vector<8x256xf32> to vector<4x256xf32>
    %908 = arith.mulf %906, %907 : vector<4x256xf32>
    %909 = vector.extract_strided_slice %150 {offsets = [0, 0], sizes = [4, 1], strides = [1, 1]} : vector<4x4xf32> to vector<4x1xf32>
    %910 = vector.extract_strided_slice %908 {offsets = [0, 0], sizes = [1, 256], strides = [1, 1]} : vector<4x256xf32> to vector<1x256xf32>
    %911 = vector.broadcast %909 : vector<4x1xf32> to vector<4x256xf32>
    %912 = vector.broadcast %910 : vector<1x256xf32> to vector<4x256xf32>
    %913 = arith.mulf %911, %912 : vector<4x256xf32>
    %914 = vector.extract_strided_slice %150 {offsets = [0, 1], sizes = [4, 1], strides = [1, 1]} : vector<4x4xf32> to vector<4x1xf32>
    %915 = vector.extract_strided_slice %908 {offsets = [1, 0], sizes = [1, 256], strides = [1, 1]} : vector<4x256xf32> to vector<1x256xf32>
    %916 = vector.broadcast %914 : vector<4x1xf32> to vector<4x256xf32>
    %917 = vector.broadcast %915 : vector<1x256xf32> to vector<4x256xf32>
    %918 = arith.mulf %916, %917 : vector<4x256xf32>
    %919 = arith.addf %913, %918 : vector<4x256xf32>
    %920 = vector.extract_strided_slice %150 {offsets = [0, 2], sizes = [4, 1], strides = [1, 1]} : vector<4x4xf32> to vector<4x1xf32>
    %921 = vector.extract_strided_slice %908 {offsets = [2, 0], sizes = [1, 256], strides = [1, 1]} : vector<4x256xf32> to vector<1x256xf32>
    %922 = vector.broadcast %920 : vector<4x1xf32> to vector<4x256xf32>
    %923 = vector.broadcast %921 : vector<1x256xf32> to vector<4x256xf32>
    %924 = arith.mulf %922, %923 : vector<4x256xf32>
    %925 = arith.addf %919, %924 : vector<4x256xf32>
    %926 = vector.extract_strided_slice %150 {offsets = [0, 3], sizes = [4, 1], strides = [1, 1]} : vector<4x4xf32> to vector<4x1xf32>
    %927 = vector.extract_strided_slice %908 {offsets = [3, 0], sizes = [1, 256], strides = [1, 1]} : vector<4x256xf32> to vector<1x256xf32>
    %928 = vector.broadcast %926 : vector<4x1xf32> to vector<4x256xf32>
    %929 = vector.broadcast %927 : vector<1x256xf32> to vector<4x256xf32>
    %930 = arith.mulf %928, %929 : vector<4x256xf32>
    %931 = arith.addf %925, %930 : vector<4x256xf32>
    %932 = vector.broadcast %170 : vector<4x1xf32> to vector<4x256xf32>
    %933 = arith.addf %931, %932 : vector<4x256xf32>
    %934 = vector.broadcast %174 : vector<4x1xf32> to vector<4x256xf32>
    %935 = arith.mulf %933, %934 : vector<4x256xf32>
    %936 = arith.addf %860, %935 : vector<4x256xf32>
    %cst_240 = arith.constant dense<0.000000e+00> : vector<256xf32>
    %937 = vector.multi_reduction <add>, %936, %cst_240 [0] : vector<4x256xf32> to vector<256xf32>
    %938 = vector.shape_cast %937 : vector<256xf32> to vector<1x256xf32>
    %cst_241 = arith.constant 4.000000e+00 : f32
    %939 = vector.broadcast %cst_241 : f32 to vector<1x256xf32>
    %940 = arith.divf %938, %939 : vector<1x256xf32>
    %941 = vector.broadcast %940 : vector<1x256xf32> to vector<4x256xf32>
    %942 = arith.subf %936, %941 : vector<4x256xf32>
    %943 = arith.mulf %942, %942 : vector<4x256xf32>
    %cst_242 = arith.constant dense<0.000000e+00> : vector<256xf32>
    %944 = vector.multi_reduction <add>, %943, %cst_242 [0] : vector<4x256xf32> to vector<256xf32>
    %945 = vector.shape_cast %944 : vector<256xf32> to vector<1x256xf32>
    %cst_243 = arith.constant 4.000000e+00 : f32
    %946 = vector.broadcast %cst_243 : f32 to vector<1x256xf32>
    %947 = arith.divf %945, %946 : vector<1x256xf32>
    %cst_244 = arith.constant 9.99999997E-7 : f32
    %948 = vector.broadcast %cst_244 : f32 to vector<1x256xf32>
    %949 = arith.addf %947, %948 : vector<1x256xf32>
    %950 = math.rsqrt %949 : vector<1x256xf32>
    %951 = vector.broadcast %950 : vector<1x256xf32> to vector<4x256xf32>
    %952 = arith.mulf %942, %951 : vector<4x256xf32>
    %953 = vector.broadcast %194 : vector<4x1xf32> to vector<4x256xf32>
    %954 = arith.mulf %952, %953 : vector<4x256xf32>
    %955 = vector.broadcast %196 : vector<4x1xf32> to vector<4x256xf32>
    %956 = arith.addf %954, %955 : vector<4x256xf32>
    %957 = vector.extract_strided_slice %178 {offsets = [0, 0], sizes = [8, 1], strides = [1, 1]} : vector<8x4xf32> to vector<8x1xf32>
    %958 = vector.extract_strided_slice %956 {offsets = [0, 0], sizes = [1, 256], strides = [1, 1]} : vector<4x256xf32> to vector<1x256xf32>
    %959 = vector.broadcast %957 : vector<8x1xf32> to vector<8x256xf32>
    %960 = vector.broadcast %958 : vector<1x256xf32> to vector<8x256xf32>
    %961 = arith.mulf %959, %960 : vector<8x256xf32>
    %962 = vector.extract_strided_slice %178 {offsets = [0, 1], sizes = [8, 1], strides = [1, 1]} : vector<8x4xf32> to vector<8x1xf32>
    %963 = vector.extract_strided_slice %956 {offsets = [1, 0], sizes = [1, 256], strides = [1, 1]} : vector<4x256xf32> to vector<1x256xf32>
    %964 = vector.broadcast %962 : vector<8x1xf32> to vector<8x256xf32>
    %965 = vector.broadcast %963 : vector<1x256xf32> to vector<8x256xf32>
    %966 = arith.mulf %964, %965 : vector<8x256xf32>
    %967 = arith.addf %961, %966 : vector<8x256xf32>
    %968 = vector.extract_strided_slice %178 {offsets = [0, 2], sizes = [8, 1], strides = [1, 1]} : vector<8x4xf32> to vector<8x1xf32>
    %969 = vector.extract_strided_slice %956 {offsets = [2, 0], sizes = [1, 256], strides = [1, 1]} : vector<4x256xf32> to vector<1x256xf32>
    %970 = vector.broadcast %968 : vector<8x1xf32> to vector<8x256xf32>
    %971 = vector.broadcast %969 : vector<1x256xf32> to vector<8x256xf32>
    %972 = arith.mulf %970, %971 : vector<8x256xf32>
    %973 = arith.addf %967, %972 : vector<8x256xf32>
    %974 = vector.extract_strided_slice %178 {offsets = [0, 3], sizes = [8, 1], strides = [1, 1]} : vector<8x4xf32> to vector<8x1xf32>
    %975 = vector.extract_strided_slice %956 {offsets = [3, 0], sizes = [1, 256], strides = [1, 1]} : vector<4x256xf32> to vector<1x256xf32>
    %976 = vector.broadcast %974 : vector<8x1xf32> to vector<8x256xf32>
    %977 = vector.broadcast %975 : vector<1x256xf32> to vector<8x256xf32>
    %978 = arith.mulf %976, %977 : vector<8x256xf32>
    %979 = arith.addf %973, %978 : vector<8x256xf32>
    %980 = vector.broadcast %188 : vector<8x1xf32> to vector<8x256xf32>
    %981 = arith.addf %979, %980 : vector<8x256xf32>
    %c17_i32_245 = arith.constant 17 : i32
    %982 = tpu.dynamic_rotate %981 by %c17_i32_245 dim 1 : vector<8x256xf32>, i32 -> vector<8x256xf32>
    %983 = vector.broadcast %21 : vector<1x256xf32> to vector<8x256xf32>
    %984 = arith.mulf %982, %983 : vector<8x256xf32>
    %985 = vector.extract_strided_slice %212 {offsets = [0, 0], sizes = [8, 1], strides = [1, 1]} : vector<8x9xf32> to vector<8x1xf32>
    %986 = vector.broadcast %985 : vector<8x1xf32> to vector<8x256xf32>
    %987 = arith.mulf %984, %986 : vector<8x256xf32>
    %c16_i32_246 = arith.constant 16 : i32
    %988 = tpu.dynamic_rotate %981 by %c16_i32_246 dim 1 : vector<8x256xf32>, i32 -> vector<8x256xf32>
    %989 = vector.broadcast %38 : vector<1x256xf32> to vector<8x256xf32>
    %990 = arith.mulf %988, %989 : vector<8x256xf32>
    %991 = vector.extract_strided_slice %212 {offsets = [0, 1], sizes = [8, 1], strides = [1, 1]} : vector<8x9xf32> to vector<8x1xf32>
    %992 = vector.broadcast %991 : vector<8x1xf32> to vector<8x256xf32>
    %993 = arith.mulf %990, %992 : vector<8x256xf32>
    %994 = arith.addf %987, %993 : vector<8x256xf32>
    %c15_i32_247 = arith.constant 15 : i32
    %995 = tpu.dynamic_rotate %981 by %c15_i32_247 dim 1 : vector<8x256xf32>, i32 -> vector<8x256xf32>
    %996 = vector.broadcast %55 : vector<1x256xf32> to vector<8x256xf32>
    %997 = arith.mulf %995, %996 : vector<8x256xf32>
    %998 = vector.extract_strided_slice %212 {offsets = [0, 2], sizes = [8, 1], strides = [1, 1]} : vector<8x9xf32> to vector<8x1xf32>
    %999 = vector.broadcast %998 : vector<8x1xf32> to vector<8x256xf32>
    %1000 = arith.mulf %997, %999 : vector<8x256xf32>
    %1001 = arith.addf %994, %1000 : vector<8x256xf32>
    %c1_i32_248 = arith.constant 1 : i32
    %1002 = tpu.dynamic_rotate %981 by %c1_i32_248 dim 1 : vector<8x256xf32>, i32 -> vector<8x256xf32>
    %1003 = vector.broadcast %72 : vector<1x256xf32> to vector<8x256xf32>
    %1004 = arith.mulf %1002, %1003 : vector<8x256xf32>
    %1005 = vector.extract_strided_slice %212 {offsets = [0, 3], sizes = [8, 1], strides = [1, 1]} : vector<8x9xf32> to vector<8x1xf32>
    %1006 = vector.broadcast %1005 : vector<8x1xf32> to vector<8x256xf32>
    %1007 = arith.mulf %1004, %1006 : vector<8x256xf32>
    %1008 = arith.addf %1001, %1007 : vector<8x256xf32>
    %1009 = vector.extract_strided_slice %212 {offsets = [0, 4], sizes = [8, 1], strides = [1, 1]} : vector<8x9xf32> to vector<8x1xf32>
    %1010 = vector.broadcast %1009 : vector<8x1xf32> to vector<8x256xf32>
    %1011 = arith.mulf %981, %1010 : vector<8x256xf32>
    %1012 = arith.addf %1008, %1011 : vector<8x256xf32>
    %c255_i32_249 = arith.constant 255 : i32
    %1013 = tpu.dynamic_rotate %981 by %c255_i32_249 dim 1 : vector<8x256xf32>, i32 -> vector<8x256xf32>
    %1014 = vector.broadcast %89 : vector<1x256xf32> to vector<8x256xf32>
    %1015 = arith.mulf %1013, %1014 : vector<8x256xf32>
    %1016 = vector.extract_strided_slice %212 {offsets = [0, 5], sizes = [8, 1], strides = [1, 1]} : vector<8x9xf32> to vector<8x1xf32>
    %1017 = vector.broadcast %1016 : vector<8x1xf32> to vector<8x256xf32>
    %1018 = arith.mulf %1015, %1017 : vector<8x256xf32>
    %1019 = arith.addf %1012, %1018 : vector<8x256xf32>
    %c241_i32_250 = arith.constant 241 : i32
    %1020 = tpu.dynamic_rotate %981 by %c241_i32_250 dim 1 : vector<8x256xf32>, i32 -> vector<8x256xf32>
    %1021 = vector.broadcast %106 : vector<1x256xf32> to vector<8x256xf32>
    %1022 = arith.mulf %1020, %1021 : vector<8x256xf32>
    %1023 = vector.extract_strided_slice %212 {offsets = [0, 6], sizes = [8, 1], strides = [1, 1]} : vector<8x9xf32> to vector<8x1xf32>
    %1024 = vector.broadcast %1023 : vector<8x1xf32> to vector<8x256xf32>
    %1025 = arith.mulf %1022, %1024 : vector<8x256xf32>
    %1026 = arith.addf %1019, %1025 : vector<8x256xf32>
    %c240_i32_251 = arith.constant 240 : i32
    %1027 = tpu.dynamic_rotate %981 by %c240_i32_251 dim 1 : vector<8x256xf32>, i32 -> vector<8x256xf32>
    %1028 = vector.broadcast %123 : vector<1x256xf32> to vector<8x256xf32>
    %1029 = arith.mulf %1027, %1028 : vector<8x256xf32>
    %1030 = vector.extract_strided_slice %212 {offsets = [0, 7], sizes = [8, 1], strides = [1, 1]} : vector<8x9xf32> to vector<8x1xf32>
    %1031 = vector.broadcast %1030 : vector<8x1xf32> to vector<8x256xf32>
    %1032 = arith.mulf %1029, %1031 : vector<8x256xf32>
    %1033 = arith.addf %1026, %1032 : vector<8x256xf32>
    %c239_i32_252 = arith.constant 239 : i32
    %1034 = tpu.dynamic_rotate %981 by %c239_i32_252 dim 1 : vector<8x256xf32>, i32 -> vector<8x256xf32>
    %1035 = vector.broadcast %140 : vector<1x256xf32> to vector<8x256xf32>
    %1036 = arith.mulf %1034, %1035 : vector<8x256xf32>
    %1037 = vector.extract_strided_slice %212 {offsets = [0, 8], sizes = [8, 1], strides = [1, 1]} : vector<8x9xf32> to vector<8x1xf32>
    %1038 = vector.broadcast %1037 : vector<8x1xf32> to vector<8x256xf32>
    %1039 = arith.mulf %1036, %1038 : vector<8x256xf32>
    %1040 = arith.addf %1033, %1039 : vector<8x256xf32>
    %1041 = vector.broadcast %190 : vector<8x1xf32> to vector<8x256xf32>
    %1042 = arith.addf %1040, %1041 : vector<8x256xf32>
    %1043 = vector.extract_strided_slice %1042 {offsets = [0, 0], sizes = [4, 256], strides = [1, 1]} : vector<8x256xf32> to vector<4x256xf32>
    %1044 = vector.extract_strided_slice %1042 {offsets = [4, 0], sizes = [4, 256], strides = [1, 1]} : vector<8x256xf32> to vector<4x256xf32>
    %1045 = arith.mulf %1043, %1044 : vector<4x256xf32>
    %cst_253 = arith.constant dense<0.000000e+00> : vector<4xf32>
    %1046 = vector.multi_reduction <add>, %1045, %cst_253 [1] : vector<4x256xf32> to vector<4xf32>
    %1047 = vector.shape_cast %1046 : vector<4xf32> to vector<4x1xf32>
    %cst_254 = arith.constant 2.560000e+02 : f32
    %1048 = vector.broadcast %cst_254 : f32 to vector<4x1xf32>
    %1049 = arith.divf %1047, %1048 : vector<4x1xf32>
    %1050 = vector.extract_strided_slice %182 {offsets = [0, 0], sizes = [4, 1], strides = [1, 1]} : vector<4x4xf32> to vector<4x1xf32>
    %1051 = vector.extract_strided_slice %1049 {offsets = [0, 0], sizes = [1, 1], strides = [1, 1]} : vector<4x1xf32> to vector<1x1xf32>
    %1052 = vector.broadcast %1051 : vector<1x1xf32> to vector<4x1xf32>
    %1053 = arith.mulf %1050, %1052 : vector<4x1xf32>
    %1054 = vector.extract_strided_slice %182 {offsets = [0, 1], sizes = [4, 1], strides = [1, 1]} : vector<4x4xf32> to vector<4x1xf32>
    %1055 = vector.extract_strided_slice %1049 {offsets = [1, 0], sizes = [1, 1], strides = [1, 1]} : vector<4x1xf32> to vector<1x1xf32>
    %1056 = vector.broadcast %1055 : vector<1x1xf32> to vector<4x1xf32>
    %1057 = arith.mulf %1054, %1056 : vector<4x1xf32>
    %1058 = arith.addf %1053, %1057 : vector<4x1xf32>
    %1059 = vector.extract_strided_slice %182 {offsets = [0, 2], sizes = [4, 1], strides = [1, 1]} : vector<4x4xf32> to vector<4x1xf32>
    %1060 = vector.extract_strided_slice %1049 {offsets = [2, 0], sizes = [1, 1], strides = [1, 1]} : vector<4x1xf32> to vector<1x1xf32>
    %1061 = vector.broadcast %1060 : vector<1x1xf32> to vector<4x1xf32>
    %1062 = arith.mulf %1059, %1061 : vector<4x1xf32>
    %1063 = arith.addf %1058, %1062 : vector<4x1xf32>
    %1064 = vector.extract_strided_slice %182 {offsets = [0, 3], sizes = [4, 1], strides = [1, 1]} : vector<4x4xf32> to vector<4x1xf32>
    %1065 = vector.extract_strided_slice %1049 {offsets = [3, 0], sizes = [1, 1], strides = [1, 1]} : vector<4x1xf32> to vector<1x1xf32>
    %1066 = vector.broadcast %1065 : vector<1x1xf32> to vector<4x1xf32>
    %1067 = arith.mulf %1064, %1066 : vector<4x1xf32>
    %1068 = arith.addf %1063, %1067 : vector<4x1xf32>
    %1069 = arith.addf %1068, %202 : vector<4x1xf32>
    %1070 = vector.broadcast %1069 : vector<4x1xf32> to vector<4x256xf32>
    %1071 = arith.mulf %1045, %1070 : vector<4x256xf32>
    %1072 = vector.extract_strided_slice %184 {offsets = [0, 0], sizes = [4, 1], strides = [1, 1]} : vector<4x4xf32> to vector<4x1xf32>
    %1073 = vector.extract_strided_slice %1071 {offsets = [0, 0], sizes = [1, 256], strides = [1, 1]} : vector<4x256xf32> to vector<1x256xf32>
    %1074 = vector.broadcast %1072 : vector<4x1xf32> to vector<4x256xf32>
    %1075 = vector.broadcast %1073 : vector<1x256xf32> to vector<4x256xf32>
    %1076 = arith.mulf %1074, %1075 : vector<4x256xf32>
    %1077 = vector.extract_strided_slice %184 {offsets = [0, 1], sizes = [4, 1], strides = [1, 1]} : vector<4x4xf32> to vector<4x1xf32>
    %1078 = vector.extract_strided_slice %1071 {offsets = [1, 0], sizes = [1, 256], strides = [1, 1]} : vector<4x256xf32> to vector<1x256xf32>
    %1079 = vector.broadcast %1077 : vector<4x1xf32> to vector<4x256xf32>
    %1080 = vector.broadcast %1078 : vector<1x256xf32> to vector<4x256xf32>
    %1081 = arith.mulf %1079, %1080 : vector<4x256xf32>
    %1082 = arith.addf %1076, %1081 : vector<4x256xf32>
    %1083 = vector.extract_strided_slice %184 {offsets = [0, 2], sizes = [4, 1], strides = [1, 1]} : vector<4x4xf32> to vector<4x1xf32>
    %1084 = vector.extract_strided_slice %1071 {offsets = [2, 0], sizes = [1, 256], strides = [1, 1]} : vector<4x256xf32> to vector<1x256xf32>
    %1085 = vector.broadcast %1083 : vector<4x1xf32> to vector<4x256xf32>
    %1086 = vector.broadcast %1084 : vector<1x256xf32> to vector<4x256xf32>
    %1087 = arith.mulf %1085, %1086 : vector<4x256xf32>
    %1088 = arith.addf %1082, %1087 : vector<4x256xf32>
    %1089 = vector.extract_strided_slice %184 {offsets = [0, 3], sizes = [4, 1], strides = [1, 1]} : vector<4x4xf32> to vector<4x1xf32>
    %1090 = vector.extract_strided_slice %1071 {offsets = [3, 0], sizes = [1, 256], strides = [1, 1]} : vector<4x256xf32> to vector<1x256xf32>
    %1091 = vector.broadcast %1089 : vector<4x1xf32> to vector<4x256xf32>
    %1092 = vector.broadcast %1090 : vector<1x256xf32> to vector<4x256xf32>
    %1093 = arith.mulf %1091, %1092 : vector<4x256xf32>
    %1094 = arith.addf %1088, %1093 : vector<4x256xf32>
    %1095 = vector.broadcast %204 : vector<4x1xf32> to vector<4x256xf32>
    %1096 = arith.addf %1094, %1095 : vector<4x256xf32>
    %1097 = vector.broadcast %208 : vector<4x1xf32> to vector<4x256xf32>
    %1098 = arith.mulf %1096, %1097 : vector<4x256xf32>
    %1099 = arith.addf %936, %1098 : vector<4x256xf32>
    %cst_255 = arith.constant dense<0.000000e+00> : vector<256xf32>
    %1100 = vector.multi_reduction <add>, %1099, %cst_255 [0] : vector<4x256xf32> to vector<256xf32>
    %1101 = vector.shape_cast %1100 : vector<256xf32> to vector<1x256xf32>
    %cst_256 = arith.constant 4.000000e+00 : f32
    %1102 = vector.broadcast %cst_256 : f32 to vector<1x256xf32>
    %1103 = arith.divf %1101, %1102 : vector<1x256xf32>
    %1104 = vector.broadcast %1103 : vector<1x256xf32> to vector<4x256xf32>
    %1105 = arith.subf %1099, %1104 : vector<4x256xf32>
    %1106 = arith.mulf %1105, %1105 : vector<4x256xf32>
    %cst_257 = arith.constant dense<0.000000e+00> : vector<256xf32>
    %1107 = vector.multi_reduction <add>, %1106, %cst_257 [0] : vector<4x256xf32> to vector<256xf32>
    %1108 = vector.shape_cast %1107 : vector<256xf32> to vector<1x256xf32>
    %cst_258 = arith.constant 4.000000e+00 : f32
    %1109 = vector.broadcast %cst_258 : f32 to vector<1x256xf32>
    %1110 = arith.divf %1108, %1109 : vector<1x256xf32>
    %cst_259 = arith.constant 9.99999997E-7 : f32
    %1111 = vector.broadcast %cst_259 : f32 to vector<1x256xf32>
    %1112 = arith.addf %1110, %1111 : vector<1x256xf32>
    %1113 = math.rsqrt %1112 : vector<1x256xf32>
    %1114 = vector.broadcast %1113 : vector<1x256xf32> to vector<4x256xf32>
    %1115 = arith.mulf %1105, %1114 : vector<4x256xf32>
    %1116 = vector.broadcast %198 : vector<4x1xf32> to vector<4x256xf32>
    %1117 = arith.mulf %1115, %1116 : vector<4x256xf32>
    %1118 = vector.broadcast %200 : vector<4x1xf32> to vector<4x256xf32>
    %1119 = arith.addf %1117, %1118 : vector<4x256xf32>
    %1120 = vector.extract_strided_slice %180 {offsets = [0, 0], sizes = [8, 1], strides = [1, 1]} : vector<8x4xf32> to vector<8x1xf32>
    %1121 = vector.extract_strided_slice %1119 {offsets = [0, 0], sizes = [1, 256], strides = [1, 1]} : vector<4x256xf32> to vector<1x256xf32>
    %1122 = vector.broadcast %1120 : vector<8x1xf32> to vector<8x256xf32>
    %1123 = vector.broadcast %1121 : vector<1x256xf32> to vector<8x256xf32>
    %1124 = arith.mulf %1122, %1123 : vector<8x256xf32>
    %1125 = vector.extract_strided_slice %180 {offsets = [0, 1], sizes = [8, 1], strides = [1, 1]} : vector<8x4xf32> to vector<8x1xf32>
    %1126 = vector.extract_strided_slice %1119 {offsets = [1, 0], sizes = [1, 256], strides = [1, 1]} : vector<4x256xf32> to vector<1x256xf32>
    %1127 = vector.broadcast %1125 : vector<8x1xf32> to vector<8x256xf32>
    %1128 = vector.broadcast %1126 : vector<1x256xf32> to vector<8x256xf32>
    %1129 = arith.mulf %1127, %1128 : vector<8x256xf32>
    %1130 = arith.addf %1124, %1129 : vector<8x256xf32>
    %1131 = vector.extract_strided_slice %180 {offsets = [0, 2], sizes = [8, 1], strides = [1, 1]} : vector<8x4xf32> to vector<8x1xf32>
    %1132 = vector.extract_strided_slice %1119 {offsets = [2, 0], sizes = [1, 256], strides = [1, 1]} : vector<4x256xf32> to vector<1x256xf32>
    %1133 = vector.broadcast %1131 : vector<8x1xf32> to vector<8x256xf32>
    %1134 = vector.broadcast %1132 : vector<1x256xf32> to vector<8x256xf32>
    %1135 = arith.mulf %1133, %1134 : vector<8x256xf32>
    %1136 = arith.addf %1130, %1135 : vector<8x256xf32>
    %1137 = vector.extract_strided_slice %180 {offsets = [0, 3], sizes = [8, 1], strides = [1, 1]} : vector<8x4xf32> to vector<8x1xf32>
    %1138 = vector.extract_strided_slice %1119 {offsets = [3, 0], sizes = [1, 256], strides = [1, 1]} : vector<4x256xf32> to vector<1x256xf32>
    %1139 = vector.broadcast %1137 : vector<8x1xf32> to vector<8x256xf32>
    %1140 = vector.broadcast %1138 : vector<1x256xf32> to vector<8x256xf32>
    %1141 = arith.mulf %1139, %1140 : vector<8x256xf32>
    %1142 = arith.addf %1136, %1141 : vector<8x256xf32>
    %1143 = vector.broadcast %192 : vector<8x1xf32> to vector<8x256xf32>
    %1144 = arith.addf %1142, %1143 : vector<8x256xf32>
    %1145 = vector.extract_strided_slice %1144 {offsets = [0, 0], sizes = [4, 256], strides = [1, 1]} : vector<8x256xf32> to vector<4x256xf32>
    %1146 = vector.extract_strided_slice %1144 {offsets = [4, 0], sizes = [4, 256], strides = [1, 1]} : vector<8x256xf32> to vector<4x256xf32>
    %1147 = arith.mulf %1145, %1146 : vector<4x256xf32>
    %1148 = vector.extract_strided_slice %186 {offsets = [0, 0], sizes = [4, 1], strides = [1, 1]} : vector<4x4xf32> to vector<4x1xf32>
    %1149 = vector.extract_strided_slice %1147 {offsets = [0, 0], sizes = [1, 256], strides = [1, 1]} : vector<4x256xf32> to vector<1x256xf32>
    %1150 = vector.broadcast %1148 : vector<4x1xf32> to vector<4x256xf32>
    %1151 = vector.broadcast %1149 : vector<1x256xf32> to vector<4x256xf32>
    %1152 = arith.mulf %1150, %1151 : vector<4x256xf32>
    %1153 = vector.extract_strided_slice %186 {offsets = [0, 1], sizes = [4, 1], strides = [1, 1]} : vector<4x4xf32> to vector<4x1xf32>
    %1154 = vector.extract_strided_slice %1147 {offsets = [1, 0], sizes = [1, 256], strides = [1, 1]} : vector<4x256xf32> to vector<1x256xf32>
    %1155 = vector.broadcast %1153 : vector<4x1xf32> to vector<4x256xf32>
    %1156 = vector.broadcast %1154 : vector<1x256xf32> to vector<4x256xf32>
    %1157 = arith.mulf %1155, %1156 : vector<4x256xf32>
    %1158 = arith.addf %1152, %1157 : vector<4x256xf32>
    %1159 = vector.extract_strided_slice %186 {offsets = [0, 2], sizes = [4, 1], strides = [1, 1]} : vector<4x4xf32> to vector<4x1xf32>
    %1160 = vector.extract_strided_slice %1147 {offsets = [2, 0], sizes = [1, 256], strides = [1, 1]} : vector<4x256xf32> to vector<1x256xf32>
    %1161 = vector.broadcast %1159 : vector<4x1xf32> to vector<4x256xf32>
    %1162 = vector.broadcast %1160 : vector<1x256xf32> to vector<4x256xf32>
    %1163 = arith.mulf %1161, %1162 : vector<4x256xf32>
    %1164 = arith.addf %1158, %1163 : vector<4x256xf32>
    %1165 = vector.extract_strided_slice %186 {offsets = [0, 3], sizes = [4, 1], strides = [1, 1]} : vector<4x4xf32> to vector<4x1xf32>
    %1166 = vector.extract_strided_slice %1147 {offsets = [3, 0], sizes = [1, 256], strides = [1, 1]} : vector<4x256xf32> to vector<1x256xf32>
    %1167 = vector.broadcast %1165 : vector<4x1xf32> to vector<4x256xf32>
    %1168 = vector.broadcast %1166 : vector<1x256xf32> to vector<4x256xf32>
    %1169 = arith.mulf %1167, %1168 : vector<4x256xf32>
    %1170 = arith.addf %1164, %1169 : vector<4x256xf32>
    %1171 = vector.broadcast %206 : vector<4x1xf32> to vector<4x256xf32>
    %1172 = arith.addf %1170, %1171 : vector<4x256xf32>
    %1173 = vector.broadcast %210 : vector<4x1xf32> to vector<4x256xf32>
    %1174 = arith.mulf %1172, %1173 : vector<4x256xf32>
    %1175 = arith.addf %1099, %1174 : vector<4x256xf32>
    %c1_260 = arith.constant 1 : index
    %c0_261 = arith.constant 0 : index
    %c0_262 = arith.constant 0 : index
    %1176 = vector.load %arg7[%c1_260, %c0_261, %c0_262] : memref<2x4x256xf32, #tpu.memory_space<vmem>>, vector<1x4x256xf32>
    %1177 = vector.shape_cast %1176 : vector<1x4x256xf32> to vector<4x256xf32>
    %1178 = vector.shape_cast %1175 : vector<4x256xf32> to vector<1x4x256xf32>
    tpu.vector_store %arg7[%c1_260, %c0_261, %c0_262], %1178 {strides = array<i32>} : memref<2x4x256xf32, #tpu.memory_space<vmem>>, vector<1x4x256xf32>,
    return
  }
  func.func @transform_0(%arg0: i32) -> (i32, i32, i32) {
    %c0_i32 = arith.constant 0 : i32
    %c0_i32_0 = arith.constant 0 : i32
    %c0_i32_1 = arith.constant 0 : i32
    return %arg0, %c0_i32, %c0_i32_0 : i32, i32, i32
  }
  func.func @transform_1(%arg0: i32) -> (i32, i32, i32, i32) {
    %c0_i32 = arith.constant 0 : i32
    %c0_i32_0 = arith.constant 0 : i32
    %c0_i32_1 = arith.constant 0 : i32
    %c0_i32_2 = arith.constant 0 : i32
    %c0_i32_3 = arith.constant 0 : i32
    return %c0_i32, %c0_i32_0, %c0_i32_1, %c0_i32_2 : i32, i32, i32, i32
  }
  func.func @transform_2(%arg0: i32) -> (i32, i32, i32, i32) {
    %c0_i32 = arith.constant 0 : i32
    %c0_i32_0 = arith.constant 0 : i32
    %c0_i32_1 = arith.constant 0 : i32
    %c0_i32_2 = arith.constant 0 : i32
    %c0_i32_3 = arith.constant 0 : i32
    return %c0_i32, %c0_i32_0, %c0_i32_1, %c0_i32_2 : i32, i32, i32, i32
  }
  func.func @transform_3(%arg0: i32) -> (i32, i32, i32, i32) {
    %c0_i32 = arith.constant 0 : i32
    %c0_i32_0 = arith.constant 0 : i32
    %c0_i32_1 = arith.constant 0 : i32
    %c0_i32_2 = arith.constant 0 : i32
    %c0_i32_3 = arith.constant 0 : i32
    return %c0_i32, %c0_i32_0, %c0_i32_1, %c0_i32_2 : i32, i32, i32, i32
  }
  func.func @transform_4(%arg0: i32) -> (i32, i32, i32, i32) {
    %c0_i32 = arith.constant 0 : i32
    %c0_i32_0 = arith.constant 0 : i32
    %c0_i32_1 = arith.constant 0 : i32
    %c0_i32_2 = arith.constant 0 : i32
    %c0_i32_3 = arith.constant 0 : i32
    return %c0_i32, %c0_i32_0, %c0_i32_1, %c0_i32_2 : i32, i32, i32, i32
  }
  func.func @transform_5(%arg0: i32) -> (i32, i32, i32) {
    %c0_i32 = arith.constant 0 : i32
    %c0_i32_0 = arith.constant 0 : i32
    %c0_i32_1 = arith.constant 0 : i32
    %c0_i32_2 = arith.constant 0 : i32
    return %c0_i32, %c0_i32_0, %c0_i32_1 : i32, i32, i32
  }
  func.func @transform_6(%arg0: i32) -> (i32, i32, i32) {
    %c0_i32 = arith.constant 0 : i32
    %c0_i32_0 = arith.constant 0 : i32
    %c0_i32_1 = arith.constant 0 : i32
    return %arg0, %c0_i32, %c0_i32_0 : i32, i32, i32
  }
}

module attributes {stable_mosaic.version = 11 : i64} {
  func.func @grid_sample_kernel(%arg0: i32, %arg1: i32, %arg2: memref<2x6xf32, #tpu.memory_space<smem>>, %arg3: memref<1x4x256xf32, #tpu.memory_space<vmem>>, %arg4: memref<1x4x256xf32, #tpu.memory_space<vmem>>) attributes {dimension_semantics = [#tpu.dimension_semantics<parallel>, #tpu.dimension_semantics<parallel>], iteration_bounds = array<i64: 2, 1>, scalar_prefetch = 0 : i64, scratch_operands = 0 : i64, tpu.core_type = #tpu.core_type<tc>, window_params = [{transform_indices = @transform_0, window_bounds = array<i64: 2, 6>}, {transform_indices = @transform_1, window_bounds = array<i64: 1, 4, 256>}, {transform_indices = @transform_2, window_bounds = array<i64: 1, 4, 256>}]} {
    %0 = tpu.iota {dimensions = array<i32: 1>} : vector<1x256xi32>
    %c256_i32 = arith.constant 256 : i32
    %1 = arith.muli %arg1, %c256_i32 : i32
    %2 = vector.broadcast %1 : i32 to vector<1x256xi32>
    %3 = arith.addi %0, %2 : vector<1x256xi32>
    %c4_i32 = arith.constant 4 : i32
    %4 = vector.broadcast %c4_i32 : i32 to vector<1x256xi32>
    %5 = arith.shrsi %3, %4 : vector<1x256xi32>
    %6 = arith.sitofp %5 : vector<1x256xi32> to vector<1x256xf32>
    %c15_i32 = arith.constant 15 : i32
    %7 = vector.broadcast %c15_i32 : i32 to vector<1x256xi32>
    %8 = arith.andi %3, %7 : vector<1x256xi32>
    %9 = arith.sitofp %8 : vector<1x256xi32> to vector<1x256xf32>
    %10 = arith.index_cast %arg0 : i32 to index
    %c0 = arith.constant 0 : index
    %11 = memref.load %arg2[%10, %c0] : memref<2x6xf32, #tpu.memory_space<smem>>
    %12 = arith.index_cast %arg0 : i32 to index
    %c1 = arith.constant 1 : index
    %13 = memref.load %arg2[%12, %c1] : memref<2x6xf32, #tpu.memory_space<smem>>
    %14 = arith.index_cast %arg0 : i32 to index
    %c2 = arith.constant 2 : index
    %15 = memref.load %arg2[%14, %c2] : memref<2x6xf32, #tpu.memory_space<smem>>
    %16 = arith.index_cast %arg0 : i32 to index
    %c3 = arith.constant 3 : index
    %17 = memref.load %arg2[%16, %c3] : memref<2x6xf32, #tpu.memory_space<smem>>
    %18 = arith.index_cast %arg0 : i32 to index
    %c4 = arith.constant 4 : index
    %19 = memref.load %arg2[%18, %c4] : memref<2x6xf32, #tpu.memory_space<smem>>
    %20 = arith.index_cast %arg0 : i32 to index
    %c5 = arith.constant 5 : index
    %21 = memref.load %arg2[%20, %c5] : memref<2x6xf32, #tpu.memory_space<smem>>
    %cst = arith.constant 2.000000e+00 : f32
    %22 = vector.broadcast %cst : f32 to vector<1x256xf32>
    %23 = arith.mulf %22, %9 : vector<1x256xf32>
    %cst_0 = arith.constant 1.000000e+00 : f32
    %24 = vector.broadcast %cst_0 : f32 to vector<1x256xf32>
    %25 = arith.addf %23, %24 : vector<1x256xf32>
    %cst_1 = arith.constant 1.600000e+01 : f32
    %26 = vector.broadcast %cst_1 : f32 to vector<1x256xf32>
    %27 = arith.divf %25, %26 : vector<1x256xf32>
    %cst_2 = arith.constant 1.000000e+00 : f32
    %28 = vector.broadcast %cst_2 : f32 to vector<1x256xf32>
    %29 = arith.subf %27, %28 : vector<1x256xf32>
    %cst_3 = arith.constant 2.000000e+00 : f32
    %30 = vector.broadcast %cst_3 : f32 to vector<1x256xf32>
    %31 = arith.mulf %30, %6 : vector<1x256xf32>
    %cst_4 = arith.constant 1.000000e+00 : f32
    %32 = vector.broadcast %cst_4 : f32 to vector<1x256xf32>
    %33 = arith.addf %31, %32 : vector<1x256xf32>
    %cst_5 = arith.constant 1.600000e+01 : f32
    %34 = vector.broadcast %cst_5 : f32 to vector<1x256xf32>
    %35 = arith.divf %33, %34 : vector<1x256xf32>
    %cst_6 = arith.constant 1.000000e+00 : f32
    %36 = vector.broadcast %cst_6 : f32 to vector<1x256xf32>
    %37 = arith.subf %35, %36 : vector<1x256xf32>
    %38 = vector.broadcast %11 : f32 to vector<1x256xf32>
    %39 = arith.mulf %38, %29 : vector<1x256xf32>
    %40 = vector.broadcast %13 : f32 to vector<1x256xf32>
    %41 = arith.mulf %40, %37 : vector<1x256xf32>
    %42 = arith.addf %39, %41 : vector<1x256xf32>
    %43 = vector.broadcast %15 : f32 to vector<1x256xf32>
    %44 = arith.addf %42, %43 : vector<1x256xf32>
    %45 = vector.broadcast %17 : f32 to vector<1x256xf32>
    %46 = arith.mulf %45, %29 : vector<1x256xf32>
    %47 = vector.broadcast %19 : f32 to vector<1x256xf32>
    %48 = arith.mulf %47, %37 : vector<1x256xf32>
    %49 = arith.addf %46, %48 : vector<1x256xf32>
    %50 = vector.broadcast %21 : f32 to vector<1x256xf32>
    %51 = arith.addf %49, %50 : vector<1x256xf32>
    %cst_7 = arith.constant 1.000000e+00 : f32
    %52 = vector.broadcast %cst_7 : f32 to vector<1x256xf32>
    %53 = arith.addf %44, %52 : vector<1x256xf32>
    %cst_8 = arith.constant 1.600000e+01 : f32
    %54 = vector.broadcast %cst_8 : f32 to vector<1x256xf32>
    %55 = arith.mulf %53, %54 : vector<1x256xf32>
    %cst_9 = arith.constant 1.000000e+00 : f32
    %56 = vector.broadcast %cst_9 : f32 to vector<1x256xf32>
    %57 = arith.subf %55, %56 : vector<1x256xf32>
    %cst_10 = arith.constant 5.000000e-01 : f32
    %58 = vector.broadcast %cst_10 : f32 to vector<1x256xf32>
    %59 = arith.mulf %57, %58 : vector<1x256xf32>
    %cst_11 = arith.constant 1.000000e+00 : f32
    %60 = vector.broadcast %cst_11 : f32 to vector<1x256xf32>
    %61 = arith.addf %51, %60 : vector<1x256xf32>
    %cst_12 = arith.constant 1.600000e+01 : f32
    %62 = vector.broadcast %cst_12 : f32 to vector<1x256xf32>
    %63 = arith.mulf %61, %62 : vector<1x256xf32>
    %cst_13 = arith.constant 1.000000e+00 : f32
    %64 = vector.broadcast %cst_13 : f32 to vector<1x256xf32>
    %65 = arith.subf %63, %64 : vector<1x256xf32>
    %cst_14 = arith.constant 5.000000e-01 : f32
    %66 = vector.broadcast %cst_14 : f32 to vector<1x256xf32>
    %67 = arith.mulf %65, %66 : vector<1x256xf32>
    %68 = math.floor %59 : vector<1x256xf32>
    %69 = math.floor %67 : vector<1x256xf32>
    %70 = arith.subf %59, %68 : vector<1x256xf32>
    %cst_15 = arith.constant 1.000000e+00 : f32
    %71 = vector.broadcast %cst_15 : f32 to vector<1x256xf32>
    %72 = arith.subf %71, %70 : vector<1x256xf32>
    %73 = arith.subf %67, %69 : vector<1x256xf32>
    %cst_16 = arith.constant 1.000000e+00 : f32
    %74 = vector.broadcast %cst_16 : f32 to vector<1x256xf32>
    %75 = arith.subf %74, %73 : vector<1x256xf32>
    %76 = arith.fptosi %68 : vector<1x256xf32> to vector<1x256xi32>
    %77 = arith.fptosi %69 : vector<1x256xf32> to vector<1x256xi32>
    %c16_i32 = arith.constant 16 : i32
    %78 = vector.broadcast %c16_i32 : i32 to vector<1x256xi32>
    %79 = arith.muli %77, %78 : vector<1x256xi32>
    %80 = arith.addi %79, %76 : vector<1x256xi32>
    %c256_i32_17 = arith.constant 256 : i32
    %c0_i32 = arith.constant 0 : i32
    %81 = arith.cmpi eq, %c256_i32_17, %c0_i32 : i32
    %c1_i32 = arith.constant 1 : i32
    %82 = arith.select %81, %c1_i32, %c256_i32_17 : i32
    %83 = vector.broadcast %82 : i32 to vector<1x256xi32>
    %84 = arith.remsi %80, %83 : vector<1x256xi32>
    %c0_i32_18 = arith.constant 0 : i32
    %85 = vector.broadcast %c0_i32_18 : i32 to vector<1x256xi32>
    %86 = arith.cmpi ne, %84, %85 : vector<1x256xi32>
    %c0_i32_19 = arith.constant 0 : i32
    %87 = vector.broadcast %c0_i32_19 : i32 to vector<1x256xi32>
    %88 = arith.cmpi slt, %84, %87 : vector<1x256xi32>
    %c0_i32_20 = arith.constant 0 : i32
    %89 = arith.cmpi slt, %82, %c0_i32_20 : i32
    %90 = vector.broadcast %89 : i1 to vector<1x256xi1>
    %91 = vector.broadcast %90 : vector<1x256xi1> to vector<1x256xi1>
    %92 = arith.xori %88, %91 : vector<1x256xi1>
    %93 = arith.andi %92, %86 : vector<1x256xi1>
    %94 = vector.broadcast %82 : i32 to vector<1x256xi32>
    %95 = arith.addi %84, %94 : vector<1x256xi32>
    %96 = arith.select %93, %95, %84 : vector<1x256xi1>, vector<1x256xi32>
    %97 = tpu.iota {dimensions = array<i32: 0>} : vector<256x256xi32>
    %98 = vector.broadcast %96 : vector<1x256xi32> to vector<256x256xi32>
    %99 = arith.cmpi eq, %97, %98 : vector<256x256xi32>
    %100 = arith.extui %99 : vector<256x256xi1> to vector<256x256xi32>
    %101 = arith.sitofp %100 : vector<256x256xi32> to vector<256x256xf32>
    %102 = arith.mulf %75, %72 : vector<1x256xf32>
    %c0_i32_21 = arith.constant 0 : i32
    %103 = vector.broadcast %c0_i32_21 : i32 to vector<1x256xi32>
    %104 = arith.addi %77, %103 : vector<1x256xi32>
    %c0_i32_22 = arith.constant 0 : i32
    %105 = vector.broadcast %c0_i32_22 : i32 to vector<1x256xi32>
    %106 = arith.addi %76, %105 : vector<1x256xi32>
    %c0_i32_23 = arith.constant 0 : i32
    %107 = vector.broadcast %c0_i32_23 : i32 to vector<1x256xi32>
    %108 = arith.cmpi sge, %104, %107 : vector<1x256xi32>
    %c16_i32_24 = arith.constant 16 : i32
    %109 = vector.broadcast %c16_i32_24 : i32 to vector<1x256xi32>
    %110 = arith.cmpi slt, %104, %109 : vector<1x256xi32>
    %111 = arith.andi %108, %110 : vector<1x256xi1>
    %c0_i32_25 = arith.constant 0 : i32
    %112 = vector.broadcast %c0_i32_25 : i32 to vector<1x256xi32>
    %113 = arith.cmpi sge, %106, %112 : vector<1x256xi32>
    %114 = arith.andi %111, %113 : vector<1x256xi1>
    %c16_i32_26 = arith.constant 16 : i32
    %115 = vector.broadcast %c16_i32_26 : i32 to vector<1x256xi32>
    %116 = arith.cmpi slt, %106, %115 : vector<1x256xi32>
    %117 = arith.andi %114, %116 : vector<1x256xi1>
    %cst_27 = arith.constant 0.000000e+00 : f32
    %118 = vector.broadcast %cst_27 : f32 to vector<1x256xf32>
    %119 = arith.select %117, %102, %118 : vector<1x256xi1>, vector<1x256xf32>
    %120 = vector.broadcast %119 : vector<1x256xf32> to vector<256x256xf32>
    %121 = arith.mulf %101, %120 : vector<256x256xf32>
    %122 = arith.mulf %75, %70 : vector<1x256xf32>
    %123 = arith.mulf %73, %72 : vector<1x256xf32>
    %124 = arith.mulf %73, %70 : vector<1x256xf32>
    %c1_i32_28 = arith.constant 1 : i32
    %125 = tpu.dynamic_rotate %101 by %c1_i32_28 dim 0 : vector<256x256xf32>, i32 -> vector<256x256xf32>
    %c0_i32_29 = arith.constant 0 : i32
    %126 = vector.broadcast %c0_i32_29 : i32 to vector<1x256xi32>
    %127 = arith.addi %77, %126 : vector<1x256xi32>
    %c1_i32_30 = arith.constant 1 : i32
    %128 = vector.broadcast %c1_i32_30 : i32 to vector<1x256xi32>
    %129 = arith.addi %76, %128 : vector<1x256xi32>
    %c0_i32_31 = arith.constant 0 : i32
    %130 = vector.broadcast %c0_i32_31 : i32 to vector<1x256xi32>
    %131 = arith.cmpi sge, %127, %130 : vector<1x256xi32>
    %c16_i32_32 = arith.constant 16 : i32
    %132 = vector.broadcast %c16_i32_32 : i32 to vector<1x256xi32>
    %133 = arith.cmpi slt, %127, %132 : vector<1x256xi32>
    %134 = arith.andi %131, %133 : vector<1x256xi1>
    %c0_i32_33 = arith.constant 0 : i32
    %135 = vector.broadcast %c0_i32_33 : i32 to vector<1x256xi32>
    %136 = arith.cmpi sge, %129, %135 : vector<1x256xi32>
    %137 = arith.andi %134, %136 : vector<1x256xi1>
    %c16_i32_34 = arith.constant 16 : i32
    %138 = vector.broadcast %c16_i32_34 : i32 to vector<1x256xi32>
    %139 = arith.cmpi slt, %129, %138 : vector<1x256xi32>
    %140 = arith.andi %137, %139 : vector<1x256xi1>
    %cst_35 = arith.constant 0.000000e+00 : f32
    %141 = vector.broadcast %cst_35 : f32 to vector<1x256xf32>
    %142 = arith.select %140, %122, %141 : vector<1x256xi1>, vector<1x256xf32>
    %143 = vector.broadcast %142 : vector<1x256xf32> to vector<256x256xf32>
    %144 = arith.mulf %125, %143 : vector<256x256xf32>
    %145 = arith.addf %121, %144 : vector<256x256xf32>
    %c16_i32_36 = arith.constant 16 : i32
    %146 = tpu.dynamic_rotate %101 by %c16_i32_36 dim 0 : vector<256x256xf32>, i32 -> vector<256x256xf32>
    %c1_i32_37 = arith.constant 1 : i32
    %147 = vector.broadcast %c1_i32_37 : i32 to vector<1x256xi32>
    %148 = arith.addi %77, %147 : vector<1x256xi32>
    %c0_i32_38 = arith.constant 0 : i32
    %149 = vector.broadcast %c0_i32_38 : i32 to vector<1x256xi32>
    %150 = arith.addi %76, %149 : vector<1x256xi32>
    %c0_i32_39 = arith.constant 0 : i32
    %151 = vector.broadcast %c0_i32_39 : i32 to vector<1x256xi32>
    %152 = arith.cmpi sge, %148, %151 : vector<1x256xi32>
    %c16_i32_40 = arith.constant 16 : i32
    %153 = vector.broadcast %c16_i32_40 : i32 to vector<1x256xi32>
    %154 = arith.cmpi slt, %148, %153 : vector<1x256xi32>
    %155 = arith.andi %152, %154 : vector<1x256xi1>
    %c0_i32_41 = arith.constant 0 : i32
    %156 = vector.broadcast %c0_i32_41 : i32 to vector<1x256xi32>
    %157 = arith.cmpi sge, %150, %156 : vector<1x256xi32>
    %158 = arith.andi %155, %157 : vector<1x256xi1>
    %c16_i32_42 = arith.constant 16 : i32
    %159 = vector.broadcast %c16_i32_42 : i32 to vector<1x256xi32>
    %160 = arith.cmpi slt, %150, %159 : vector<1x256xi32>
    %161 = arith.andi %158, %160 : vector<1x256xi1>
    %cst_43 = arith.constant 0.000000e+00 : f32
    %162 = vector.broadcast %cst_43 : f32 to vector<1x256xf32>
    %163 = arith.select %161, %123, %162 : vector<1x256xi1>, vector<1x256xf32>
    %164 = vector.broadcast %163 : vector<1x256xf32> to vector<256x256xf32>
    %165 = arith.mulf %146, %164 : vector<256x256xf32>
    %166 = arith.addf %145, %165 : vector<256x256xf32>
    %c17_i32 = arith.constant 17 : i32
    %167 = tpu.dynamic_rotate %101 by %c17_i32 dim 0 : vector<256x256xf32>, i32 -> vector<256x256xf32>
    %c1_i32_44 = arith.constant 1 : i32
    %168 = vector.broadcast %c1_i32_44 : i32 to vector<1x256xi32>
    %169 = arith.addi %77, %168 : vector<1x256xi32>
    %c1_i32_45 = arith.constant 1 : i32
    %170 = vector.broadcast %c1_i32_45 : i32 to vector<1x256xi32>
    %171 = arith.addi %76, %170 : vector<1x256xi32>
    %c0_i32_46 = arith.constant 0 : i32
    %172 = vector.broadcast %c0_i32_46 : i32 to vector<1x256xi32>
    %173 = arith.cmpi sge, %169, %172 : vector<1x256xi32>
    %c16_i32_47 = arith.constant 16 : i32
    %174 = vector.broadcast %c16_i32_47 : i32 to vector<1x256xi32>
    %175 = arith.cmpi slt, %169, %174 : vector<1x256xi32>
    %176 = arith.andi %173, %175 : vector<1x256xi1>
    %c0_i32_48 = arith.constant 0 : i32
    %177 = vector.broadcast %c0_i32_48 : i32 to vector<1x256xi32>
    %178 = arith.cmpi sge, %171, %177 : vector<1x256xi32>
    %179 = arith.andi %176, %178 : vector<1x256xi1>
    %c16_i32_49 = arith.constant 16 : i32
    %180 = vector.broadcast %c16_i32_49 : i32 to vector<1x256xi32>
    %181 = arith.cmpi slt, %171, %180 : vector<1x256xi32>
    %182 = arith.andi %179, %181 : vector<1x256xi1>
    %cst_50 = arith.constant 0.000000e+00 : f32
    %183 = vector.broadcast %cst_50 : f32 to vector<1x256xf32>
    %184 = arith.select %182, %124, %183 : vector<1x256xi1>, vector<1x256xf32>
    %185 = vector.broadcast %184 : vector<1x256xf32> to vector<256x256xf32>
    %186 = arith.mulf %167, %185 : vector<256x256xf32>
    %187 = arith.addf %166, %186 : vector<256x256xf32>
    %c0_51 = arith.constant 0 : index
    %c0_52 = arith.constant 0 : index
    %c0_53 = arith.constant 0 : index
    %188 = vector.load %arg3[%c0_51, %c0_52, %c0_53] : memref<1x4x256xf32, #tpu.memory_space<vmem>>, vector<1x4x256xf32>
    %189 = vector.shape_cast %188 : vector<1x4x256xf32> to vector<4x256xf32>
    %cst_54 = arith.constant dense<0.000000e+00> : vector<4x256xf32>
    %190 = tpu.matmul %189, %187, %cst_54 {dimension_numbers = #tpu.dot_dimension_numbers<[1], [0], [0], [1], [0, 0, 1, 1], [], []>} : vector<4x256xf32>, vector<256x256xf32>, vector<4x256xf32> -> vector<4x256xf32>
    %c0_55 = arith.constant 0 : index
    %c0_56 = arith.constant 0 : index
    %c0_57 = arith.constant 0 : index
    %191 = vector.load %arg4[%c0_55, %c0_56, %c0_57] : memref<1x4x256xf32, #tpu.memory_space<vmem>>, vector<1x4x256xf32>
    %192 = vector.shape_cast %191 : vector<1x4x256xf32> to vector<4x256xf32>
    %193 = vector.shape_cast %190 : vector<4x256xf32> to vector<1x4x256xf32>
    tpu.vector_store %arg4[%c0_55, %c0_56, %c0_57], %193 {strides = array<i32>} : memref<1x4x256xf32, #tpu.memory_space<vmem>>, vector<1x4x256xf32>,
    return
  }
  func.func @transform_0(%arg0: i32, %arg1: i32) -> (i32, i32) {
    %c0_i32 = arith.constant 0 : i32
    %c0_i32_0 = arith.constant 0 : i32
    %c0_i32_1 = arith.constant 0 : i32
    return %c0_i32, %c0_i32_0 : i32, i32
  }
  func.func @transform_1(%arg0: i32, %arg1: i32) -> (i32, i32, i32) {
    %c0_i32 = arith.constant 0 : i32
    %c0_i32_0 = arith.constant 0 : i32
    %c0_i32_1 = arith.constant 0 : i32
    return %arg0, %c0_i32, %c0_i32_0 : i32, i32, i32
  }
  func.func @transform_2(%arg0: i32, %arg1: i32) -> (i32, i32, i32) {
    %c0_i32 = arith.constant 0 : i32
    %c0_i32_0 = arith.constant 0 : i32
    return %arg0, %c0_i32, %arg1 : i32, i32, i32
  }
}

</mosaic_0001>

<llo_original>
// kernel: naf_stn_block_forward.3
$region0: #{naf_stn_block_forward.3}
  #allocation0 [shape = 'u32[]', space=smem, size = 0x4, offset = 0x4, fixed_abs, tag = 'smem constant byte address 0x4 - core index']
  #allocation1 [shape = 'u32[144,128]{1,0:T(1,128)}', space=vmem, size = 0x12000, scoped, tag = 'internal scratch']
  %s0 = inlined_call_operand.vmem [shape: f32[2,6], index: 0, kind: input, shape index: {}]
  %s1 = inlined_call_operand.vmem [shape: f32[2,4,256], index: 1, kind: input, shape index: {}]
  %s2 = inlined_call_operand.vmem [shape: f32[2,4,256], index: 2, kind: output, shape index: {}]
  %s3 = sld [smem:[#allocation0]]
  $region45: #{naf_stn_block_forward.3} parent=0
    _
  %s5 = ssub.s32 1, %s3
  %s6 = scalar_select 0, %s5, %s3
  $region1: #{naf_stn_block_forward.3} parent=0
    #allocation2 [shape = 'u8[1024]{0}', space=smem, size = 0x400, scoped, tag = 'input window, operand 0, single buffered']
    #allocation3 [shape = 's32[2]{0}', space=sflag, size = 0x8, scoped, tag = 'scoped memory for naf_stn_block_forward.3']
    %7 = vsyncpa [#allocation3], 0
    loop: start=0, step=1, limit=4
    $region2: #{naf_stn_block_forward.3} parent=1 // loop_pre_header
      _
    $region3: #{naf_stn_block_forward.3} parent=1 // loop_header
      %s9 = sphi 0, %s13
      %p10 = scmp.ge.s32.totalorder %s9, 4
      %s16 = sphi 0, %s28
      %s17 = sphi 0, %s24
      %s18 = sphi 0, %s16
      %s19 = sphi 0, %s17
      %s20 = sphi 0, %s18
      %s21 = sphi 0, %s19
      %s29 = sphi 0, %s29
      %s31 = sphi 0, %s29
      %s32 = sphi 0, %s31
      %s46 = sphi 0, %s32
      %s52 = sphi 0, %s54
      %s55 = sphi 0, %s52
      %s56 = sphi 0, %s55
      %s72 = sphi 0, %s56
      %s80 = sphi 0, %s82
      %s83 = sphi 0, %s80
      %s84 = sphi 0, %s83
      %s100 = sphi 0, %s84
    $region4: #{naf_stn_block_forward.3} parent=1 // loop_header_branch
      %12 = sbr.rel (%p10) target = $region8
    $region5: #{naf_stn_block_forward.3} parent=1 // loop_body
      %s14 = ssub.s32 %s9, 1
      %s15 = ssub.s32 %s9, 2
      %s22 = sadd.s32 1, %s17
      %p23 = scmp.ge.s32.totalorder %s22, 1
      %s24 = scalar_select %p23, 0, %s22
      %s25 = sadd.s32 1, %s16
      %s26 = scalar_select %p23, %s25, %s16
      %p27 = scmp.ge.s32.totalorder %s26, 2
      %s28 = scalar_select %p27, 0, %s26
      %s30 = sadd.s32 %s29, 1
      %p33 = scmp.eq.s32.totalorder %s9, 1
      %p34 = scmp.ne.s32.totalorder %s29, %s31
      %p35 = scmp.eq.s32.totalorder %s9, 0
      %p36 = por %p34, %p35
      %p37 = scmp.ne.s32.totalorder %s29, %s31
      %p38 = scmp.eq.s32.totalorder %s14, 1
      %p39 = por %p37, %p38
      %p40 = scmp.ne.s32.totalorder %s31, %s32
      %p41 = scmp.eq.s32.totalorder %s14, 0
      %p42 = por %p40, %p41
      %p43 = scmp.ne.s32.totalorder %s31, %s32
      %p44 = scmp.eq.s32.totalorder %s15, 1
      %p45 = por %p43, %p44
      %p47 = scmp.ne.s32.totalorder %s32, %s46
      %p48 = scmp.eq.s32.totalorder %s15, 0
      %p49 = por %p47, %p48
      %s50 = ssub.s32 %s16, %s28
      %p51 = scmp.eq.s32.totalorder %s50, 0
      %s53 = sadd.s32 %s52, 1
      %s54 = scalar_select %p51, %s52, %s53
      %p57 = pneg %p51
      %p58 = scmp.eq.s32.totalorder %s9, 1
      %p59 = por %p57, %p58
      %p60 = scmp.ne.s32.totalorder %s52, %s55
      %p61 = scmp.eq.s32.totalorder %s9, 0
      %p62 = por %p60, %p61
      %p63 = scmp.ne.s32.totalorder %s52, %s55
      %p64 = scmp.eq.s32.totalorder %s14, 1
      %p65 = por %p63, %p64
      %p66 = scmp.ne.s32.totalorder %s55, %s56
      %p67 = scmp.eq.s32.totalorder %s14, 0
      %p68 = por %p66, %p67
      %p69 = scmp.ne.s32.totalorder %s55, %s56
      %p70 = scmp.eq.s32.totalorder %s15, 1
      %p71 = por %p69, %p70
      %p73 = scmp.ne.s32.totalorder %s56, %s72
      %p74 = scmp.eq.s32.totalorder %s15, 0
      %p75 = por %p73, %p74
      %s76 = ssub.s32 %s16, %s28
      %s77 = ssub.s32 %s17, %s24
      %s78 = sor.u32 %s76, %s77
      %p79 = scmp.eq.s32.totalorder %s78, 0
      %s81 = sadd.s32 %s80, 1
      %s82 = scalar_select %p79, %s80, %s81
      %p85 = pneg %p79
      %p86 = scmp.eq.s32.totalorder %s9, 1
      %p87 = por %p85, %p86
      %p88 = scmp.ne.s32.totalorder %s80, %s83
      %p89 = scmp.eq.s32.totalorder %s9, 0
      %p90 = por %p88, %p89
      %p91 = scmp.ne.s32.totalorder %s80, %s83
      %p92 = scmp.eq.s32.totalorder %s14, 1
      %p93 = por %p91, %p92
      %p94 = scmp.ne.s32.totalorder %s83, %s84
      %p95 = scmp.eq.s32.totalorder %s14, 0
      %p96 = por %p94, %p95
      %p97 = scmp.ne.s32.totalorder %s83, %s84
      %p98 = scmp.eq.s32.totalorder %s15, 1
      %p99 = por %p97, %p98
      %p101 = scmp.ne.s32.totalorder %s84, %s100
      %p102 = scmp.eq.s32.totalorder %s15, 0
      %p103 = por %p101, %p102
      %p104 = scmp.le.s32.totalorder 1, %s9
      %p105 = scmp.lt.s32.totalorder %s9, 3
      %p106 = pnand %p104, %p105
      %p107 = pneg %p106
      // Predicated region
      $region9: #{naf_stn_block_forward.3} parent=5 // pred_check
        _
      $region10: #{naf_stn_block_forward.3} parent=5 // pred_check_branch
        %109 = sbr.rel (%p106) target = $region12
      $region11: #{naf_stn_block_forward.3} parent=5 // pred_region
        %s110 = ssub.s32 %s9, 1
        // Predicated region
        $region13: #{naf_stn_block_forward.3} parent=11 // pred_check
          %p111 = pneg %p42
        $region14: #{naf_stn_block_forward.3} parent=11 // pred_check_branch
          %113 = sbr.rel (%p111) target = $region16
        $region15: #{naf_stn_block_forward.3} parent=11 // pred_region
          %s115 = ssub.s32 32, 32
          %116 = vsyncadd [#allocation3], %s115
          %s118 = sshll.u32 %s0, 4
          %s119 = int_to_ptr.vmem [resolvable:$true] %s118
          %121 = dma.vmem_to_smem %s119, 32, [#allocation2], [#allocation3]
        $region16: #{naf_stn_block_forward.3} parent=11 // pred_fallthru
          _
      $region12: #{naf_stn_block_forward.3} parent=5 // pred_fallthru
        _
      %p122 = scmp.lt.s32.totalorder %s9, 2
      // Predicated region
      $region17: #{naf_stn_block_forward.3} parent=5 // pred_check
        %p123 = pneg %p122
      $region18: #{naf_stn_block_forward.3} parent=5 // pred_check_branch
        %125 = sbr.rel (%p123) target = $region20
      $region19: #{naf_stn_block_forward.3} parent=5 // pred_region
        // Predicated region
        $region21: #{naf_stn_block_forward.3} parent=19 // pred_check
          %p126 = pneg %p62
        $region22: #{naf_stn_block_forward.3} parent=19 // pred_check_branch
          %128 = sbr.rel (%p126) target = $region24
        $region23: #{naf_stn_block_forward.3} parent=19 // pred_region
          %p129 = scmp.lt.s32.totalorder %s16, 1
          %s130 = scalar_select %p129, %s16, 1
          %s131 = smul.addr %s130, 2
          %s132 = smul.addr %s131, 4
          %s133 = scalar_lea.vmem %s1, %s132
        $region24: #{naf_stn_block_forward.3} parent=19 // pred_fallthru
          _
      $region20: #{naf_stn_block_forward.3} parent=5 // pred_fallthru
        _
      %p134 = scmp.le.s32.totalorder 1, %s9
      %p135 = scmp.lt.s32.totalorder %s9, 3
      %p136 = pnand %p134, %p135
      %p137 = pneg %p136
      // Predicated region
      $region25: #{naf_stn_block_forward.3} parent=5 // pred_check
        _
      $region26: #{naf_stn_block_forward.3} parent=5 // pred_check_branch
        %139 = sbr.rel (%p136) target = $region28
      $region27: #{naf_stn_block_forward.3} parent=5 // pred_region
        %s140 = ssub.s32 %s9, 1
        // Predicated region
        $region29: #{naf_stn_block_forward.3} parent=27 // pred_check
          %p141 = pneg %p42
        $region30: #{naf_stn_block_forward.3} parent=27 // pred_check_branch
          %143 = sbr.rel (%p141) target = $region32
        $region31: #{naf_stn_block_forward.3} parent=27 // pred_region
          %144 = dma.done [#allocation3], 32
        $region32: #{naf_stn_block_forward.3} parent=27 // pred_fallthru
          _
        %145 = sfence
        %p146 = pneg %p42
        %p147 = pneg %p39
        %p148 = scmp.lt.s32.totalorder %s18, 1
        %s149 = scalar_select %p148, %s18, 1
        %s150 = smul.addr %s149, 2
        %s151 = smul.addr %s150, 4
        %s152 = scalar_lea.vmem %s1, %s151
        %p153 = pneg %p68
        %p154 = pneg %p65
        %p155 = pneg %p96
        %p156 = pneg %p93
        %s157 = smul.u32 2, %s19
        %p158 = scmp.lt.s32.totalorder %s18, 1
        %s159 = scalar_select %p158, %s18, 1
        %p160 = scmp.lt.s32.totalorder %s157, 1
        %s161 = scalar_select %p160, %s157, 1
        %s162 = smul.addr %s159, 2
        %s163 = sadd.s32 %s161, %s162
        %s164 = smul.addr %s163, 4
        %s165 = scalar_lea.vmem %s2, %s164
        %p166 = scmp.lt.s32.totalorder %s18, 1
        %s167 = scalar_select %p166, %s18, 1
        %s168 = smul.addr %s167, 2
        %s169 = smul.addr %s168, 4
        %s170 = scalar_lea.vmem %s1, %s169
        %s171 = smul.u32 2, %s19
        %p172 = scmp.lt.s32.totalorder %s18, 1
        %s173 = scalar_select %p172, %s18, 1
        %p174 = scmp.lt.s32.totalorder %s171, 1
        %s175 = scalar_select %p174, %s171, 1
        %s176 = smul.addr %s173, 2
        %s177 = sadd.s32 %s175, %s176
        %s178 = smul.addr %s177, 4
        %s179 = scalar_lea.vmem %s2, %s178
        %s180 = smul.u32 2, %s19
        %v181 = vlaneseq
        %v182 = vand.u32 %v181, 127
        %v183 = vadd.s32 %v182, 128
        %s184 = smul.u32 %s19, 256
        %v185 = vstv %s184
        %v186 = vadd.s32 %v182, %v185
        %v187 = vadd.s32 %v183, %v185
        %v188 = vshra.s32 %v186, 4
        %v189 = vshra.s32 %v187, 4
        %v190 = vcvt.s32.f32 %v188
        %v191 = vcvt.s32.f32 %v189
        %v192 = vand.u32 %v186, 15
        %v193 = vand.u32 %v187, 15
        %v194 = vcvt.s32.f32 %v192
        %v195 = vcvt.s32.f32 %v193
        %s196 = smul.u32 %s18, 128
        %s197 = sld [smem:[#allocation2 + %s196]]
        %s198 = sadd.s32 %s196, 1
        %s199 = sld [smem:[#allocation2 + %s198]]
        %s200 = sadd.s32 %s196, 2
        %s201 = sld [smem:[#allocation2 + %s200]]
        %s202 = sadd.s32 %s196, 3
        %s203 = sld [smem:[#allocation2 + %s202]]
        %s204 = sadd.s32 %s196, 4
        %s205 = sld [smem:[#allocation2 + %s204]]
        %s206 = sadd.s32 %s196, 5
        %s207 = sld [smem:[#allocation2 + %s206]]
        %v208 = vmul.f32 %v194, 2.0
        %v209 = vmul.f32 %v195, 2.0
        %v210 = vadd.f32 %v208, 1.0
        %v211 = vadd.f32 %v209, 1.0
        %v212 = vrcp.pop 16.0
        %v213 = vmul.f32 %v210, %v212
        %v214 = vmul.f32 %v211, %v212
        %v215 = vsub.f32 %v213, 1.0
        %v216 = vsub.f32 %v214, 1.0
        %v217 = vmul.f32 %v190, 2.0
        %v218 = vmul.f32 %v191, 2.0
        %v219 = vadd.f32 %v217, 1.0
        %v220 = vadd.f32 %v218, 1.0
        %v221 = vmul.f32 %v219, %v212
        %v222 = vmul.f32 %v220, %v212
        %v223 = vsub.f32 %v221, 1.0
        %v224 = vsub.f32 %v222, 1.0
        %v225 = vstv %s197
        %v226 = vmul.f32 %v225, %v215
        %v227 = vmul.f32 %v225, %v216
        %v228 = vstv %s199
        %v229 = vmul.f32 %v228, %v223
        %v230 = vmul.f32 %v228, %v224
        %v231 = vadd.f32 %v226, %v229
        %v232 = vadd.f32 %v227, %v230
        %v233 = vstv %s201
        %v234 = vadd.f32 %v231, %v233
        %v235 = vadd.f32 %v232, %v233
        %v236 = vstv %s203
        %v237 = vmul.f32 %v236, %v215
        %v238 = vmul.f32 %v236, %v216
        %v239 = vstv %s205
        %v240 = vmul.f32 %v239, %v223
        %v241 = vmul.f32 %v239, %v224
        %v242 = vadd.f32 %v237, %v240
        %v243 = vadd.f32 %v238, %v241
        %v244 = vstv %s207
        %v245 = vadd.f32 %v242, %v244
        %v246 = vadd.f32 %v243, %v244
        %v247 = vadd.f32 %v234, 1.0
        %v248 = vadd.f32 %v235, 1.0
        %v249 = vmul.f32 %v247, 16.0
        %v250 = vmul.f32 %v248, 16.0
        %v251 = vsub.f32 %v249, 1.0
        %v252 = vsub.f32 %v250, 1.0
        %v253 = vmul.f32 %v251, 0.5
        %v254 = vmul.f32 %v252, 0.5
        %v255 = vadd.f32 %v245, 1.0
        %v256 = vadd.f32 %v246, 1.0
        %v257 = vmul.f32 %v255, 16.0
        %v258 = vmul.f32 %v256, 16.0
        %v259 = vsub.f32 %v257, 1.0
        %v260 = vsub.f32 %v258, 1.0
        %v261 = vmul.f32 %v259, 0.5
        %v262 = vmul.f32 %v260, 0.5
        %v263 = vfloor.f32 %v253
        %v264 = vfloor.f32 %v254
        %v265 = vfloor.f32 %v261
        %v266 = vfloor.f32 %v262
        %v267 = vsub.f32 %v253, %v263
        %v268 = vsub.f32 %v254, %v264
        %v269 = vsub.f32 1.0, %v267
        %v270 = vsub.f32 1.0, %v268
        %v271 = vsub.f32 %v261, %v265
        %v272 = vsub.f32 %v262, %v266
        %v273 = vsub.f32 1.0, %v271
        %v274 = vsub.f32 1.0, %v272
        %v275 = vcvt.f32.s32.to.zero.pseudo %v263
        %v276 = vcvt.f32.s32.to.zero.pseudo %v264
        %v277 = vcvt.f32.s32.to.zero.pseudo %v265
        %v278 = vcvt.f32.s32.to.zero.pseudo %v266
        %v279 = vmul.u32 %v277, 16
        %v280 = vmul.u32 %v278, 16
        %v281 = vadd.s32 %v279, %v275
        %v282 = vadd.s32 %v280, %v276
        %vm283 = vcmp.lt.s32.totalorder %v281, 0
        %v284 = vsub.s32 0, %v281
        %v285 = vsel %vm283, %v284, %v281
        %v286 = vshrl.u32 %v285, 8
        %v287 = vand.u32 %v285, 255
        %v288 = vsub.s32 0, %v287
        %v289 = vsel %vm283, %v288, %v287
        %vm290 = vcmp.lt.s32.totalorder %v282, 0
        %v291 = vsub.s32 0, %v282
        %v292 = vsel %vm290, %v291, %v282
        %v293 = vshrl.u32 %v292, 8
        %v294 = vand.u32 %v292, 255
        %v295 = vsub.s32 0, %v294
        %v296 = vsel %vm290, %v295, %v294
        %vm297 = vcmp.ne.s32.totalorder %v289, 0
        %vm298 = vcmp.ne.s32.totalorder %v296, 0
        %vm299 = vcmp.lt.s32.totalorder %v289, 0
        %vm300 = vcmp.lt.s32.totalorder %v296, 0
        %vm301 = vmand %vm299, %vm297
        %vm302 = vmand %vm300, %vm298
        %v303 = vadd.s32 %v289, 256
        %v304 = vadd.s32 %v296, 256
        %v305 = vsel %vm301, %v303, %v289
        %v306 = vsel %vm302, %v304, %v296
        %v307 = vlaneseq
        %v308 = vshrl.u32 %v307, 7
        %v309 = vadd.s32 %v308, 8
        %v310 = vadd.s32 %v308, 16
        %v311 = vadd.s32 %v308, 24
        %v312 = vadd.s32 %v308, 32
        %v313 = vadd.s32 %v308, 40
        %v314 = vadd.s32 %v308, 48
        %v315 = vadd.s32 %v308, 56
        %v316 = vadd.s32 %v308, 64
        %v317 = vadd.s32 %v308, 72
        %v318 = vadd.s32 %v308, 80
        %v319 = vadd.s32 %v308, 88
        %v320 = vadd.s32 %v308, 96
        %v321 = vadd.s32 %v308, 104
        %v322 = vadd.s32 %v308, 112
        %v323 = vadd.s32 %v308, 120
        %v324 = vadd.s32 %v308, 128
        %v325 = vadd.s32 %v308, 136
        %v326 = vadd.s32 %v308, 144
        %v327 = vadd.s32 %v308, 152
        %v328 = vadd.s32 %v308, 160
        %v329 = vadd.s32 %v308, 168
        %v330 = vadd.s32 %v308, 176
        %v331 = vadd.s32 %v308, 184
        %v332 = vadd.s32 %v308, 192
        %v333 = vadd.s32 %v308, 200
        %v334 = vadd.s32 %v308, 208
        %v335 = vadd.s32 %v308, 216
        %v336 = vadd.s32 %v308, 224
        %v337 = vadd.s32 %v308, 232
        %v338 = vadd.s32 %v308, 240
        %v339 = vadd.s32 %v308, 248
        %vm340 = vcmp.eq.s32.totalorder %v308, %v305
        %vm341 = vcmp.eq.s32.totalorder %v308, %v306
        %vm342 = vcmp.eq.s32.totalorder %v309, %v305
        %vm343 = vcmp.eq.s32.totalorder %v309, %v306
        %vm344 = vcmp.eq.s32.totalorder %v310, %v305
        %vm345 = vcmp.eq.s32.totalorder %v310, %v306
        %vm346 = vcmp.eq.s32.totalorder %v311, %v305
        %vm347 = vcmp.eq.s32.totalorder %v311, %v306
        %vm348 = vcmp.eq.s32.totalorder %v312, %v305
        %vm349 = vcmp.eq.s32.totalorder %v312, %v306
        %vm350 = vcmp.eq.s32.totalorder %v313, %v305
        %vm351 = vcmp.eq.s32.totalorder %v313, %v306
        %vm352 = vcmp.eq.s32.totalorder %v314, %v305
        %vm353 = vcmp.eq.s32.totalorder %v314, %v306
        %vm354 = vcmp.eq.s32.totalorder %v315, %v305
        %vm355 = vcmp.eq.s32.totalorder %v315, %v306
        %vm356 = vcmp.eq.s32.totalorder %v316, %v305
        %vm357 = vcmp.eq.s32.totalorder %v316, %v306
        %vm358 = vcmp.eq.s32.totalorder %v317, %v305
        %vm359 = vcmp.eq.s32.totalorder %v317, %v306
        %vm360 = vcmp.eq.s32.totalorder %v318, %v305
        %vm361 = vcmp.eq.s32.totalorder %v318, %v306
        %vm362 = vcmp.eq.s32.totalorder %v319, %v305
        %vm363 = vcmp.eq.s32.totalorder %v319, %v306
        %vm364 = vcmp.eq.s32.totalorder %v320, %v305
        %vm365 = vcmp.eq.s32.totalorder %v320, %v306
        %vm366 = vcmp.eq.s32.totalorder %v321, %v305
        %vm367 = vcmp.eq.s32.totalorder %v321, %v306
        %vm368 = vcmp.eq.s32.totalorder %v322, %v305
        %vm369 = vcmp.eq.s32.totalorder %v322, %v306
        %vm370 = vcmp.eq.s32.totalorder %v323, %v305
        %vm371 = vcmp.eq.s32.totalorder %v323, %v306
        %vm372 = vcmp.eq.s32.totalorder %v324, %v305
        %vm373 = vcmp.eq.s32.totalorder %v324, %v306
        %vm374 = vcmp.eq.s32.totalorder %v325, %v305
        %vm375 = vcmp.eq.s32.totalorder %v325, %v306
        %vm376 = vcmp.eq.s32.totalorder %v326, %v305
        %vm377 = vcmp.eq.s32.totalorder %v326, %v306
        %vm378 = vcmp.eq.s32.totalorder %v327, %v305
        %vm379 = vcmp.eq.s32.totalorder %v327, %v306
        %vm380 = vcmp.eq.s32.totalorder %v328, %v305
        %vm381 = vcmp.eq.s32.totalorder %v328, %v306
        %vm382 = vcmp.eq.s32.totalorder %v329, %v305
        %vm383 = vcmp.eq.s32.totalorder %v329, %v306
        %vm384 = vcmp.eq.s32.totalorder %v330, %v305
        %vm385 = vcmp.eq.s32.totalorder %v330, %v306
        %vm386 = vcmp.eq.s32.totalorder %v331, %v305
        %vm387 = vcmp.eq.s32.totalorder %v331, %v306
        %vm388 = vcmp.eq.s32.totalorder %v332, %v305
        %vm389 = vcmp.eq.s32.totalorder %v332, %v306
        %vm390 = vcmp.eq.s32.totalorder %v333, %v305
        %vm391 = vcmp.eq.s32.totalorder %v333, %v306
        %vm392 = vcmp.eq.s32.totalorder %v334, %v305
        %vm393 = vcmp.eq.s32.totalorder %v334, %v306
        %vm394 = vcmp.eq.s32.totalorder %v335, %v305
        %vm395 = vcmp.eq.s32.totalorder %v335, %v306
        %vm396 = vcmp.eq.s32.totalorder %v336, %v305
        %vm397 = vcmp.eq.s32.totalorder %v336, %v306
        %vm398 = vcmp.eq.s32.totalorder %v337, %v305
        %vm399 = vcmp.eq.s32.totalorder %v337, %v306
        %vm400 = vcmp.eq.s32.totalorder %v338, %v305
        %vm401 = vcmp.eq.s32.totalorder %v338, %v306
        %vm402 = vcmp.eq.s32.totalorder %v339, %v305
        %vm403 = vcmp.eq.s32.totalorder %v339, %v306
        %v404 = vsel %vm340, 1, 0
        %v405 = vsel %vm341, 1, 0
        %v406 = vsel %vm342, 1, 0
        %v407 = vsel %vm343, 1, 0
        %v408 = vsel %vm344, 1, 0
        %v409 = vsel %vm345, 1, 0
        %v410 = vsel %vm346, 1, 0
        %v411 = vsel %vm347, 1, 0
        %v412 = vsel %vm348, 1, 0
        %v413 = vsel %vm349, 1, 0
        %v414 = vsel %vm350, 1, 0
        %v415 = vsel %vm351, 1, 0
        %v416 = vsel %vm352, 1, 0
        %v417 = vsel %vm353, 1, 0
        %v418 = vsel %vm354, 1, 0
        %v419 = vsel %vm355, 1, 0
        %v420 = vsel %vm356, 1, 0
        %v421 = vsel %vm357, 1, 0
        %v422 = vsel %vm358, 1, 0
        %v423 = vsel %vm359, 1, 0
        %v424 = vsel %vm360, 1, 0
        %v425 = vsel %vm361, 1, 0
        %v426 = vsel %vm362, 1, 0
        %v427 = vsel %vm363, 1, 0
        %v428 = vsel %vm364, 1, 0
        %v429 = vsel %vm365, 1, 0
        %v430 = vsel %vm366, 1, 0
        %v431 = vsel %vm367, 1, 0
        %v432 = vsel %vm368, 1, 0
        %v433 = vsel %vm369, 1, 0
        %v434 = vsel %vm370, 1, 0
        %v435 = vsel %vm371, 1, 0
        %v436 = vsel %vm372, 1, 0
        %v437 = vsel %vm373, 1, 0
        %v438 = vsel %vm374, 1, 0
        %v439 = vsel %vm375, 1, 0
        %v440 = vsel %vm376, 1, 0
        %v441 = vsel %vm377, 1, 0
        %v442 = vsel %vm378, 1, 0
        %v443 = vsel %vm379, 1, 0
        %v444 = vsel %vm380, 1, 0
        %v445 = vsel %vm381, 1, 0
        %v446 = vsel %vm382, 1, 0
        %v447 = vsel %vm383, 1, 0
        %v448 = vsel %vm384, 1, 0
        %v449 = vsel %vm385, 1, 0
        %v450 = vsel %vm386, 1, 0
        %v451 = vsel %vm387, 1, 0
        %v452 = vsel %vm388, 1, 0
        %v453 = vsel %vm389, 1, 0
        %v454 = vsel %vm390, 1, 0
        %v455 = vsel %vm391, 1, 0
        %v456 = vsel %vm392, 1, 0
        %v457 = vsel %vm393, 1, 0
        %v458 = vsel %vm394, 1, 0
        %v459 = vsel %vm395, 1, 0
        %v460 = vsel %vm396, 1, 0
        %v461 = vsel %vm397, 1, 0
        %v462 = vsel %vm398, 1, 0
        %v463 = vsel %vm399, 1, 0
        %v464 = vsel %vm400, 1, 0
        %v465 = vsel %vm401, 1, 0
        %v466 = vsel %vm402, 1, 0
        %v467 = vsel %vm403, 1, 0
        %v468 = vcvt.s32.f32 %v404
        %v469 = vcvt.s32.f32 %v405
        %v470 = vcvt.s32.f32 %v406
        %v471 = vcvt.s32.f32 %v407
        %v472 = vcvt.s32.f32 %v408
        %v473 = vcvt.s32.f32 %v409
        %v474 = vcvt.s32.f32 %v410
        %v475 = vcvt.s32.f32 %v411
        %v476 = vcvt.s32.f32 %v412
        %v477 = vcvt.s32.f32 %v413
        %v478 = vcvt.s32.f32 %v414
        %v479 = vcvt.s32.f32 %v415
        %v480 = vcvt.s32.f32 %v416
        %v481 = vcvt.s32.f32 %v417
        %v482 = vcvt.s32.f32 %v418
        %v483 = vcvt.s32.f32 %v419
        %v484 = vcvt.s32.f32 %v420
        %v485 = vcvt.s32.f32 %v421
        %v486 = vcvt.s32.f32 %v422
        %v487 = vcvt.s32.f32 %v423
        %v488 = vcvt.s32.f32 %v424
        %v489 = vcvt.s32.f32 %v425
        %v490 = vcvt.s32.f32 %v426
        %v491 = vcvt.s32.f32 %v427
        %v492 = vcvt.s32.f32 %v428
        %v493 = vcvt.s32.f32 %v429
        %v494 = vcvt.s32.f32 %v430
        %v495 = vcvt.s32.f32 %v431
        %v496 = vcvt.s32.f32 %v432
        %v497 = vcvt.s32.f32 %v433
        %v498 = vcvt.s32.f32 %v434
        %v499 = vcvt.s32.f32 %v435
        %v500 = vcvt.s32.f32 %v436
        %v501 = vcvt.s32.f32 %v437
        %v502 = vcvt.s32.f32 %v438
        %v503 = vcvt.s32.f32 %v439
        %v504 = vcvt.s32.f32 %v440
        %v505 = vcvt.s32.f32 %v441
        %v506 = vcvt.s32.f32 %v442
        %v507 = vcvt.s32.f32 %v443
        %v508 = vcvt.s32.f32 %v444
        %v509 = vcvt.s32.f32 %v445
        %v510 = vcvt.s32.f32 %v446
        %v511 = vcvt.s32.f32 %v447
        %v512 = vcvt.s32.f32 %v448
        %v513 = vcvt.s32.f32 %v449
        %v514 = vcvt.s32.f32 %v450
        %v515 = vcvt.s32.f32 %v451
        %v516 = vcvt.s32.f32 %v452
        %v517 = vcvt.s32.f32 %v453
        %v518 = vcvt.s32.f32 %v454
        %v519 = vcvt.s32.f32 %v455
        %v520 = vcvt.s32.f32 %v456
        %v521 = vcvt.s32.f32 %v457
        %v522 = vcvt.s32.f32 %v458
        %v523 = vcvt.s32.f32 %v459
        %v524 = vcvt.s32.f32 %v460
        %v525 = vcvt.s32.f32 %v461
        %v526 = vcvt.s32.f32 %v462
        %v527 = vcvt.s32.f32 %v463
        %v528 = vcvt.s32.f32 %v464
        %v529 = vcvt.s32.f32 %v465
        %v530 = vcvt.s32.f32 %v466
        %v531 = vcvt.s32.f32 %v467
        %v532 = vmul.f32 %v273, %v269
        %v533 = vmul.f32 %v274, %v270
        %vm534 = vcmp.ge.s32.totalorder %v277, 0
        %vm535 = vcmp.ge.s32.totalorder %v278, 0
        %vm536 = vcmp.lt.s32.totalorder %v277, 16
        %vm537 = vcmp.lt.s32.totalorder %v278, 16
        %vm538 = vmand %vm534, %vm536
        %vm539 = vmand %vm535, %vm537
        %vm540 = vcmp.ge.s32.totalorder %v275, 0
        %vm541 = vcmp.ge.s32.totalorder %v276, 0
        %vm542 = vmand %vm538, %vm540
        %vm543 = vmand %vm539, %vm541
        %vm544 = vcmp.lt.s32.totalorder %v275, 16
        %vm545 = vcmp.lt.s32.totalorder %v276, 16
        %vm546 = vmand %vm542, %vm544
        %vm547 = vmand %vm543, %vm545
        %v548 = vsel %vm546, %v532, 0.0
        %v549 = vsel %vm547, %v533, 0.0
        %v550 = vmul.f32 %v468, %v548
        %v551 = vmul.f32 %v469, %v549
        %v552 = vmul.f32 %v470, %v548
        %v553 = vmul.f32 %v471, %v549
        %v554 = vmul.f32 %v472, %v548
        %v555 = vmul.f32 %v473, %v549
        %v556 = vmul.f32 %v474, %v548
        %v557 = vmul.f32 %v475, %v549
        %v558 = vmul.f32 %v476, %v548
        %v559 = vmul.f32 %v477, %v549
        %v560 = vmul.f32 %v478, %v548
        %v561 = vmul.f32 %v479, %v549
        %v562 = vmul.f32 %v480, %v548
        %v563 = vmul.f32 %v481, %v549
        %v564 = vmul.f32 %v482, %v548
        %v565 = vmul.f32 %v483, %v549
        %v566 = vmul.f32 %v484, %v548
        %v567 = vmul.f32 %v485, %v549
        %v568 = vmul.f32 %v486, %v548
        %v569 = vmul.f32 %v487, %v549
        %v570 = vmul.f32 %v488, %v548
        %v571 = vmul.f32 %v489, %v549
        %v572 = vmul.f32 %v490, %v548
        %v573 = vmul.f32 %v491, %v549
        %v574 = vmul.f32 %v492, %v548
        %v575 = vmul.f32 %v493, %v549
        %v576 = vmul.f32 %v494, %v548
        %v577 = vmul.f32 %v495, %v549
        %v578 = vmul.f32 %v496, %v548
        %v579 = vmul.f32 %v497, %v549
        %v580 = vmul.f32 %v498, %v548
        %v581 = vmul.f32 %v499, %v549
        %v582 = vmul.f32 %v500, %v548
        %v583 = vmul.f32 %v501, %v549
        %v584 = vmul.f32 %v502, %v548
        %v585 = vmul.f32 %v503, %v549
        %v586 = vmul.f32 %v504, %v548
        %v587 = vmul.f32 %v505, %v549
        %v588 = vmul.f32 %v506, %v548
        %v589 = vmul.f32 %v507, %v549
        %v590 = vmul.f32 %v508, %v548
        %v591 = vmul.f32 %v509, %v549
        %v592 = vmul.f32 %v510, %v548
        %v593 = vmul.f32 %v511, %v549
        %v594 = vmul.f32 %v512, %v548
        %v595 = vmul.f32 %v513, %v549
        %v596 = vmul.f32 %v514, %v548
        %v597 = vmul.f32 %v515, %v549
        %v598 = vmul.f32 %v516, %v548
        %v599 = vmul.f32 %v517, %v549
        %v600 = vmul.f32 %v518, %v548
        %v601 = vmul.f32 %v519, %v549
        %v602 = vmul.f32 %v520, %v548
        %v603 = vmul.f32 %v521, %v549
        %v604 = vmul.f32 %v522, %v548
        %v605 = vmul.f32 %v523, %v549
        %v606 = vmul.f32 %v524, %v548
        %v607 = vmul.f32 %v525, %v549
        %v608 = vmul.f32 %v526, %v548
        %v609 = vmul.f32 %v527, %v549
        %v610 = vmul.f32 %v528, %v548
        %v611 = vmul.f32 %v529, %v549
        %v612 = vmul.f32 %v530, %v548
        %v613 = vmul.f32 %v531, %v549
        %v614 = vmul.f32 %v273, %v267
        %v615 = vmul.f32 %v274, %v268
        %v616 = vmul.f32 %v271, %v269
        %v617 = vmul.f32 %v272, %v270
        %v618 = vmul.f32 %v271, %v267
        %v619 = vmul.f32 %v272, %v268
        %v620 = vrot.slane %v468, 7
        %v621 = vrot.slane %v469, 7
        %v622 = vrot.slane %v470, 7
        %v623 = vrot.slane %v471, 7
        %v624 = vrot.slane %v472, 7
        %v625 = vrot.slane %v473, 7
        %v626 = vrot.slane %v474, 7
        %v627 = vrot.slane %v475, 7
        %v628 = vrot.slane %v476, 7
        %v629 = vrot.slane %v477, 7
        %v630 = vrot.slane %v478, 7
        %v631 = vrot.slane %v479, 7
        %v632 = vrot.slane %v480, 7
        %v633 = vrot.slane %v481, 7
        %v634 = vrot.slane %v482, 7
        %v635 = vrot.slane %v483, 7
        %v636 = vrot.slane %v484, 7
        %v637 = vrot.slane %v485, 7
        %v638 = vrot.slane %v486, 7
        %v639 = vrot.slane %v487, 7
        %v640 = vrot.slane %v488, 7
        %v641 = vrot.slane %v489, 7
        %v642 = vrot.slane %v490, 7
        %v643 = vrot.slane %v491, 7
        %v644 = vrot.slane %v492, 7
        %v645 = vrot.slane %v493, 7
        %v646 = vrot.slane %v494, 7
        %v647 = vrot.slane %v495, 7
        %v648 = vrot.slane %v496, 7
        %v649 = vrot.slane %v497, 7
        %v650 = vrot.slane %v498, 7
        %v651 = vrot.slane %v499, 7
        %v652 = vrot.slane %v500, 7
        %v653 = vrot.slane %v501, 7
        %v654 = vrot.slane %v502, 7
        %v655 = vrot.slane %v503, 7
        %v656 = vrot.slane %v504, 7
        %v657 = vrot.slane %v505, 7
        %v658 = vrot.slane %v506, 7
        %v659 = vrot.slane %v507, 7
        %v660 = vrot.slane %v508, 7
        %v661 = vrot.slane %v509, 7
        %v662 = vrot.slane %v510, 7
        %v663 = vrot.slane %v511, 7
        %v664 = vrot.slane %v512, 7
        %v665 = vrot.slane %v513, 7
        %v666 = vrot.slane %v514, 7
        %v667 = vrot.slane %v515, 7
        %v668 = vrot.slane %v516, 7
        %v669 = vrot.slane %v517, 7
        %v670 = vrot.slane %v518, 7
        %v671 = vrot.slane %v519, 7
        %v672 = vrot.slane %v520, 7
        %v673 = vrot.slane %v521, 7
        %v674 = vrot.slane %v522, 7
        %v675 = vrot.slane %v523, 7
        %v676 = vrot.slane %v524, 7
        %v677 = vrot.slane %v525, 7
        %v678 = vrot.slane %v526, 7
        %v679 = vrot.slane %v527, 7
        %v680 = vrot.slane %v528, 7
        %v681 = vrot.slane %v529, 7
        %v682 = vrot.slane %v530, 7
        %v683 = vrot.slane %v531, 7
        %vm684 = vcmp.lt.s32.totalorder %v308, 1
        %v685 = vsel %vm684, %v680, %v682
        %v686 = vsel %vm684, %v681, %v683
        %v687 = vsel %vm684, %v678, %v680
        %v688 = vsel %vm684, %v679, %v681
        %v689 = vsel %vm684, %v676, %v678
        %v690 = vsel %vm684, %v677, %v679
        %v691 = vsel %vm684, %v674, %v676
        %v692 = vsel %vm684, %v675, %v677
        %v693 = vsel %vm684, %v672, %v674
        %v694 = vsel %vm684, %v673, %v675
        %v695 = vsel %vm684, %v670, %v672
        %v696 = vsel %vm684, %v671, %v673
        %v697 = vsel %vm684, %v668, %v670
        %v698 = vsel %vm684, %v669, %v671
        %v699 = vsel %vm684, %v666, %v668
        %v700 = vsel %vm684, %v667, %v669
        %v701 = vsel %vm684, %v664, %v666
        %v702 = vsel %vm684, %v665, %v667
        %v703 = vsel %vm684, %v662, %v664
        %v704 = vsel %vm684, %v663, %v665
        %v705 = vsel %vm684, %v660, %v662
        %v706 = vsel %vm684, %v661, %v663
        %v707 = vsel %vm684, %v658, %v660
        %v708 = vsel %vm684, %v659, %v661
        %v709 = vsel %vm684, %v656, %v658
        %v710 = vsel %vm684, %v657, %v659
        %v711 = vsel %vm684, %v654, %v656
        %v712 = vsel %vm684, %v655, %v657
        %v713 = vsel %vm684, %v652, %v654
        %v714 = vsel %vm684, %v653, %v655
        %v715 = vsel %vm684, %v650, %v652
        %v716 = vsel %vm684, %v651, %v653
        %v717 = vsel %vm684, %v648, %v650
        %v718 = vsel %vm684, %v649, %v651
        %v719 = vsel %vm684, %v646, %v648
        %v720 = vsel %vm684, %v647, %v649
        %v721 = vsel %vm684, %v644, %v646
        %v722 = vsel %vm684, %v645, %v647
        %v723 = vsel %vm684, %v642, %v644
        %v724 = vsel %vm684, %v643, %v645
        %v725 = vsel %vm684, %v640, %v642
        %v726 = vsel %vm684, %v641, %v643
        %v727 = vsel %vm684, %v638, %v640
        %v728 = vsel %vm684, %v639, %v641
        %v729 = vsel %vm684, %v636, %v638
        %v730 = vsel %vm684, %v637, %v639
        %v731 = vsel %vm684, %v634, %v636
        %v732 = vsel %vm684, %v635, %v637
        %v733 = vsel %vm684, %v632, %v634
        %v734 = vsel %vm684, %v633, %v635
        %v735 = vsel %vm684, %v630, %v632
        %v736 = vsel %vm684, %v631, %v633
        %v737 = vsel %vm684, %v628, %v630
        %v738 = vsel %vm684, %v629, %v631
        %v739 = vsel %vm684, %v626, %v628
        %v740 = vsel %vm684, %v627, %v629
        %v741 = vsel %vm684, %v624, %v626
        %v742 = vsel %vm684, %v625, %v627
        %v743 = vsel %vm684, %v622, %v624
        %v744 = vsel %vm684, %v623, %v625
        %v745 = vsel %vm684, %v620, %v622
        %v746 = vsel %vm684, %v621, %v623
        %v747 = vsel %vm684, %v682, %v620
        %v748 = vsel %vm684, %v683, %v621
        %v749 = vadd.s32 %v275, 1
        %v750 = vadd.s32 %v276, 1
        %vm751 = vcmp.ge.s32.totalorder %v749, 0
        %vm752 = vcmp.ge.s32.totalorder %v750, 0
        %vm753 = vmand %vm538, %vm751
        %vm754 = vmand %vm539, %vm752
        %vm755 = vcmp.lt.s32.totalorder %v749, 16
        %vm756 = vcmp.lt.s32.totalorder %v750, 16
        %vm757 = vmand %vm753, %vm755
        %vm758 = vmand %vm754, %vm756
        %v759 = vsel %vm757, %v614, 0.0
        %v760 = vsel %vm758, %v615, 0.0
        %v761 = vmul.f32 %v747, %v759
        %v762 = vmul.f32 %v748, %v760
        %v763 = vmul.f32 %v745, %v759
        %v764 = vmul.f32 %v746, %v760
        %v765 = vmul.f32 %v743, %v759
        %v766 = vmul.f32 %v744, %v760
        %v767 = vmul.f32 %v741, %v759
        %v768 = vmul.f32 %v742, %v760
        %v769 = vmul.f32 %v739, %v759
        %v770 = vmul.f32 %v740, %v760
        %v771 = vmul.f32 %v737, %v759
        %v772 = vmul.f32 %v738, %v760
        %v773 = vmul.f32 %v735, %v759
        %v774 = vmul.f32 %v736, %v760
        %v775 = vmul.f32 %v733, %v759
        %v776 = vmul.f32 %v734, %v760
        %v777 = vmul.f32 %v731, %v759
        %v778 = vmul.f32 %v732, %v760
        %v779 = vmul.f32 %v729, %v759
        %v780 = vmul.f32 %v730, %v760
        %v781 = vmul.f32 %v727, %v759
        %v782 = vmul.f32 %v728, %v760
        %v783 = vmul.f32 %v725, %v759
        %v784 = vmul.f32 %v726, %v760
        %v785 = vmul.f32 %v723, %v759
        %v786 = vmul.f32 %v724, %v760
        %v787 = vmul.f32 %v721, %v759
        %v788 = vmul.f32 %v722, %v760
        %v789 = vmul.f32 %v719, %v759
        %v790 = vmul.f32 %v720, %v760
        %v791 = vmul.f32 %v717, %v759
        %v792 = vmul.f32 %v718, %v760
        %v793 = vmul.f32 %v715, %v759
        %v794 = vmul.f32 %v716, %v760
        %v795 = vmul.f32 %v713, %v759
        %v796 = vmul.f32 %v714, %v760
        %v797 = vmul.f32 %v711, %v759
        %v798 = vmul.f32 %v712, %v760
        %v799 = vmul.f32 %v709, %v759
        %v800 = vmul.f32 %v710, %v760
        %v801 = vmul.f32 %v707, %v759
        %v802 = vmul.f32 %v708, %v760
        %v803 = vmul.f32 %v705, %v759
        %v804 = vmul.f32 %v706, %v760
        %v805 = vmul.f32 %v703, %v759
        %v806 = vmul.f32 %v704, %v760
        %v807 = vmul.f32 %v701, %v759
        %v808 = vmul.f32 %v702, %v760
        %v809 = vmul.f32 %v699, %v759
        %v810 = vmul.f32 %v700, %v760
        %v811 = vmul.f32 %v697, %v759
        %v812 = vmul.f32 %v698, %v760
        %v813 = vmul.f32 %v695, %v759
        %v814 = vmul.f32 %v696, %v760
        %v815 = vmul.f32 %v693, %v759
        %v816 = vmul.f32 %v694, %v760
        %v817 = vmul.f32 %v691, %v759
        %v818 = vmul.f32 %v692, %v760
        %v819 = vmul.f32 %v689, %v759
        %v820 = vmul.f32 %v690, %v760
        %v821 = vmul.f32 %v687, %v759
        %v822 = vmul.f32 %v688, %v760
        %v823 = vmul.f32 %v685, %v759
        %v824 = vmul.f32 %v686, %v760
        %v825 = vadd.f32 %v550, %v761
        %v826 = vadd.f32 %v551, %v762
        %v827 = vadd.f32 %v552, %v763
        %v828 = vadd.f32 %v553, %v764
        %v829 = vadd.f32 %v554, %v765
        %v830 = vadd.f32 %v555, %v766
        %v831 = vadd.f32 %v556, %v767
        %v832 = vadd.f32 %v557, %v768
        %v833 = vadd.f32 %v558, %v769
        %v834 = vadd.f32 %v559, %v770
        %v835 = vadd.f32 %v560, %v771
        %v836 = vadd.f32 %v561, %v772
        %v837 = vadd.f32 %v562, %v773
        %v838 = vadd.f32 %v563, %v774
        %v839 = vadd.f32 %v564, %v775
        %v840 = vadd.f32 %v565, %v776
        %v841 = vadd.f32 %v566, %v777
        %v842 = vadd.f32 %v567, %v778
        %v843 = vadd.f32 %v568, %v779
        %v844 = vadd.f32 %v569, %v780
        %v845 = vadd.f32 %v570, %v781
        %v846 = vadd.f32 %v571, %v782
        %v847 = vadd.f32 %v572, %v783
        %v848 = vadd.f32 %v573, %v784
        %v849 = vadd.f32 %v574, %v785
        %v850 = vadd.f32 %v575, %v786
        %v851 = vadd.f32 %v576, %v787
        %v852 = vadd.f32 %v577, %v788
        %v853 = vadd.f32 %v578, %v789
        %v854 = vadd.f32 %v579, %v790
        %v855 = vadd.f32 %v580, %v791
        %v856 = vadd.f32 %v581, %v792
        %v857 = vadd.f32 %v582, %v793
        %v858 = vadd.f32 %v583, %v794
        %v859 = vadd.f32 %v584, %v795
        %v860 = vadd.f32 %v585, %v796
        %v861 = vadd.f32 %v586, %v797
        %v862 = vadd.f32 %v587, %v798
        %v863 = vadd.f32 %v588, %v799
        %v864 = vadd.f32 %v589, %v800
        %v865 = vadd.f32 %v590, %v801
        %v866 = vadd.f32 %v591, %v802
        %v867 = vadd.f32 %v592, %v803
        %v868 = vadd.f32 %v593, %v804
        %v869 = vadd.f32 %v594, %v805
        %v870 = vadd.f32 %v595, %v806
        %v871 = vadd.f32 %v596, %v807
        %v872 = vadd.f32 %v597, %v808
        %v873 = vadd.f32 %v598, %v809
        %v874 = vadd.f32 %v599, %v810
        %v875 = vadd.f32 %v600, %v811
        %v876 = vadd.f32 %v601, %v812
        %v877 = vadd.f32 %v602, %v813
        %v878 = vadd.f32 %v603, %v814
        %v879 = vadd.f32 %v604, %v815
        %v880 = vadd.f32 %v605, %v816
        %v881 = vadd.f32 %v606, %v817
        %v882 = vadd.f32 %v607, %v818
        %v883 = vadd.f32 %v608, %v819
        %v884 = vadd.f32 %v609, %v820
        %v885 = vadd.f32 %v610, %v821
        %v886 = vadd.f32 %v611, %v822
        %v887 = vadd.f32 %v612, %v823
        %v888 = vadd.f32 %v613, %v824
        %v889 = vadd.s32 %v277, 1
        %v890 = vadd.s32 %v278, 1
        %vm891 = vcmp.ge.s32.totalorder %v889, 0
        %vm892 = vcmp.ge.s32.totalorder %v890, 0
        %vm893 = vcmp.lt.s32.totalorder %v889, 16
        %vm894 = vcmp.lt.s32.totalorder %v890, 16
        %vm895 = vmand %vm891, %vm893
        %vm896 = vmand %vm892, %vm894
        %vm897 = vmand %vm895, %vm540
        %vm898 = vmand %vm896, %vm541
        %vm899 = vmand %vm897, %vm544
        %vm900 = vmand %vm898, %vm545
        %v901 = vsel %vm899, %v616, 0.0
        %v902 = vsel %vm900, %v617, 0.0
        %v903 = vmul.f32 %v528, %v901
        %v904 = vmul.f32 %v529, %v902
        %v905 = vmul.f32 %v530, %v901
        %v906 = vmul.f32 %v531, %v902
        %v907 = vmul.f32 %v468, %v901
        %v908 = vmul.f32 %v469, %v902
        %v909 = vmul.f32 %v470, %v901
        %v910 = vmul.f32 %v471, %v902
        %v911 = vmul.f32 %v472, %v901
        %v912 = vmul.f32 %v473, %v902
        %v913 = vmul.f32 %v474, %v901
        %v914 = vmul.f32 %v475, %v902
        %v915 = vmul.f32 %v476, %v901
        %v916 = vmul.f32 %v477, %v902
        %v917 = vmul.f32 %v478, %v901
        %v918 = vmul.f32 %v479, %v902
        %v919 = vmul.f32 %v480, %v901
        %v920 = vmul.f32 %v481, %v902
        %v921 = vmul.f32 %v482, %v901
        %v922 = vmul.f32 %v483, %v902
        %v923 = vmul.f32 %v484, %v901
        %v924 = vmul.f32 %v485, %v902
        %v925 = vmul.f32 %v486, %v901
        %v926 = vmul.f32 %v487, %v902
        %v927 = vmul.f32 %v488, %v901
        %v928 = vmul.f32 %v489, %v902
        %v929 = vmul.f32 %v490, %v901
        %v930 = vmul.f32 %v491, %v902
        %v931 = vmul.f32 %v492, %v901
        %v932 = vmul.f32 %v493, %v902
        %v933 = vmul.f32 %v494, %v901
        %v934 = vmul.f32 %v495, %v902
        %v935 = vmul.f32 %v496, %v901
        %v936 = vmul.f32 %v497, %v902
        %v937 = vmul.f32 %v498, %v901
        %v938 = vmul.f32 %v499, %v902
        %v939 = vmul.f32 %v500, %v901
        %v940 = vmul.f32 %v501, %v902
        %v941 = vmul.f32 %v502, %v901
        %v942 = vmul.f32 %v503, %v902
        %v943 = vmul.f32 %v504, %v901
        %v944 = vmul.f32 %v505, %v902
        %v945 = vmul.f32 %v506, %v901
        %v946 = vmul.f32 %v507, %v902
        %v947 = vmul.f32 %v508, %v901
        %v948 = vmul.f32 %v509, %v902
        %v949 = vmul.f32 %v510, %v901
        %v950 = vmul.f32 %v511, %v902
        %v951 = vmul.f32 %v512, %v901
        %v952 = vmul.f32 %v513, %v902
        %v953 = vmul.f32 %v514, %v901
        %v954 = vmul.f32 %v515, %v902
        %v955 = vmul.f32 %v516, %v901
        %v956 = vmul.f32 %v517, %v902
        %v957 = vmul.f32 %v518, %v901
        %v958 = vmul.f32 %v519, %v902
        %v959 = vmul.f32 %v520, %v901
        %v960 = vmul.f32 %v521, %v902
        %v961 = vmul.f32 %v522, %v901
        %v962 = vmul.f32 %v523, %v902
        %v963 = vmul.f32 %v524, %v901
        %v964 = vmul.f32 %v525, %v902
        %v965 = vmul.f32 %v526, %v901
        %v966 = vmul.f32 %v527, %v902
        %v967 = vadd.f32 %v825, %v903
        %v968 = vadd.f32 %v826, %v904
        %v969 = vadd.f32 %v827, %v905
        %v970 = vadd.f32 %v828, %v906
        %v971 = vadd.f32 %v829, %v907
        %v972 = vadd.f32 %v830, %v908
        %v973 = vadd.f32 %v831, %v909
        %v974 = vadd.f32 %v832, %v910
        %v975 = vadd.f32 %v833, %v911
        %v976 = vadd.f32 %v834, %v912
        %v977 = vadd.f32 %v835, %v913
        %v978 = vadd.f32 %v836, %v914
        %v979 = vadd.f32 %v837, %v915
        %v980 = vadd.f32 %v838, %v916
        %v981 = vadd.f32 %v839, %v917
        %v982 = vadd.f32 %v840, %v918
        %v983 = vadd.f32 %v841, %v919
        %v984 = vadd.f32 %v842, %v920
        %v985 = vadd.f32 %v843, %v921
        %v986 = vadd.f32 %v844, %v922
        %v987 = vadd.f32 %v845, %v923
        %v988 = vadd.f32 %v846, %v924
        %v989 = vadd.f32 %v847, %v925
        %v990 = vadd.f32 %v848, %v926
        %v991 = vadd.f32 %v849, %v927
        %v992 = vadd.f32 %v850, %v928
        %v993 = vadd.f32 %v851, %v929
        %v994 = vadd.f32 %v852, %v930
        %v995 = vadd.f32 %v853, %v931
        %v996 = vadd.f32 %v854, %v932
        %v997 = vadd.f32 %v855, %v933
        %v998 = vadd.f32 %v856, %v934
        %v999 = vadd.f32 %v857, %v935
        %v1000 = vadd.f32 %v858, %v936
        %v1001 = vadd.f32 %v859, %v937
        %v1002 = vadd.f32 %v860, %v938
        %v1003 = vadd.f32 %v861, %v939
        %v1004 = vadd.f32 %v862, %v940
        %v1005 = vadd.f32 %v863, %v941
        %v1006 = vadd.f32 %v864, %v942
        %v1007 = vadd.f32 %v865, %v943
        %v1008 = vadd.f32 %v866, %v944
        %v1009 = vadd.f32 %v867, %v945
        %v1010 = vadd.f32 %v868, %v946
        %v1011 = vadd.f32 %v869, %v947
        %v1012 = vadd.f32 %v870, %v948
        %v1013 = vadd.f32 %v871, %v949
        %v1014 = vadd.f32 %v872, %v950
        %v1015 = vadd.f32 %v873, %v951
        %v1016 = vadd.f32 %v874, %v952
        %v1017 = vadd.f32 %v875, %v953
        %v1018 = vadd.f32 %v876, %v954
        %v1019 = vadd.f32 %v877, %v955
        %v1020 = vadd.f32 %v878, %v956
        %v1021 = vadd.f32 %v879, %v957
        %v1022 = vadd.f32 %v880, %v958
        %v1023 = vadd.f32 %v881, %v959
        %v1024 = vadd.f32 %v882, %v960
        %v1025 = vadd.f32 %v883, %v961
        %v1026 = vadd.f32 %v884, %v962
        %v1027 = vadd.f32 %v885, %v963
        %v1028 = vadd.f32 %v886, %v964
        %v1029 = vadd.f32 %v887, %v965
        %v1030 = vadd.f32 %v888, %v966
        %vm1031 = vmand %vm895, %vm751
        %vm1032 = vmand %vm896, %vm752
        %vm1033 = vmand %vm1031, %vm755
        %vm1034 = vmand %vm1032, %vm756
        %v1035 = vsel %vm1033, %v618, 0.0
        %v1036 = vsel %vm1034, %v619, 0.0
        %v1037 = vmul.f32 %v687, %v1035
        %v1038 = vmul.f32 %v688, %v1036
        %v1039 = vmul.f32 %v685, %v1035
        %v1040 = vmul.f32 %v686, %v1036
        %v1041 = vmul.f32 %v747, %v1035
        %v1042 = vmul.f32 %v748, %v1036
        %v1043 = vmul.f32 %v745, %v1035
        %v1044 = vmul.f32 %v746, %v1036
        %v1045 = vmul.f32 %v743, %v1035
        %v1046 = vmul.f32 %v744, %v1036
        %v1047 = vmul.f32 %v741, %v1035
        %v1048 = vmul.f32 %v742, %v1036
        %v1049 = vmul.f32 %v739, %v1035
        %v1050 = vmul.f32 %v740, %v1036
        %v1051 = vmul.f32 %v737, %v1035
        %v1052 = vmul.f32 %v738, %v1036
        %v1053 = vmul.f32 %v735, %v1035
        %v1054 = vmul.f32 %v736, %v1036
        %v1055 = vmul.f32 %v733, %v1035
        %v1056 = vmul.f32 %v734, %v1036
        %v1057 = vmul.f32 %v731, %v1035
        %v1058 = vmul.f32 %v732, %v1036
        %v1059 = vmul.f32 %v729, %v1035
        %v1060 = vmul.f32 %v730, %v1036
        %v1061 = vmul.f32 %v727, %v1035
        %v1062 = vmul.f32 %v728, %v1036
        %v1063 = vmul.f32 %v725, %v1035
        %v1064 = vmul.f32 %v726, %v1036
        %v1065 = vmul.f32 %v723, %v1035
        %v1066 = vmul.f32 %v724, %v1036
        %v1067 = vmul.f32 %v721, %v1035
        %v1068 = vmul.f32 %v722, %v1036
        %v1069 = vmul.f32 %v719, %v1035
        %v1070 = vmul.f32 %v720, %v1036
        %v1071 = vmul.f32 %v717, %v1035
        %v1072 = vmul.f32 %v718, %v1036
        %v1073 = vmul.f32 %v715, %v1035
        %v1074 = vmul.f32 %v716, %v1036
        %v1075 = vmul.f32 %v713, %v1035
        %v1076 = vmul.f32 %v714, %v1036
        %v1077 = vmul.f32 %v711, %v1035
        %v1078 = vmul.f32 %v712, %v1036
        %v1079 = vmul.f32 %v709, %v1035
        %v1080 = vmul.f32 %v710, %v1036
        %v1081 = vmul.f32 %v707, %v1035
        %v1082 = vmul.f32 %v708, %v1036
        %v1083 = vmul.f32 %v705, %v1035
        %v1084 = vmul.f32 %v706, %v1036
        %v1085 = vmul.f32 %v703, %v1035
        %v1086 = vmul.f32 %v704, %v1036
        %v1087 = vmul.f32 %v701, %v1035
        %v1088 = vmul.f32 %v702, %v1036
        %v1089 = vmul.f32 %v699, %v1035
        %v1090 = vmul.f32 %v700, %v1036
        %v1091 = vmul.f32 %v697, %v1035
        %v1092 = vmul.f32 %v698, %v1036
        %v1093 = vmul.f32 %v695, %v1035
        %v1094 = vmul.f32 %v696, %v1036
        %v1095 = vmul.f32 %v693, %v1035
        %v1096 = vmul.f32 %v694, %v1036
        %v1097 = vmul.f32 %v691, %v1035
        %v1098 = vmul.f32 %v692, %v1036
        %v1099 = vmul.f32 %v689, %v1035
        %v1100 = vmul.f32 %v690, %v1036
        %v1101 = vadd.f32 %v967, %v1037
        %v1102 = vadd.f32 %v968, %v1038
        %v1103 = vadd.f32 %v969, %v1039
        %v1104 = vadd.f32 %v970, %v1040
        %v1105 = vadd.f32 %v971, %v1041
        %v1106 = vadd.f32 %v972, %v1042
        %v1107 = vadd.f32 %v973, %v1043
        %v1108 = vadd.f32 %v974, %v1044
        %v1109 = vadd.f32 %v975, %v1045
        %v1110 = vadd.f32 %v976, %v1046
        %v1111 = vadd.f32 %v977, %v1047
        %v1112 = vadd.f32 %v978, %v1048
        %v1113 = vadd.f32 %v979, %v1049
        %v1114 = vadd.f32 %v980, %v1050
        %v1115 = vadd.f32 %v981, %v1051
        %v1116 = vadd.f32 %v982, %v1052
        %v1117 = vadd.f32 %v983, %v1053
        %v1118 = vadd.f32 %v984, %v1054
        %v1119 = vadd.f32 %v985, %v1055
        %v1120 = vadd.f32 %v986, %v1056
        %v1121 = vadd.f32 %v987, %v1057
        %v1122 = vadd.f32 %v988, %v1058
        %v1123 = vadd.f32 %v989, %v1059
        %v1124 = vadd.f32 %v990, %v1060
        %v1125 = vadd.f32 %v991, %v1061
        %v1126 = vadd.f32 %v992, %v1062
        %v1127 = vadd.f32 %v993, %v1063
        %v1128 = vadd.f32 %v994, %v1064
        %v1129 = vadd.f32 %v995, %v1065
        %v1130 = vadd.f32 %v996, %v1066
        %v1131 = vadd.f32 %v997, %v1067
        %v1132 = vadd.f32 %v998, %v1068
        %v1133 = vadd.f32 %v999, %v1069
        %v1134 = vadd.f32 %v1000, %v1070
        %v1135 = vadd.f32 %v1001, %v1071
        %v1136 = vadd.f32 %v1002, %v1072
        %v1137 = vadd.f32 %v1003, %v1073
        %v1138 = vadd.f32 %v1004, %v1074
        %v1139 = vadd.f32 %v1005, %v1075
        %v1140 = vadd.f32 %v1006, %v1076
        %v1141 = vadd.f32 %v1007, %v1077
        %v1142 = vadd.f32 %v1008, %v1078
        %v1143 = vadd.f32 %v1009, %v1079
        %v1144 = vadd.f32 %v1010, %v1080
        %v1145 = vadd.f32 %v1011, %v1081
        %v1146 = vadd.f32 %v1012, %v1082
        %v1147 = vadd.f32 %v1013, %v1083
        %v1148 = vadd.f32 %v1014, %v1084
        %v1149 = vadd.f32 %v1015, %v1085
        %v1150 = vadd.f32 %v1016, %v1086
        %v1151 = vadd.f32 %v1017, %v1087
        %v1152 = vadd.f32 %v1018, %v1088
        %v1153 = vadd.f32 %v1019, %v1089
        %v1154 = vadd.f32 %v1020, %v1090
        %v1155 = vadd.f32 %v1021, %v1091
        %v1156 = vadd.f32 %v1022, %v1092
        %v1157 = vadd.f32 %v1023, %v1093
        %v1158 = vadd.f32 %v1024, %v1094
        %v1159 = vadd.f32 %v1025, %v1095
        %v1160 = vadd.f32 %v1026, %v1096
        %v1161 = vadd.f32 %v1027, %v1097
        %v1162 = vadd.f32 %v1028, %v1098
        %v1163 = vadd.f32 %v1029, %v1099
        %v1164 = vadd.f32 %v1030, %v1100
        %v1165 = vld [vmem:[%s170] sm:$0xff]
        %v1167 = vcombine.high %v1165, %v1165
        %1169 = vmatprep.subr.mxu0 %v1102
        %1170 = vmatpush1.msra.mxu0 %v1101
        %1171 = vmatprep.subr.mxu0 %v1104
        %1172 = vmatpush1.msra.mxu0 %v1103
        %1173 = vmatprep.subr.mxu0 %v1106
        %1174 = vmatpush1.msra.mxu0 %v1105
        %1175 = vmatprep.subr.mxu0 %v1108
        %1176 = vmatpush1.msra.mxu0 %v1107
        %1177 = vmatprep.subr.mxu0 %v1110
        %1178 = vmatpush1.msra.mxu0 %v1109
        %1179 = vmatprep.subr.mxu0 %v1112
        %1180 = vmatpush1.msra.mxu0 %v1111
        %1181 = vmatprep.subr.mxu0 %v1114
        %1182 = vmatpush1.msra.mxu0 %v1113
        %1183 = vmatprep.subr.mxu0 %v1116
        %1184 = vmatpush1.msra.mxu0 %v1115
        %1185 = vmatprep.subr.mxu0 %v1118
        %1186 = vmatpush1.msra.mxu0 %v1117
        %1187 = vmatprep.subr.mxu0 %v1120
        %1188 = vmatpush1.msra.mxu0 %v1119
        %1189 = vmatprep.subr.mxu0 %v1122
        %1190 = vmatpush1.msra.mxu0 %v1121
        %1191 = vmatprep.subr.mxu0 %v1124
        %1192 = vmatpush1.msra.mxu0 %v1123
        %1193 = vmatprep.subr.mxu0 %v1126
        %1194 = vmatpush1.msra.mxu0 %v1125
        %1195 = vmatprep.subr.mxu0 %v1128
        %1196 = vmatpush1.msra.mxu0 %v1127
        %1197 = vmatprep.subr.mxu0 %v1130
        %1198 = vmatpush1.msra.mxu0 %v1129
        %1199 = vmatprep.subr.mxu0 %v1132
        %1200 = vmatpush1.msra.mxu0 %v1131
        %1201 = vmatprep.subr.mxu0 %v1134
        %1202 = vmatpush1.msra.mxu0 %v1133
        %1203 = vmatprep.subr.mxu0 %v1136
        %1204 = vmatpush1.msra.mxu0 %v1135
        %1205 = vmatprep.subr.mxu0 %v1138
        %1206 = vmatpush1.msra.mxu0 %v1137
        %1207 = vmatprep.subr.mxu0 %v1140
        %1208 = vmatpush1.msra.mxu0 %v1139
        %1209 = vmatprep.subr.mxu0 %v1142
        %1210 = vmatpush1.msra.mxu0 %v1141
        %1211 = vmatprep.subr.mxu0 %v1144
        %1212 = vmatpush1.msra.mxu0 %v1143
        %1213 = vmatprep.subr.mxu0 %v1146
        %1214 = vmatpush1.msra.mxu0 %v1145
        %1215 = vmatprep.subr.mxu0 %v1148
        %1216 = vmatpush1.msra.mxu0 %v1147
        %1217 = vmatprep.subr.mxu0 %v1150
        %1218 = vmatpush1.msra.mxu0 %v1149
        %1219 = vmatprep.subr.mxu0 %v1152
        %1220 = vmatpush1.msra.mxu0 %v1151
        %1221 = vmatprep.subr.mxu0 %v1154
        %1222 = vmatpush1.msra.mxu0 %v1153
        %1223 = vmatprep.subr.mxu0 %v1156
        %1224 = vmatpush1.msra.mxu0 %v1155
        %1225 = vmatprep.subr.mxu0 %v1158
        %1226 = vmatpush1.msra.mxu0 %v1157
        %1227 = vmatprep.subr.mxu0 %v1160
        %1228 = vmatpush1.msra.mxu0 %v1159
        %1229 = vmatprep.subr.mxu0 %v1162
        %1230 = vmatpush1.msra.mxu0 %v1161
        %1231 = vmatprep.subr.mxu0 %v1164
        %1232 = vmatpush1.msra.mxu0 %v1163
        %1233 = vmatprep.mubr.f32.mxu0 %v1167
        %1234 = vmatmul.mubr.f32.gmra.mrb[0].mxu0 %v1165
        %v1235 = vpop.f32.mrb[0].mxu0
        %v1236 = vadd.f32 0.0, %v1235
        %v1237 = vpop.f32.mrb[0].mxu0
        %v1238 = vadd.f32 0.0, %v1237
        %1239 = vdwg.mxu0
        %v1242 = vcombine.low %v1236, %v1238
        %1244 = vst [vmem:[%s179] sm:$0xff] %v1242
        %s1245 = smul.u32 2, %s19
        %p1246 = scmp.lt.s32.totalorder %s18, 1
        %s1247 = scalar_select %p1246, %s18, 1
        %p1248 = scmp.lt.s32.totalorder %s1245, 1
        %s1249 = scalar_select %p1248, %s1245, 1
        %s1250 = smul.addr %s1247, 2
        %s1251 = sadd.s32 %s1249, %s1250
        %s1252 = smul.addr %s1251, 4
        %s1253 = scalar_lea.vmem %s2, %s1252
        // Predicated region
        $region33: #{naf_stn_block_forward.3} parent=27 // pred_check
          %p1254 = pneg %p93
        $region34: #{naf_stn_block_forward.3} parent=27 // pred_check_branch
          %1256 = sbr.rel (%p1254) target = $region36
        $region35: #{naf_stn_block_forward.3} parent=27 // pred_region
          %s1257 = smul.u32 2, %s19
        $region36: #{naf_stn_block_forward.3} parent=27 // pred_fallthru
          _
      $region28: #{naf_stn_block_forward.3} parent=5 // pred_fallthru
        _
      %p1258 = scmp.le.s32.totalorder 2, %s9
      // Predicated region
      $region37: #{naf_stn_block_forward.3} parent=5 // pred_check
        %p1259 = pneg %p1258
      $region38: #{naf_stn_block_forward.3} parent=5 // pred_check_branch
        %1261 = sbr.rel (%p1259) target = $region40
      $region39: #{naf_stn_block_forward.3} parent=5 // pred_region
        %s1262 = ssub.s32 %s9, 2
        // Predicated region
        $region41: #{naf_stn_block_forward.3} parent=39 // pred_check
          %p1263 = pneg %p99
        $region42: #{naf_stn_block_forward.3} parent=39 // pred_check_branch
          %1265 = sbr.rel (%p1263) target = $region44
        $region43: #{naf_stn_block_forward.3} parent=39 // pred_region
          %s1266 = smul.u32 2, %s21
          %p1267 = scmp.lt.s32.totalorder %s20, 1
          %s1268 = scalar_select %p1267, %s20, 1
          %p1269 = scmp.lt.s32.totalorder %s1266, 1
          %s1270 = scalar_select %p1269, %s1266, 1
          %s1271 = smul.addr %s1268, 2
          %s1272 = sadd.s32 %s1270, %s1271
          %s1273 = smul.addr %s1272, 4
          %s1274 = scalar_lea.vmem %s2, %s1273
        $region44: #{naf_stn_block_forward.3} parent=39 // pred_fallthru
          _
      $region40: #{naf_stn_block_forward.3} parent=5 // pred_fallthru
        _
    $region6: #{naf_stn_block_forward.3} parent=1 // loop_footer
      %s13 = sadd.s32 1, %s9
    $region7: #{naf_stn_block_forward.3} parent=1 // loop_footer_branch
      %8 = sbr.rel target = $region3
    $region8: #{naf_stn_block_forward.3} parent=1 // loop_exit
      _
    %1275 = vsyncpa [#allocation3], 1
    %s1276 = scalar_lea.sflag [#allocation3], 1
    %1277 = vsyncpa %s1276, 1

// kernel: naf_stn_block_forward.2
$region0: #{naf_stn_block_forward.2}
  #allocation0 [shape = 'u32[]', space=smem, size = 0x4, offset = 0x4, fixed_abs, tag = 'smem constant byte address 0x4 - core index']
  #allocation1 [shape = 'u32[144,128]{1,0:T(1,128)}', space=vmem, size = 0x12000, scoped, tag = 'internal scratch']
  %s0 = inlined_call_operand.vmem [shape: f32[2,4,256], index: 0, kind: input, shape index: {}]
  %s1 = inlined_call_operand.vmem [shape: f32[2,2,8,4], index: 1, kind: input, shape index: {}]
  %s2 = inlined_call_operand.vmem [shape: f32[2,3,4,4], index: 2, kind: input, shape index: {}]
  %s3 = inlined_call_operand.vmem [shape: f32[2,3,8,1], index: 3, kind: input, shape index: {}]
  %s4 = inlined_call_operand.vmem [shape: f32[2,9,4,1], index: 4, kind: input, shape index: {}]
  %s5 = inlined_call_operand.vmem [shape: f32[2,8,9], index: 5, kind: input, shape index: {}]
  %s6 = inlined_call_operand.vmem [shape: f32[2,4,256], index: 6, kind: output, shape index: {}]
  %s7 = sld [smem:[#allocation0]]
  $region34: #{naf_stn_block_forward.2} parent=0
    _
  %s9 = ssub.s32 1, %s7
  %s10 = scalar_select 0, %s9, %s7
  // Predicated region
  $region2: #{naf_stn_block_forward.2} parent=0 // pred_check
    _
  $region3: #{naf_stn_block_forward.2} parent=0 // pred_check_branch
    %12 = sbr.rel (0) target = $region5
  $region4: #{naf_stn_block_forward.2} parent=0 // pred_region
    _
  $region5: #{naf_stn_block_forward.2} parent=0 // pred_fallthru
    _
  // Predicated region
  $region6: #{naf_stn_block_forward.2} parent=0 // pred_check
    _
  $region7: #{naf_stn_block_forward.2} parent=0 // pred_check_branch
    %14 = sbr.rel (0) target = $region9
  $region8: #{naf_stn_block_forward.2} parent=0 // pred_region
    _
  $region9: #{naf_stn_block_forward.2} parent=0 // pred_fallthru
    _
  // Predicated region
  $region10: #{naf_stn_block_forward.2} parent=0 // pred_check
    _
  $region11: #{naf_stn_block_forward.2} parent=0 // pred_check_branch
    %16 = sbr.rel (0) target = $region13
  $region12: #{naf_stn_block_forward.2} parent=0 // pred_region
    _
  $region13: #{naf_stn_block_forward.2} parent=0 // pred_fallthru
    _
  // Predicated region
  $region14: #{naf_stn_block_forward.2} parent=0 // pred_check
    _
  $region15: #{naf_stn_block_forward.2} parent=0 // pred_check_branch
    %18 = sbr.rel (0) target = $region17
  $region16: #{naf_stn_block_forward.2} parent=0 // pred_region
    _
  $region17: #{naf_stn_block_forward.2} parent=0 // pred_fallthru
    _
  // Predicated region
  $region18: #{naf_stn_block_forward.2} parent=0 // pred_check
    _
  $region19: #{naf_stn_block_forward.2} parent=0 // pred_check_branch
    %20 = sbr.rel (0) target = $region21
  $region20: #{naf_stn_block_forward.2} parent=0 // pred_region
    _
  $region21: #{naf_stn_block_forward.2} parent=0 // pred_fallthru
    _
  // Predicated region
  $region22: #{naf_stn_block_forward.2} parent=0 // pred_check
    _
  $region23: #{naf_stn_block_forward.2} parent=0 // pred_check_branch
    %22 = sbr.rel (0) target = $region25
  $region24: #{naf_stn_block_forward.2} parent=0 // pred_region
    _
  $region25: #{naf_stn_block_forward.2} parent=0 // pred_fallthru
    _
  %v23 = vlaneseq
  %v24 = vand.u32 %v23, 127
  %v25 = vadd.s32 %v24, 128
  %v26 = vshra.s32 %v24, 4
  %v27 = vshra.s32 %v25, 4
  %v28 = vand.u32 %v24, 15
  %v29 = vand.u32 %v25, 15
  %v30 = vadd.s32 %v26, 4294967295
  %v31 = vadd.s32 %v27, 4294967295
  %v32 = vadd.s32 %v28, 4294967295
  %v33 = vadd.s32 %v29, 4294967295
  %vm34 = vcmp.ge.s32.totalorder %v30, 0
  %vm35 = vcmp.ge.s32.totalorder %v31, 0
  %vm36 = vcmp.lt.s32.totalorder %v30, 16
  %vm37 = vcmp.lt.s32.totalorder %v31, 16
  %vm38 = vmand %vm34, %vm36
  %vm39 = vmand %vm35, %vm37
  %vm40 = vcmp.ge.s32.totalorder %v32, 0
  %vm41 = vcmp.ge.s32.totalorder %v33, 0
  %vm42 = vmand %vm38, %vm40
  %vm43 = vmand %vm39, %vm41
  %vm44 = vcmp.lt.s32.totalorder %v32, 16
  %vm45 = vcmp.lt.s32.totalorder %v33, 16
  %vm46 = vmand %vm42, %vm44
  %vm47 = vmand %vm43, %vm45
  %v48 = vsel %vm46, 1, 0
  %v49 = vsel %vm47, 1, 0
  %v50 = vcvt.s32.f32 %v48
  %v51 = vcvt.s32.f32 %v49
  %vm52 = vcmp.ge.s32.totalorder %v28, 0
  %vm53 = vcmp.ge.s32.totalorder %v29, 0
  %vm54 = vmand %vm38, %vm52
  %vm55 = vmand %vm39, %vm53
  %vm56 = vcmp.lt.s32.totalorder %v28, 16
  %vm57 = vcmp.lt.s32.totalorder %v29, 16
  %vm58 = vmand %vm54, %vm56
  %vm59 = vmand %vm55, %vm57
  %v60 = vsel %vm58, 1, 0
  %v61 = vsel %vm59, 1, 0
  %v62 = vcvt.s32.f32 %v60
  %v63 = vcvt.s32.f32 %v61
  %v64 = vadd.s32 %v28, 1
  %v65 = vadd.s32 %v29, 1
  %vm66 = vcmp.ge.s32.totalorder %v64, 0
  %vm67 = vcmp.ge.s32.totalorder %v65, 0
  %vm68 = vmand %vm38, %vm66
  %vm69 = vmand %vm39, %vm67
  %vm70 = vcmp.lt.s32.totalorder %v64, 16
  %vm71 = vcmp.lt.s32.totalorder %v65, 16
  %vm72 = vmand %vm68, %vm70
  %vm73 = vmand %vm69, %vm71
  %v74 = vsel %vm72, 1, 0
  %v75 = vsel %vm73, 1, 0
  %v76 = vcvt.s32.f32 %v74
  %v77 = vcvt.s32.f32 %v75
  %vm78 = vcmp.ge.s32.totalorder %v26, 0
  %vm79 = vcmp.ge.s32.totalorder %v27, 0
  %vm80 = vcmp.lt.s32.totalorder %v26, 16
  %vm81 = vcmp.lt.s32.totalorder %v27, 16
  %vm82 = vmand %vm78, %vm80
  %vm83 = vmand %vm79, %vm81
  %vm84 = vmand %vm82, %vm40
  %vm85 = vmand %vm83, %vm41
  %vm86 = vmand %vm84, %vm44
  %vm87 = vmand %vm85, %vm45
  %v88 = vsel %vm86, 1, 0
  %v89 = vsel %vm87, 1, 0
  %v90 = vcvt.s32.f32 %v88
  %v91 = vcvt.s32.f32 %v89
  %vm92 = vmand %vm82, %vm66
  %vm93 = vmand %vm83, %vm67
  %vm94 = vmand %vm92, %vm70
  %vm95 = vmand %vm93, %vm71
  %v96 = vsel %vm94, 1, 0
  %v97 = vsel %vm95, 1, 0
  %v98 = vcvt.s32.f32 %v96
  %v99 = vcvt.s32.f32 %v97
  %v100 = vadd.s32 %v26, 1
  %v101 = vadd.s32 %v27, 1
  %vm102 = vcmp.ge.s32.totalorder %v100, 0
  %vm103 = vcmp.ge.s32.totalorder %v101, 0
  %vm104 = vcmp.lt.s32.totalorder %v100, 16
  %vm105 = vcmp.lt.s32.totalorder %v101, 16
  %vm106 = vmand %vm102, %vm104
  %vm107 = vmand %vm103, %vm105
  %vm108 = vmand %vm106, %vm40
  %vm109 = vmand %vm107, %vm41
  %vm110 = vmand %vm108, %vm44
  %vm111 = vmand %vm109, %vm45
  %v112 = vsel %vm110, 1, 0
  %v113 = vsel %vm111, 1, 0
  %v114 = vcvt.s32.f32 %v112
  %v115 = vcvt.s32.f32 %v113
  %vm116 = vmand %vm106, %vm52
  %vm117 = vmand %vm107, %vm53
  %vm118 = vmand %vm116, %vm56
  %vm119 = vmand %vm117, %vm57
  %v120 = vsel %vm118, 1, 0
  %v121 = vsel %vm119, 1, 0
  %v122 = vcvt.s32.f32 %v120
  %v123 = vcvt.s32.f32 %v121
  %vm124 = vmand %vm106, %vm66
  %vm125 = vmand %vm107, %vm67
  %vm126 = vmand %vm124, %vm70
  %vm127 = vmand %vm125, %vm71
  %v128 = vsel %vm126, 1, 0
  %v129 = vsel %vm127, 1, 0
  %v130 = vcvt.s32.f32 %v128
  %v131 = vcvt.s32.f32 %v129
  %v132 = vld [vmem:[%s1] sm:$0xff]
  %s133 = scalar_lea.vmem %s1, 8
  %v134 = vld [vmem:[%s133] sm:$0xff]
  %v135 = vld [vmem:[%s2] sm:$0xf]
  %s136 = scalar_lea.vmem %s2, 4
  %v137 = vld [vmem:[%s136] sm:$0xf]
  %s138 = scalar_lea.vmem %s2, 8
  %v139 = vld [vmem:[%s138] sm:$0xf]
  %v140 = vld [vmem:[%s3] sm:$0xff]
  %s141 = scalar_lea.vmem %s3, 8
  %v142 = vld [vmem:[%s141] sm:$0xff]
  %s143 = scalar_lea.vmem %s3, 16
  %v144 = vld [vmem:[%s143] sm:$0xff]
  %v145 = vld [vmem:[%s4] sm:$0xf]
  %s146 = scalar_lea.vmem %s4, 4
  %v147 = vld [vmem:[%s146] sm:$0xf]
  %s148 = scalar_lea.vmem %s4, 8
  %v149 = vld [vmem:[%s148] sm:$0xf]
  %s150 = scalar_lea.vmem %s4, 12
  %v151 = vld [vmem:[%s150] sm:$0xf]
  %s152 = scalar_lea.vmem %s4, 16
  %v153 = vld [vmem:[%s152] sm:$0xf]
  %s154 = scalar_lea.vmem %s4, 20
  %v155 = vld [vmem:[%s154] sm:$0xf]
  %s156 = scalar_lea.vmem %s4, 24
  %v157 = vld [vmem:[%s156] sm:$0xf]
  %s158 = scalar_lea.vmem %s4, 28
  %v159 = vld [vmem:[%s158] sm:$0xf]
  %s160 = scalar_lea.vmem %s4, 32
  %v161 = vld [vmem:[%s160] sm:$0xf]
  %v162 = vld [vmem:[%s5] sm:$0xff]
  %s163 = scalar_lea.vmem %s1, 16
  %v164 = vld [vmem:[%s163] sm:$0xff]
  %s165 = scalar_lea.vmem %s1, 24
  %v166 = vld [vmem:[%s165] sm:$0xff]
  %s167 = scalar_lea.vmem %s2, 12
  %v168 = vld [vmem:[%s167] sm:$0xf]
  %s169 = scalar_lea.vmem %s2, 16
  %v170 = vld [vmem:[%s169] sm:$0xf]
  %s171 = scalar_lea.vmem %s2, 20
  %v172 = vld [vmem:[%s171] sm:$0xf]
  %s173 = scalar_lea.vmem %s3, 24
  %v174 = vld [vmem:[%s173] sm:$0xff]
  %s175 = scalar_lea.vmem %s3, 32
  %v176 = vld [vmem:[%s175] sm:$0xff]
  %s177 = scalar_lea.vmem %s3, 40
  %v178 = vld [vmem:[%s177] sm:$0xff]
  %s179 = scalar_lea.vmem %s4, 36
  %v180 = vld [vmem:[%s179] sm:$0xf]
  %s181 = scalar_lea.vmem %s4, 40
  %v182 = vld [vmem:[%s181] sm:$0xf]
  %s183 = scalar_lea.vmem %s4, 44
  %v184 = vld [vmem:[%s183] sm:$0xf]
  %s185 = scalar_lea.vmem %s4, 48
  %v186 = vld [vmem:[%s185] sm:$0xf]
  %s187 = scalar_lea.vmem %s4, 52
  %v188 = vld [vmem:[%s187] sm:$0xf]
  %s189 = scalar_lea.vmem %s4, 56
  %v190 = vld [vmem:[%s189] sm:$0xf]
  %s191 = scalar_lea.vmem %s4, 60
  %v192 = vld [vmem:[%s191] sm:$0xf]
  %s193 = scalar_lea.vmem %s4, 64
  %v194 = vld [vmem:[%s193] sm:$0xf]
  %s195 = scalar_lea.vmem %s4, 68
  %v196 = vld [vmem:[%s195] sm:$0xf]
  %s197 = scalar_lea.vmem %s5, 8
  %v198 = vld [vmem:[%s197] sm:$0xff]
  %v199 = vld [vmem:[%s0] sm:$0xff]
  %v201 = vcombine.high %v199, %v199
  %vm203 = vcmask 1043456
  %v204 = vsel %vm203, %v199, 0.0
  %v205 = vrot.slane %v204, 4
  %v206 = vadd.f32 %v204, %v205
  %v207 = vrot.slane %v206, 2
  %v208 = vadd.f32 %v206, %v207
  %v209 = vrot.slane %v208, 1
  %v210 = vadd.f32 %v208, %v209
  %v211 = vsel %vm203, %v201, 0.0
  %v212 = vrot.slane %v211, 4
  %v213 = vadd.f32 %v211, %v212
  %v214 = vrot.slane %v213, 2
  %v215 = vadd.f32 %v213, %v214
  %v216 = vrot.slane %v215, 1
  %v217 = vadd.f32 %v215, %v216
  %v218 = vrcp.pop 4.0
  %v219 = vmul.f32 %v210, %v218
  %v220 = vmul.f32 %v217, %v218
  %v223 = vcombine.low %v219, %v220
  %v225 = vsub.f32 %v199, %v223
  %v226 = vmul.f32 %v225, %v225
  %v228 = vcombine.high %v226, %v226
  %v230 = vsel %vm203, %v226, 0.0
  %v231 = vrot.slane %v230, 4
  %v232 = vadd.f32 %v230, %v231
  %v233 = vrot.slane %v232, 2
  %v234 = vadd.f32 %v232, %v233
  %v235 = vrot.slane %v234, 1
  %v236 = vadd.f32 %v234, %v235
  %v237 = vsel %vm203, %v228, 0.0
  %v238 = vrot.slane %v237, 4
  %v239 = vadd.f32 %v237, %v238
  %v240 = vrot.slane %v239, 2
  %v241 = vadd.f32 %v239, %v240
  %v242 = vrot.slane %v241, 1
  %v243 = vadd.f32 %v241, %v242
  %v244 = vmul.f32 %v236, %v218
  %v245 = vmul.f32 %v243, %v218
  %v246 = vadd.f32 %v244, 1e-06
  %v247 = vadd.f32 %v245, 1e-06
  %v248 = vrsqrt.pop %v246
  %v249 = vrsqrt.pop %v247
  %v252 = vcombine.low %v248, %v249
  %v254 = vmul.f32 %v225, %v252
  %256 = vset.pattern.permute.xlu0 0
  %257 = vperm.xlu0 %256, %v145
  %v258 = vpop.permute.xlu0 %257
  %v260 = vunpack.c.l.s4 839922192
  %v261 = vunpack.c.0.s8 %v260
  %v262 = vlaneseq
  %v263 = vshrl.u32 %v262, 7
  %v264 = vsub.s32 %v261, %v263
  %v265 = vrot.slane %v258, %v264
  %v267 = vmul.f32 %v254, %v265
  %269 = vset.pattern.permute.xlu0 0
  %270 = vperm.xlu0 %269, %v147
  %v271 = vpop.permute.xlu0 %270
  %v273 = vunpack.c.l.s4 839922192
  %v274 = vunpack.c.0.s8 %v273
  %v275 = vlaneseq
  %v276 = vshrl.u32 %v275, 7
  %v277 = vsub.s32 %v274, %v276
  %v278 = vrot.slane %v271, %v277
  %v280 = vadd.f32 %v267, %v278
  %282 = vset.pattern.permute.xlu0 0
  %283 = vperm.xlu0 %282, %v132
  %v284 = vpop.permute.xlu0 %283
  %v287 = vlaneseq
  %v288 = vshrl.u32 %v287, 7
  %v289 = vsub.s32 0, %v288
  %v290 = vrot.slane %v280, %v289
  %v291 = vlaneseq
  %v292 = vshrl.u32 %v291, 7
  %v293 = vsub.s32 4, %v292
  %v294 = vrot.slane %v280, %v293
  %v297 = vlaneseq
  %v298 = vshrl.u32 %v297, 7
  %v299 = vsub.s32 0, %v298
  %v300 = vrot.slane %v290, %v299
  %v301 = vlaneseq
  %v302 = vshrl.u32 %v301, 7
  %v303 = vsub.s32 0, %v302
  %v304 = vrot.slane %v294, %v303
  %v305 = vmul.f32 %v284, %v300
  %v306 = vmul.f32 %v284, %v304
  %307 = vset.pattern.permute.xlu0 1
  %308 = vperm.xlu0 %307, %v132
  %v309 = vpop.permute.xlu0 %308
  %v311 = vlaneseq
  %v312 = vshrl.u32 %v311, 7
  %v313 = vsub.s32 1, %v312
  %v314 = vrot.slane %v280, %v313
  %v315 = vlaneseq
  %v316 = vshrl.u32 %v315, 7
  %v317 = vsub.s32 5, %v316
  %v318 = vrot.slane %v280, %v317
  %v321 = vlaneseq
  %v322 = vshrl.u32 %v321, 7
  %v323 = vsub.s32 1, %v322
  %v324 = vrot.slane %v314, %v323
  %v325 = vlaneseq
  %v326 = vshrl.u32 %v325, 7
  %v327 = vsub.s32 1, %v326
  %v328 = vrot.slane %v318, %v327
  %v329 = vmul.f32 %v309, %v324
  %v330 = vmul.f32 %v309, %v328
  %v331 = vadd.f32 %v305, %v329
  %v332 = vadd.f32 %v306, %v330
  %333 = vset.pattern.permute.xlu0 2
  %334 = vperm.xlu0 %333, %v132
  %v335 = vpop.permute.xlu0 %334
  %v337 = vlaneseq
  %v338 = vshrl.u32 %v337, 7
  %v339 = vsub.s32 2, %v338
  %v340 = vrot.slane %v280, %v339
  %v341 = vlaneseq
  %v342 = vshrl.u32 %v341, 7
  %v343 = vsub.s32 6, %v342
  %v344 = vrot.slane %v280, %v343
  %v347 = vlaneseq
  %v348 = vshrl.u32 %v347, 7
  %v349 = vsub.s32 2, %v348
  %v350 = vrot.slane %v340, %v349
  %v351 = vlaneseq
  %v352 = vshrl.u32 %v351, 7
  %v353 = vsub.s32 2, %v352
  %v354 = vrot.slane %v344, %v353
  %v355 = vmul.f32 %v335, %v350
  %v356 = vmul.f32 %v335, %v354
  %v357 = vadd.f32 %v331, %v355
  %v358 = vadd.f32 %v332, %v356
  %359 = vset.pattern.permute.xlu0 3
  %360 = vperm.xlu0 %359, %v132
  %v361 = vpop.permute.xlu0 %360
  %v363 = vlaneseq
  %v364 = vshrl.u32 %v363, 7
  %v365 = vsub.s32 3, %v364
  %v366 = vrot.slane %v280, %v365
  %v367 = vlaneseq
  %v368 = vshrl.u32 %v367, 7
  %v369 = vsub.s32 7, %v368
  %v370 = vrot.slane %v280, %v369
  %v373 = vlaneseq
  %v374 = vshrl.u32 %v373, 7
  %v375 = vsub.s32 3, %v374
  %v376 = vrot.slane %v366, %v375
  %v377 = vlaneseq
  %v378 = vshrl.u32 %v377, 7
  %v379 = vsub.s32 3, %v378
  %v380 = vrot.slane %v370, %v379
  %v381 = vmul.f32 %v361, %v376
  %v382 = vmul.f32 %v361, %v380
  %v383 = vadd.f32 %v357, %v381
  %v384 = vadd.f32 %v358, %v382
  %386 = vset.pattern.permute.xlu0 0
  %387 = vperm.xlu0 %386, %v140
  %v388 = vpop.permute.xlu0 %387
  %v390 = vadd.f32 %v383, %v388
  %v391 = vadd.f32 %v384, %v388
  %392 = vrot.lane.b32.xlu0 %v390, 17
  %v393 = vpop.permute.xlu0 %392
  %394 = vrot.lane.b32.xlu0 %v391, 17
  %v395 = vpop.permute.xlu0 %394
  %vm396 = vcmp.lt.s32.totalorder %v24, 17
  %v397 = vsel %vm396, %v393, %v395
  %v398 = vsel %vm396, %v395, %v393
  %v399 = vmul.f32 %v398, %v50
  %v400 = vmul.f32 %v397, %v51
  %402 = vset.pattern.permute.xlu0 0
  %403 = vperm.xlu0 %402, %v162
  %v404 = vpop.permute.xlu0 %403
  %v406 = vmul.f32 %v399, %v404
  %v407 = vmul.f32 %v400, %v404
  %408 = vrot.lane.b32.xlu0 %v390, 16
  %v409 = vpop.permute.xlu0 %408
  %410 = vrot.lane.b32.xlu0 %v391, 16
  %v411 = vpop.permute.xlu0 %410
  %vm412 = vcmp.lt.s32.totalorder %v24, 16
  %v413 = vsel %vm412, %v409, %v411
  %v414 = vsel %vm412, %v411, %v409
  %v415 = vmul.f32 %v414, %v62
  %v416 = vmul.f32 %v413, %v63
  %417 = vset.pattern.permute.xlu0 1
  %418 = vperm.xlu0 %417, %v162
  %v419 = vpop.permute.xlu0 %418
  %v421 = vmul.f32 %v415, %v419
  %v422 = vmul.f32 %v416, %v419
  %v423 = vadd.f32 %v406, %v421
  %v424 = vadd.f32 %v407, %v422
  %425 = vrot.lane.b32.xlu0 %v390, 15
  %v426 = vpop.permute.xlu0 %425
  %427 = vrot.lane.b32.xlu0 %v391, 15
  %v428 = vpop.permute.xlu0 %427
  %vm429 = vcmp.lt.s32.totalorder %v24, 15
  %v430 = vsel %vm429, %v426, %v428
  %v431 = vsel %vm429, %v428, %v426
  %v432 = vmul.f32 %v431, %v76
  %v433 = vmul.f32 %v430, %v77
  %434 = vset.pattern.permute.xlu0 2
  %435 = vperm.xlu0 %434, %v162
  %v436 = vpop.permute.xlu0 %435
  %v438 = vmul.f32 %v432, %v436
  %v439 = vmul.f32 %v433, %v436
  %v440 = vadd.f32 %v423, %v438
  %v441 = vadd.f32 %v424, %v439
  %442 = vrot.lane.b32.xlu0 %v390, 1
  %v443 = vpop.permute.xlu0 %442
  %444 = vrot.lane.b32.xlu0 %v391, 1
  %v445 = vpop.permute.xlu0 %444
  %vm446 = vcmp.lt.s32.totalorder %v24, 1
  %v447 = vsel %vm446, %v443, %v445
  %v448 = vsel %vm446, %v445, %v443
  %v449 = vmul.f32 %v448, %v90
  %v450 = vmul.f32 %v447, %v91
  %451 = vset.pattern.permute.xlu0 3
  %452 = vperm.xlu0 %451, %v162
  %v453 = vpop.permute.xlu0 %452
  %v455 = vmul.f32 %v449, %v453
  %v456 = vmul.f32 %v450, %v453
  %v457 = vadd.f32 %v440, %v455
  %v458 = vadd.f32 %v441, %v456
  %459 = vset.pattern.permute.xlu0 4
  %460 = vperm.xlu0 %459, %v162
  %v461 = vpop.permute.xlu0 %460
  %v463 = vmul.f32 %v390, %v461
  %v464 = vmul.f32 %v391, %v461
  %v465 = vadd.f32 %v457, %v463
  %v466 = vadd.f32 %v458, %v464
  %467 = vrot.lane.b32.xlu0 %v390, 127
  %v468 = vpop.permute.xlu0 %467
  %469 = vrot.lane.b32.xlu0 %v391, 127
  %v470 = vpop.permute.xlu0 %469
  %vm471 = vcmp.lt.s32.totalorder %v24, 127
  %v472 = vsel %vm471, %v468, %v470
  %v473 = vsel %vm471, %v470, %v468
  %v474 = vmul.f32 %v472, %v98
  %v475 = vmul.f32 %v473, %v99
  %476 = vset.pattern.permute.xlu0 5
  %477 = vperm.xlu0 %476, %v162
  %v478 = vpop.permute.xlu0 %477
  %v480 = vmul.f32 %v474, %v478
  %v481 = vmul.f32 %v475, %v478
  %v482 = vadd.f32 %v465, %v480
  %v483 = vadd.f32 %v466, %v481
  %484 = vrot.lane.b32.xlu0 %v390, 113
  %v485 = vpop.permute.xlu0 %484
  %486 = vrot.lane.b32.xlu0 %v391, 113
  %v487 = vpop.permute.xlu0 %486
  %vm488 = vcmp.lt.s32.totalorder %v24, 113
  %v489 = vsel %vm488, %v485, %v487
  %v490 = vsel %vm488, %v487, %v485
  %v491 = vmul.f32 %v489, %v114
  %v492 = vmul.f32 %v490, %v115
  %493 = vset.pattern.permute.xlu0 6
  %494 = vperm.xlu0 %493, %v162
  %v495 = vpop.permute.xlu0 %494
  %v497 = vmul.f32 %v491, %v495
  %v498 = vmul.f32 %v492, %v495
  %v499 = vadd.f32 %v482, %v497
  %v500 = vadd.f32 %v483, %v498
  %501 = vrot.lane.b32.xlu0 %v390, 112
  %v502 = vpop.permute.xlu0 %501
  %503 = vrot.lane.b32.xlu0 %v391, 112
  %v504 = vpop.permute.xlu0 %503
  %vm505 = vcmp.lt.s32.totalorder %v24, 112
  %v506 = vsel %vm505, %v502, %v504
  %v507 = vsel %vm505, %v504, %v502
  %v508 = vmul.f32 %v506, %v122
  %v509 = vmul.f32 %v507, %v123
  %510 = vset.pattern.permute.xlu0 7
  %511 = vperm.xlu0 %510, %v162
  %v512 = vpop.permute.xlu0 %511
  %v514 = vmul.f32 %v508, %v512
  %v515 = vmul.f32 %v509, %v512
  %v516 = vadd.f32 %v499, %v514
  %v517 = vadd.f32 %v500, %v515
  %518 = vrot.lane.b32.xlu0 %v390, 111
  %v519 = vpop.permute.xlu0 %518
  %520 = vrot.lane.b32.xlu0 %v391, 111
  %v521 = vpop.permute.xlu0 %520
  %vm522 = vcmp.lt.s32.totalorder %v24, 111
  %v523 = vsel %vm522, %v519, %v521
  %v524 = vsel %vm522, %v521, %v519
  %v525 = vmul.f32 %v523, %v130
  %v526 = vmul.f32 %v524, %v131
  %527 = vset.pattern.permute.xlu0 8
  %528 = vperm.xlu0 %527, %v162
  %v529 = vpop.permute.xlu0 %528
  %v531 = vmul.f32 %v525, %v529
  %v532 = vmul.f32 %v526, %v529
  %v533 = vadd.f32 %v516, %v531
  %v534 = vadd.f32 %v517, %v532
  %536 = vset.pattern.permute.xlu0 0
  %537 = vperm.xlu0 %536, %v142
  %v538 = vpop.permute.xlu0 %537
  %v540 = vadd.f32 %v533, %v538
  %v541 = vadd.f32 %v534, %v538
  %v544 = vrot.slane %v540, 4
  %v545 = vrot.slane %v541, 4
  %v548 = vmul.f32 %v540, %v544
  %v549 = vmul.f32 %v541, %v545
  %v550 = vsel %vm203, %v548, 0.0
  %v551 = vsel %vm203, %v549, 0.0
  %v552 = vadd.f32 %v550, %v551
  %553 = vadd.xlane.f32.xlu0 %v552
  %v554 = vpop.xlane.xlu0 %553
  %v555 = vrcp.pop 256.0
  %v556 = vmul.f32 %v554, %v555
  %v557 = vlaneseq
  %v558 = vshrl.u32 %v557, 7
  %v559 = vsub.s32 0, %v558
  %v560 = vrot.slane %v556, %v559
  %v561 = vmul.f32 %v135, %v560
  %v562 = vlaneseq
  %v563 = vshrl.u32 %v562, 7
  %v564 = vsub.s32 1, %v563
  %v565 = vrot.slane %v556, %v564
  %v566 = vmul.f32 %v135, %v565
  %568 = vrot.lane.b32.xlu0 %v566, 127
  %v569 = vpop.permute.xlu0 %568
  %v571 = vadd.f32 %v561, %v569
  %v572 = vlaneseq
  %v573 = vshrl.u32 %v572, 7
  %v574 = vsub.s32 2, %v573
  %v575 = vrot.slane %v556, %v574
  %v576 = vmul.f32 %v135, %v575
  %578 = vrot.lane.b32.xlu0 %v576, 126
  %v579 = vpop.permute.xlu0 %578
  %v581 = vadd.f32 %v571, %v579
  %v582 = vlaneseq
  %v583 = vshrl.u32 %v582, 7
  %v584 = vsub.s32 3, %v583
  %v585 = vrot.slane %v556, %v584
  %v586 = vmul.f32 %v135, %v585
  %588 = vrot.lane.b32.xlu0 %v586, 125
  %v589 = vpop.permute.xlu0 %588
  %v591 = vadd.f32 %v581, %v589
  %v592 = vadd.f32 %v591, %v153
  %594 = vset.pattern.permute.xlu0 0
  %595 = vperm.xlu0 %594, %v592
  %v596 = vpop.permute.xlu0 %595
  %v598 = vmul.f32 %v548, %v596
  %v599 = vmul.f32 %v549, %v596
  %601 = vset.pattern.permute.xlu0 0
  %602 = vperm.xlu0 %601, %v137
  %v603 = vpop.permute.xlu0 %602
  %v605 = vlaneseq
  %v606 = vshrl.u32 %v605, 7
  %v607 = vsub.s32 0, %v606
  %v608 = vrot.slane %v598, %v607
  %v609 = vlaneseq
  %v610 = vshrl.u32 %v609, 7
  %v611 = vsub.s32 0, %v610
  %v612 = vrot.slane %v599, %v611
  %v613 = vmul.f32 %v603, %v608
  %v614 = vmul.f32 %v603, %v612
  %615 = vset.pattern.permute.xlu0 1
  %616 = vperm.xlu0 %615, %v137
  %v617 = vpop.permute.xlu0 %616
  %v619 = vlaneseq
  %v620 = vshrl.u32 %v619, 7
  %v621 = vsub.s32 1, %v620
  %v622 = vrot.slane %v598, %v621
  %v623 = vlaneseq
  %v624 = vshrl.u32 %v623, 7
  %v625 = vsub.s32 1, %v624
  %v626 = vrot.slane %v599, %v625
  %v627 = vmul.f32 %v617, %v622
  %v628 = vmul.f32 %v617, %v626
  %v629 = vadd.f32 %v613, %v627
  %v630 = vadd.f32 %v614, %v628
  %631 = vset.pattern.permute.xlu0 2
  %632 = vperm.xlu0 %631, %v137
  %v633 = vpop.permute.xlu0 %632
  %v635 = vlaneseq
  %v636 = vshrl.u32 %v635, 7
  %v637 = vsub.s32 2, %v636
  %v638 = vrot.slane %v598, %v637
  %v639 = vlaneseq
  %v640 = vshrl.u32 %v639, 7
  %v641 = vsub.s32 2, %v640
  %v642 = vrot.slane %v599, %v641
  %v643 = vmul.f32 %v633, %v638
  %v644 = vmul.f32 %v633, %v642
  %v645 = vadd.f32 %v629, %v643
  %v646 = vadd.f32 %v630, %v644
  %647 = vset.pattern.permute.xlu0 3
  %648 = vperm.xlu0 %647, %v137
  %v649 = vpop.permute.xlu0 %648
  %v651 = vlaneseq
  %v652 = vshrl.u32 %v651, 7
  %v653 = vsub.s32 3, %v652
  %v654 = vrot.slane %v598, %v653
  %v655 = vlaneseq
  %v656 = vshrl.u32 %v655, 7
  %v657 = vsub.s32 3, %v656
  %v658 = vrot.slane %v599, %v657
  %v659 = vmul.f32 %v649, %v654
  %v660 = vmul.f32 %v649, %v658
  %v661 = vadd.f32 %v645, %v659
  %v662 = vadd.f32 %v646, %v660
  %664 = vset.pattern.permute.xlu0 0
  %665 = vperm.xlu0 %664, %v155
  %v666 = vpop.permute.xlu0 %665
  %v668 = vadd.f32 %v661, %v666
  %v669 = vadd.f32 %v662, %v666
  %671 = vset.pattern.permute.xlu0 0
  %672 = vperm.xlu0 %671, %v159
  %v673 = vpop.permute.xlu0 %672
  %v675 = vmul.f32 %v668, %v673
  %v676 = vmul.f32 %v669, %v673
  %v679 = vcombine.low %v675, %v676
  %v681 = vadd.f32 %v199, %v679
  %v683 = vcombine.high %v681, %v681
  %v685 = vsel %vm203, %v681, 0.0
  %v686 = vrot.slane %v685, 4
  %v687 = vadd.f32 %v685, %v686
  %v688 = vrot.slane %v687, 2
  %v689 = vadd.f32 %v687, %v688
  %v690 = vrot.slane %v689, 1
  %v691 = vadd.f32 %v689, %v690
  %v692 = vsel %vm203, %v683, 0.0
  %v693 = vrot.slane %v692, 4
  %v694 = vadd.f32 %v692, %v693
  %v695 = vrot.slane %v694, 2
  %v696 = vadd.f32 %v694, %v695
  %v697 = vrot.slane %v696, 1
  %v698 = vadd.f32 %v696, %v697
  %v699 = vmul.f32 %v691, %v218
  %v700 = vmul.f32 %v698, %v218
  %v703 = vcombine.low %v699, %v700
  %v705 = vsub.f32 %v681, %v703
  %v706 = vmul.f32 %v705, %v705
  %v708 = vcombine.high %v706, %v706
  %v710 = vsel %vm203, %v706, 0.0
  %v711 = vrot.slane %v710, 4
  %v712 = vadd.f32 %v710, %v711
  %v713 = vrot.slane %v712, 2
  %v714 = vadd.f32 %v712, %v713
  %v715 = vrot.slane %v714, 1
  %v716 = vadd.f32 %v714, %v715
  %v717 = vsel %vm203, %v708, 0.0
  %v718 = vrot.slane %v717, 4
  %v719 = vadd.f32 %v717, %v718
  %v720 = vrot.slane %v719, 2
  %v721 = vadd.f32 %v719, %v720
  %v722 = vrot.slane %v721, 1
  %v723 = vadd.f32 %v721, %v722
  %v724 = vmul.f32 %v716, %v218
  %v725 = vmul.f32 %v723, %v218
  %v726 = vadd.f32 %v724, 1e-06
  %v727 = vadd.f32 %v725, 1e-06
  %v728 = vrsqrt.pop %v726
  %v729 = vrsqrt.pop %v727
  %v732 = vcombine.low %v728, %v729
  %v734 = vmul.f32 %v705, %v732
  %736 = vset.pattern.permute.xlu0 0
  %737 = vperm.xlu0 %736, %v149
  %v738 = vpop.permute.xlu0 %737
  %v740 = vunpack.c.l.s4 839922192
  %v741 = vunpack.c.0.s8 %v740
  %v742 = vlaneseq
  %v743 = vshrl.u32 %v742, 7
  %v744 = vsub.s32 %v741, %v743
  %v745 = vrot.slane %v738, %v744
  %v747 = vmul.f32 %v734, %v745
  %749 = vset.pattern.permute.xlu0 0
  %750 = vperm.xlu0 %749, %v151
  %v751 = vpop.permute.xlu0 %750
  %v753 = vunpack.c.l.s4 839922192
  %v754 = vunpack.c.0.s8 %v753
  %v755 = vlaneseq
  %v756 = vshrl.u32 %v755, 7
  %v757 = vsub.s32 %v754, %v756
  %v758 = vrot.slane %v751, %v757
  %v760 = vadd.f32 %v747, %v758
  %762 = vset.pattern.permute.xlu0 0
  %763 = vperm.xlu0 %762, %v134
  %v764 = vpop.permute.xlu0 %763
  %v767 = vlaneseq
  %v768 = vshrl.u32 %v767, 7
  %v769 = vsub.s32 0, %v768
  %v770 = vrot.slane %v760, %v769
  %v771 = vlaneseq
  %v772 = vshrl.u32 %v771, 7
  %v773 = vsub.s32 4, %v772
  %v774 = vrot.slane %v760, %v773
  %v777 = vlaneseq
  %v778 = vshrl.u32 %v777, 7
  %v779 = vsub.s32 0, %v778
  %v780 = vrot.slane %v770, %v779
  %v781 = vlaneseq
  %v782 = vshrl.u32 %v781, 7
  %v783 = vsub.s32 0, %v782
  %v784 = vrot.slane %v774, %v783
  %v785 = vmul.f32 %v764, %v780
  %v786 = vmul.f32 %v764, %v784
  %787 = vset.pattern.permute.xlu0 1
  %788 = vperm.xlu0 %787, %v134
  %v789 = vpop.permute.xlu0 %788
  %v791 = vlaneseq
  %v792 = vshrl.u32 %v791, 7
  %v793 = vsub.s32 1, %v792
  %v794 = vrot.slane %v760, %v793
  %v795 = vlaneseq
  %v796 = vshrl.u32 %v795, 7
  %v797 = vsub.s32 5, %v796
  %v798 = vrot.slane %v760, %v797
  %v801 = vlaneseq
  %v802 = vshrl.u32 %v801, 7
  %v803 = vsub.s32 1, %v802
  %v804 = vrot.slane %v794, %v803
  %v805 = vlaneseq
  %v806 = vshrl.u32 %v805, 7
  %v807 = vsub.s32 1, %v806
  %v808 = vrot.slane %v798, %v807
  %v809 = vmul.f32 %v789, %v804
  %v810 = vmul.f32 %v789, %v808
  %v811 = vadd.f32 %v785, %v809
  %v812 = vadd.f32 %v786, %v810
  %813 = vset.pattern.permute.xlu0 2
  %814 = vperm.xlu0 %813, %v134
  %v815 = vpop.permute.xlu0 %814
  %v817 = vlaneseq
  %v818 = vshrl.u32 %v817, 7
  %v819 = vsub.s32 2, %v818
  %v820 = vrot.slane %v760, %v819
  %v821 = vlaneseq
  %v822 = vshrl.u32 %v821, 7
  %v823 = vsub.s32 6, %v822
  %v824 = vrot.slane %v760, %v823
  %v827 = vlaneseq
  %v828 = vshrl.u32 %v827, 7
  %v829 = vsub.s32 2, %v828
  %v830 = vrot.slane %v820, %v829
  %v831 = vlaneseq
  %v832 = vshrl.u32 %v831, 7
  %v833 = vsub.s32 2, %v832
  %v834 = vrot.slane %v824, %v833
  %v835 = vmul.f32 %v815, %v830
  %v836 = vmul.f32 %v815, %v834
  %v837 = vadd.f32 %v811, %v835
  %v838 = vadd.f32 %v812, %v836
  %839 = vset.pattern.permute.xlu0 3
  %840 = vperm.xlu0 %839, %v134
  %v841 = vpop.permute.xlu0 %840
  %v843 = vlaneseq
  %v844 = vshrl.u32 %v843, 7
  %v845 = vsub.s32 3, %v844
  %v846 = vrot.slane %v760, %v845
  %v847 = vlaneseq
  %v848 = vshrl.u32 %v847, 7
  %v849 = vsub.s32 7, %v848
  %v850 = vrot.slane %v760, %v849
  %v853 = vlaneseq
  %v854 = vshrl.u32 %v853, 7
  %v855 = vsub.s32 3, %v854
  %v856 = vrot.slane %v846, %v855
  %v857 = vlaneseq
  %v858 = vshrl.u32 %v857, 7
  %v859 = vsub.s32 3, %v858
  %v860 = vrot.slane %v850, %v859
  %v861 = vmul.f32 %v841, %v856
  %v862 = vmul.f32 %v841, %v860
  %v863 = vadd.f32 %v837, %v861
  %v864 = vadd.f32 %v838, %v862
  %866 = vset.pattern.permute.xlu0 0
  %867 = vperm.xlu0 %866, %v144
  %v868 = vpop.permute.xlu0 %867
  %v870 = vadd.f32 %v863, %v868
  %v871 = vadd.f32 %v864, %v868
  %v874 = vrot.slane %v870, 4
  %v875 = vrot.slane %v871, 4
  %v878 = vmul.f32 %v870, %v874
  %v879 = vmul.f32 %v871, %v875
  %881 = vset.pattern.permute.xlu0 0
  %882 = vperm.xlu0 %881, %v139
  %v883 = vpop.permute.xlu0 %882
  %v885 = vlaneseq
  %v886 = vshrl.u32 %v885, 7
  %v887 = vsub.s32 0, %v886
  %v888 = vrot.slane %v878, %v887
  %v889 = vlaneseq
  %v890 = vshrl.u32 %v889, 7
  %v891 = vsub.s32 0, %v890
  %v892 = vrot.slane %v879, %v891
  %v893 = vmul.f32 %v883, %v888
  %v894 = vmul.f32 %v883, %v892
  %895 = vset.pattern.permute.xlu0 1
  %896 = vperm.xlu0 %895, %v139
  %v897 = vpop.permute.xlu0 %896
  %v899 = vlaneseq
  %v900 = vshrl.u32 %v899, 7
  %v901 = vsub.s32 1, %v900
  %v902 = vrot.slane %v878, %v901
  %v903 = vlaneseq
  %v904 = vshrl.u32 %v903, 7
  %v905 = vsub.s32 1, %v904
  %v906 = vrot.slane %v879, %v905
  %v907 = vmul.f32 %v897, %v902
  %v908 = vmul.f32 %v897, %v906
  %v909 = vadd.f32 %v893, %v907
  %v910 = vadd.f32 %v894, %v908
  %911 = vset.pattern.permute.xlu0 2
  %912 = vperm.xlu0 %911, %v139
  %v913 = vpop.permute.xlu0 %912
  %v915 = vlaneseq
  %v916 = vshrl.u32 %v915, 7
  %v917 = vsub.s32 2, %v916
  %v918 = vrot.slane %v878, %v917
  %v919 = vlaneseq
  %v920 = vshrl.u32 %v919, 7
  %v921 = vsub.s32 2, %v920
  %v922 = vrot.slane %v879, %v921
  %v923 = vmul.f32 %v913, %v918
  %v924 = vmul.f32 %v913, %v922
  %v925 = vadd.f32 %v909, %v923
  %v926 = vadd.f32 %v910, %v924
  %927 = vset.pattern.permute.xlu0 3
  %928 = vperm.xlu0 %927, %v139
  %v929 = vpop.permute.xlu0 %928
  %v931 = vlaneseq
  %v932 = vshrl.u32 %v931, 7
  %v933 = vsub.s32 3, %v932
  %v934 = vrot.slane %v878, %v933
  %v935 = vlaneseq
  %v936 = vshrl.u32 %v935, 7
  %v937 = vsub.s32 3, %v936
  %v938 = vrot.slane %v879, %v937
  %v939 = vmul.f32 %v929, %v934
  %v940 = vmul.f32 %v929, %v938
  %v941 = vadd.f32 %v925, %v939
  %v942 = vadd.f32 %v926, %v940
  %944 = vset.pattern.permute.xlu0 0
  %945 = vperm.xlu0 %944, %v157
  %v946 = vpop.permute.xlu0 %945
  %v948 = vadd.f32 %v941, %v946
  %v949 = vadd.f32 %v942, %v946
  %951 = vset.pattern.permute.xlu0 0
  %952 = vperm.xlu0 %951, %v161
  %v953 = vpop.permute.xlu0 %952
  %v955 = vmul.f32 %v948, %v953
  %v956 = vmul.f32 %v949, %v953
  %v959 = vcombine.low %v955, %v956
  %v961 = vadd.f32 %v681, %v959
  %v963 = vcombine.high %v961, %v961
  %v965 = vsel %vm203, %v961, 0.0
  %v966 = vrot.slane %v965, 4
  %v967 = vadd.f32 %v965, %v966
  %v968 = vrot.slane %v967, 2
  %v969 = vadd.f32 %v967, %v968
  %v970 = vrot.slane %v969, 1
  %v971 = vadd.f32 %v969, %v970
  %v972 = vsel %vm203, %v963, 0.0
  %v973 = vrot.slane %v972, 4
  %v974 = vadd.f32 %v972, %v973
  %v975 = vrot.slane %v974, 2
  %v976 = vadd.f32 %v974, %v975
  %v977 = vrot.slane %v976, 1
  %v978 = vadd.f32 %v976, %v977
  %v979 = vmul.f32 %v971, %v218
  %v980 = vmul.f32 %v978, %v218
  %v983 = vcombine.low %v979, %v980
  %v985 = vsub.f32 %v961, %v983
  %v986 = vmul.f32 %v985, %v985
  %v988 = vcombine.high %v986, %v986
  %v990 = vsel %vm203, %v986, 0.0
  %v991 = vrot.slane %v990, 4
  %v992 = vadd.f32 %v990, %v991
  %v993 = vrot.slane %v992, 2
  %v994 = vadd.f32 %v992, %v993
  %v995 = vrot.slane %v994, 1
  %v996 = vadd.f32 %v994, %v995
  %v997 = vsel %vm203, %v988, 0.0
  %v998 = vrot.slane %v997, 4
  %v999 = vadd.f32 %v997, %v998
  %v1000 = vrot.slane %v999, 2
  %v1001 = vadd.f32 %v999, %v1000
  %v1002 = vrot.slane %v1001, 1
  %v1003 = vadd.f32 %v1001, %v1002
  %v1004 = vmul.f32 %v996, %v218
  %v1005 = vmul.f32 %v1003, %v218
  %v1006 = vadd.f32 %v1004, 1e-06
  %v1007 = vadd.f32 %v1005, 1e-06
  %v1008 = vrsqrt.pop %v1006
  %v1009 = vrsqrt.pop %v1007
  %v1012 = vcombine.low %v1008, %v1009
  %v1014 = vmul.f32 %v985, %v1012
  %1016 = vset.pattern.permute.xlu0 0
  %1017 = vperm.xlu0 %1016, %v180
  %v1018 = vpop.permute.xlu0 %1017
  %v1020 = vunpack.c.l.s4 839922192
  %v1021 = vunpack.c.0.s8 %v1020
  %v1022 = vlaneseq
  %v1023 = vshrl.u32 %v1022, 7
  %v1024 = vsub.s32 %v1021, %v1023
  %v1025 = vrot.slane %v1018, %v1024
  %v1027 = vmul.f32 %v1014, %v1025
  %1029 = vset.pattern.permute.xlu0 0
  %1030 = vperm.xlu0 %1029, %v182
  %v1031 = vpop.permute.xlu0 %1030
  %v1033 = vunpack.c.l.s4 839922192
  %v1034 = vunpack.c.0.s8 %v1033
  %v1035 = vlaneseq
  %v1036 = vshrl.u32 %v1035, 7
  %v1037 = vsub.s32 %v1034, %v1036
  %v1038 = vrot.slane %v1031, %v1037
  %v1040 = vadd.f32 %v1027, %v1038
  %1042 = vset.pattern.permute.xlu0 0
  %1043 = vperm.xlu0 %1042, %v164
  %v1044 = vpop.permute.xlu0 %1043
  %v1047 = vlaneseq
  %v1048 = vshrl.u32 %v1047, 7
  %v1049 = vsub.s32 0, %v1048
  %v1050 = vrot.slane %v1040, %v1049
  %v1051 = vlaneseq
  %v1052 = vshrl.u32 %v1051, 7
  %v1053 = vsub.s32 4, %v1052
  %v1054 = vrot.slane %v1040, %v1053
  %v1057 = vlaneseq
  %v1058 = vshrl.u32 %v1057, 7
  %v1059 = vsub.s32 0, %v1058
  %v1060 = vrot.slane %v1050, %v1059
  %v1061 = vlaneseq
  %v1062 = vshrl.u32 %v1061, 7
  %v1063 = vsub.s32 0, %v1062
  %v1064 = vrot.slane %v1054, %v1063
  %v1065 = vmul.f32 %v1044, %v1060
  %v1066 = vmul.f32 %v1044, %v1064
  %1067 = vset.pattern.permute.xlu0 1
  %1068 = vperm.xlu0 %1067, %v164
  %v1069 = vpop.permute.xlu0 %1068
  %v1071 = vlaneseq
  %v1072 = vshrl.u32 %v1071, 7
  %v1073 = vsub.s32 1, %v1072
  %v1074 = vrot.slane %v1040, %v1073
  %v1075 = vlaneseq
  %v1076 = vshrl.u32 %v1075, 7
  %v1077 = vsub.s32 5, %v1076
  %v1078 = vrot.slane %v1040, %v1077
  %v1081 = vlaneseq
  %v1082 = vshrl.u32 %v1081, 7
  %v1083 = vsub.s32 1, %v1082
  %v1084 = vrot.slane %v1074, %v1083
  %v1085 = vlaneseq
  %v1086 = vshrl.u32 %v1085, 7
  %v1087 = vsub.s32 1, %v1086
  %v1088 = vrot.slane %v1078, %v1087
  %v1089 = vmul.f32 %v1069, %v1084
  %v1090 = vmul.f32 %v1069, %v1088
  %v1091 = vadd.f32 %v1065, %v1089
  %v1092 = vadd.f32 %v1066, %v1090
  %1093 = vset.pattern.permute.xlu0 2
  %1094 = vperm.xlu0 %1093, %v164
  %v1095 = vpop.permute.xlu0 %1094
  %v1097 = vlaneseq
  %v1098 = vshrl.u32 %v1097, 7
  %v1099 = vsub.s32 2, %v1098
  %v1100 = vrot.slane %v1040, %v1099
  %v1101 = vlaneseq
  %v1102 = vshrl.u32 %v1101, 7
  %v1103 = vsub.s32 6, %v1102
  %v1104 = vrot.slane %v1040, %v1103
  %v1107 = vlaneseq
  %v1108 = vshrl.u32 %v1107, 7
  %v1109 = vsub.s32 2, %v1108
  %v1110 = vrot.slane %v1100, %v1109
  %v1111 = vlaneseq
  %v1112 = vshrl.u32 %v1111, 7
  %v1113 = vsub.s32 2, %v1112
  %v1114 = vrot.slane %v1104, %v1113
  %v1115 = vmul.f32 %v1095, %v1110
  %v1116 = vmul.f32 %v1095, %v1114
  %v1117 = vadd.f32 %v1091, %v1115
  %v1118 = vadd.f32 %v1092, %v1116
  %1119 = vset.pattern.permute.xlu0 3
  %1120 = vperm.xlu0 %1119, %v164
  %v1121 = vpop.permute.xlu0 %1120
  %v1123 = vlaneseq
  %v1124 = vshrl.u32 %v1123, 7
  %v1125 = vsub.s32 3, %v1124
  %v1126 = vrot.slane %v1040, %v1125
  %v1127 = vlaneseq
  %v1128 = vshrl.u32 %v1127, 7
  %v1129 = vsub.s32 7, %v1128
  %v1130 = vrot.slane %v1040, %v1129
  %v1133 = vlaneseq
  %v1134 = vshrl.u32 %v1133, 7
  %v1135 = vsub.s32 3, %v1134
  %v1136 = vrot.slane %v1126, %v1135
  %v1137 = vlaneseq
  %v1138 = vshrl.u32 %v1137, 7
  %v1139 = vsub.s32 3, %v1138
  %v1140 = vrot.slane %v1130, %v1139
  %v1141 = vmul.f32 %v1121, %v1136
  %v1142 = vmul.f32 %v1121, %v1140
  %v1143 = vadd.f32 %v1117, %v1141
  %v1144 = vadd.f32 %v1118, %v1142
  %1146 = vset.pattern.permute.xlu0 0
  %1147 = vperm.xlu0 %1146, %v174
  %v1148 = vpop.permute.xlu0 %1147
  %v1150 = vadd.f32 %v1143, %v1148
  %v1151 = vadd.f32 %v1144, %v1148
  %1152 = vrot.lane.b32.xlu0 %v1150, 17
  %v1153 = vpop.permute.xlu0 %1152
  %1154 = vrot.lane.b32.xlu0 %v1151, 17
  %v1155 = vpop.permute.xlu0 %1154
  %v1156 = vsel %vm396, %v1153, %v1155
  %v1157 = vsel %vm396, %v1155, %v1153
  %v1158 = vmul.f32 %v1157, %v50
  %v1159 = vmul.f32 %v1156, %v51
  %1161 = vset.pattern.permute.xlu0 0
  %1162 = vperm.xlu0 %1161, %v198
  %v1163 = vpop.permute.xlu0 %1162
  %v1165 = vmul.f32 %v1158, %v1163
  %v1166 = vmul.f32 %v1159, %v1163
  %1167 = vrot.lane.b32.xlu0 %v1150, 16
  %v1168 = vpop.permute.xlu0 %1167
  %1169 = vrot.lane.b32.xlu0 %v1151, 16
  %v1170 = vpop.permute.xlu0 %1169
  %v1171 = vsel %vm412, %v1168, %v1170
  %v1172 = vsel %vm412, %v1170, %v1168
  %v1173 = vmul.f32 %v1172, %v62
  %v1174 = vmul.f32 %v1171, %v63
  %1175 = vset.pattern.permute.xlu0 1
  %1176 = vperm.xlu0 %1175, %v198
  %v1177 = vpop.permute.xlu0 %1176
  %v1179 = vmul.f32 %v1173, %v1177
  %v1180 = vmul.f32 %v1174, %v1177
  %v1181 = vadd.f32 %v1165, %v1179
  %v1182 = vadd.f32 %v1166, %v1180
  %1183 = vrot.lane.b32.xlu0 %v1150, 15
  %v1184 = vpop.permute.xlu0 %1183
  %1185 = vrot.lane.b32.xlu0 %v1151, 15
  %v1186 = vpop.permute.xlu0 %1185
  %v1187 = vsel %vm429, %v1184, %v1186
  %v1188 = vsel %vm429, %v1186, %v1184
  %v1189 = vmul.f32 %v1188, %v76
  %v1190 = vmul.f32 %v1187, %v77
  %1191 = vset.pattern.permute.xlu0 2
  %1192 = vperm.xlu0 %1191, %v198
  %v1193 = vpop.permute.xlu0 %1192
  %v1195 = vmul.f32 %v1189, %v1193
  %v1196 = vmul.f32 %v1190, %v1193
  %v1197 = vadd.f32 %v1181, %v1195
  %v1198 = vadd.f32 %v1182, %v1196
  %1199 = vrot.lane.b32.xlu0 %v1150, 1
  %v1200 = vpop.permute.xlu0 %1199
  %1201 = vrot.lane.b32.xlu0 %v1151, 1
  %v1202 = vpop.permute.xlu0 %1201
  %v1203 = vsel %vm446, %v1200, %v1202
  %v1204 = vsel %vm446, %v1202, %v1200
  %v1205 = vmul.f32 %v1204, %v90
  %v1206 = vmul.f32 %v1203, %v91
  %1207 = vset.pattern.permute.xlu0 3
  %1208 = vperm.xlu0 %1207, %v198
  %v1209 = vpop.permute.xlu0 %1208
  %v1211 = vmul.f32 %v1205, %v1209
  %v1212 = vmul.f32 %v1206, %v1209
  %v1213 = vadd.f32 %v1197, %v1211
  %v1214 = vadd.f32 %v1198, %v1212
  %1215 = vset.pattern.permute.xlu0 4
  %1216 = vperm.xlu0 %1215, %v198
  %v1217 = vpop.permute.xlu0 %1216
  %v1219 = vmul.f32 %v1150, %v1217
  %v1220 = vmul.f32 %v1151, %v1217
  %v1221 = vadd.f32 %v1213, %v1219
  %v1222 = vadd.f32 %v1214, %v1220
  %1223 = vrot.lane.b32.xlu0 %v1150, 127
  %v1224 = vpop.permute.xlu0 %1223
  %1225 = vrot.lane.b32.xlu0 %v1151, 127
  %v1226 = vpop.permute.xlu0 %1225
  %v1227 = vsel %vm471, %v1224, %v1226
  %v1228 = vsel %vm471, %v1226, %v1224
  %v1229 = vmul.f32 %v1227, %v98
  %v1230 = vmul.f32 %v1228, %v99
  %1231 = vset.pattern.permute.xlu0 5
  %1232 = vperm.xlu0 %1231, %v198
  %v1233 = vpop.permute.xlu0 %1232
  %v1235 = vmul.f32 %v1229, %v1233
  %v1236 = vmul.f32 %v1230, %v1233
  %v1237 = vadd.f32 %v1221, %v1235
  %v1238 = vadd.f32 %v1222, %v1236
  %1239 = vrot.lane.b32.xlu0 %v1150, 113
  %v1240 = vpop.permute.xlu0 %1239
  %1241 = vrot.lane.b32.xlu0 %v1151, 113
  %v1242 = vpop.permute.xlu0 %1241
  %v1243 = vsel %vm488, %v1240, %v1242
  %v1244 = vsel %vm488, %v1242, %v1240
  %v1245 = vmul.f32 %v1243, %v114
  %v1246 = vmul.f32 %v1244, %v115
  %1247 = vset.pattern.permute.xlu0 6
  %1248 = vperm.xlu0 %1247, %v198
  %v1249 = vpop.permute.xlu0 %1248
  %v1251 = vmul.f32 %v1245, %v1249
  %v1252 = vmul.f32 %v1246, %v1249
  %v1253 = vadd.f32 %v1237, %v1251
  %v1254 = vadd.f32 %v1238, %v1252
  %1255 = vrot.lane.b32.xlu0 %v1150, 112
  %v1256 = vpop.permute.xlu0 %1255
  %1257 = vrot.lane.b32.xlu0 %v1151, 112
  %v1258 = vpop.permute.xlu0 %1257
  %v1259 = vsel %vm505, %v1256, %v1258
  %v1260 = vsel %vm505, %v1258, %v1256
  %v1261 = vmul.f32 %v1259, %v122
  %v1262 = vmul.f32 %v1260, %v123
  %1263 = vset.pattern.permute.xlu0 7
  %1264 = vperm.xlu0 %1263, %v198
  %v1265 = vpop.permute.xlu0 %1264
  %v1267 = vmul.f32 %v1261, %v1265
  %v1268 = vmul.f32 %v1262, %v1265
  %v1269 = vadd.f32 %v1253, %v1267
  %v1270 = vadd.f32 %v1254, %v1268
  %1271 = vrot.lane.b32.xlu0 %v1150, 111
  %v1272 = vpop.permute.xlu0 %1271
  %1273 = vrot.lane.b32.xlu0 %v1151, 111
  %v1274 = vpop.permute.xlu0 %1273
  %v1275 = vsel %vm522, %v1272, %v1274
  %v1276 = vsel %vm522, %v1274, %v1272
  %v1277 = vmul.f32 %v1275, %v130
  %v1278 = vmul.f32 %v1276, %v131
  %1279 = vset.pattern.permute.xlu0 8
  %1280 = vperm.xlu0 %1279, %v198
  %v1281 = vpop.permute.xlu0 %1280
  %v1283 = vmul.f32 %v1277, %v1281
  %v1284 = vmul.f32 %v1278, %v1281
  %v1285 = vadd.f32 %v1269, %v1283
  %v1286 = vadd.f32 %v1270, %v1284
  %1288 = vset.pattern.permute.xlu0 0
  %1289 = vperm.xlu0 %1288, %v176
  %v1290 = vpop.permute.xlu0 %1289
  %v1292 = vadd.f32 %v1285, %v1290
  %v1293 = vadd.f32 %v1286, %v1290
  %v1296 = vrot.slane %v1292, 4
  %v1297 = vrot.slane %v1293, 4
  %v1300 = vmul.f32 %v1292, %v1296
  %v1301 = vmul.f32 %v1293, %v1297
  %v1302 = vsel %vm203, %v1300, 0.0
  %v1303 = vsel %vm203, %v1301, 0.0
  %v1304 = vadd.f32 %v1302, %v1303
  %1305 = vadd.xlane.f32.xlu0 %v1304
  %v1306 = vpop.xlane.xlu0 %1305
  %v1307 = vmul.f32 %v1306, %v555
  %v1308 = vlaneseq
  %v1309 = vshrl.u32 %v1308, 7
  %v1310 = vsub.s32 0, %v1309
  %v1311 = vrot.slane %v1307, %v1310
  %v1312 = vmul.f32 %v168, %v1311
  %v1313 = vlaneseq
  %v1314 = vshrl.u32 %v1313, 7
  %v1315 = vsub.s32 1, %v1314
  %v1316 = vrot.slane %v1307, %v1315
  %v1317 = vmul.f32 %v168, %v1316
  %1319 = vrot.lane.b32.xlu0 %v1317, 127
  %v1320 = vpop.permute.xlu0 %1319
  %v1322 = vadd.f32 %v1312, %v1320
  %v1323 = vlaneseq
  %v1324 = vshrl.u32 %v1323, 7
  %v1325 = vsub.s32 2, %v1324
  %v1326 = vrot.slane %v1307, %v1325
  %v1327 = vmul.f32 %v168, %v1326
  %1329 = vrot.lane.b32.xlu0 %v1327, 126
  %v1330 = vpop.permute.xlu0 %1329
  %v1332 = vadd.f32 %v1322, %v1330
  %v1333 = vlaneseq
  %v1334 = vshrl.u32 %v1333, 7
  %v1335 = vsub.s32 3, %v1334
  %v1336 = vrot.slane %v1307, %v1335
  %v1337 = vmul.f32 %v168, %v1336
  %1339 = vrot.lane.b32.xlu0 %v1337, 125
  %v1340 = vpop.permute.xlu0 %1339
  %v1342 = vadd.f32 %v1332, %v1340
  %v1343 = vadd.f32 %v1342, %v188
  %1345 = vset.pattern.permute.xlu0 0
  %1346 = vperm.xlu0 %1345, %v1343
  %v1347 = vpop.permute.xlu0 %1346
  %v1349 = vmul.f32 %v1300, %v1347
  %v1350 = vmul.f32 %v1301, %v1347
  %1352 = vset.pattern.permute.xlu0 0
  %1353 = vperm.xlu0 %1352, %v170
  %v1354 = vpop.permute.xlu0 %1353
  %v1356 = vlaneseq
  %v1357 = vshrl.u32 %v1356, 7
  %v1358 = vsub.s32 0, %v1357
  %v1359 = vrot.slane %v1349, %v1358
  %v1360 = vlaneseq
  %v1361 = vshrl.u32 %v1360, 7
  %v1362 = vsub.s32 0, %v1361
  %v1363 = vrot.slane %v1350, %v1362
  %v1364 = vmul.f32 %v1354, %v1359
  %v1365 = vmul.f32 %v1354, %v1363
  %1366 = vset.pattern.permute.xlu0 1
  %1367 = vperm.xlu0 %1366, %v170
  %v1368 = vpop.permute.xlu0 %1367
  %v1370 = vlaneseq
  %v1371 = vshrl.u32 %v1370, 7
  %v1372 = vsub.s32 1, %v1371
  %v1373 = vrot.slane %v1349, %v1372
  %v1374 = vlaneseq
  %v1375 = vshrl.u32 %v1374, 7
  %v1376 = vsub.s32 1, %v1375
  %v1377 = vrot.slane %v1350, %v1376
  %v1378 = vmul.f32 %v1368, %v1373
  %v1379 = vmul.f32 %v1368, %v1377
  %v1380 = vadd.f32 %v1364, %v1378
  %v1381 = vadd.f32 %v1365, %v1379
  %1382 = vset.pattern.permute.xlu0 2
  %1383 = vperm.xlu0 %1382, %v170
  %v1384 = vpop.permute.xlu0 %1383
  %v1386 = vlaneseq
  %v1387 = vshrl.u32 %v1386, 7
  %v1388 = vsub.s32 2, %v1387
  %v1389 = vrot.slane %v1349, %v1388
  %v1390 = vlaneseq
  %v1391 = vshrl.u32 %v1390, 7
  %v1392 = vsub.s32 2, %v1391
  %v1393 = vrot.slane %v1350, %v1392
  %v1394 = vmul.f32 %v1384, %v1389
  %v1395 = vmul.f32 %v1384, %v1393
  %v1396 = vadd.f32 %v1380, %v1394
  %v1397 = vadd.f32 %v1381, %v1395
  %1398 = vset.pattern.permute.xlu0 3
  %1399 = vperm.xlu0 %1398, %v170
  %v1400 = vpop.permute.xlu0 %1399
  %v1402 = vlaneseq
  %v1403 = vshrl.u32 %v1402, 7
  %v1404 = vsub.s32 3, %v1403
  %v1405 = vrot.slane %v1349, %v1404
  %v1406 = vlaneseq
  %v1407 = vshrl.u32 %v1406, 7
  %v1408 = vsub.s32 3, %v1407
  %v1409 = vrot.slane %v1350, %v1408
  %v1410 = vmul.f32 %v1400, %v1405
  %v1411 = vmul.f32 %v1400, %v1409
  %v1412 = vadd.f32 %v1396, %v1410
  %v1413 = vadd.f32 %v1397, %v1411
  %1415 = vset.pattern.permute.xlu0 0
  %1416 = vperm.xlu0 %1415, %v190
  %v1417 = vpop.permute.xlu0 %1416
  %v1419 = vadd.f32 %v1412, %v1417
  %v1420 = vadd.f32 %v1413, %v1417
  %1422 = vset.pattern.permute.xlu0 0
  %1423 = vperm.xlu0 %1422, %v194
  %v1424 = vpop.permute.xlu0 %1423
  %v1426 = vmul.f32 %v1419, %v1424
  %v1427 = vmul.f32 %v1420, %v1424
  %v1430 = vcombine.low %v1426, %v1427
  %v1432 = vadd.f32 %v961, %v1430
  %v1434 = vcombine.high %v1432, %v1432
  %v1436 = vsel %vm203, %v1432, 0.0
  %v1437 = vrot.slane %v1436, 4
  %v1438 = vadd.f32 %v1436, %v1437
  %v1439 = vrot.slane %v1438, 2
  %v1440 = vadd.f32 %v1438, %v1439
  %v1441 = vrot.slane %v1440, 1
  %v1442 = vadd.f32 %v1440, %v1441
  %v1443 = vsel %vm203, %v1434, 0.0
  %v1444 = vrot.slane %v1443, 4
  %v1445 = vadd.f32 %v1443, %v1444
  %v1446 = vrot.slane %v1445, 2
  %v1447 = vadd.f32 %v1445, %v1446
  %v1448 = vrot.slane %v1447, 1
  %v1449 = vadd.f32 %v1447, %v1448
  %v1450 = vmul.f32 %v1442, %v218
  %v1451 = vmul.f32 %v1449, %v218
  %v1454 = vcombine.low %v1450, %v1451
  %v1456 = vsub.f32 %v1432, %v1454
  %v1457 = vmul.f32 %v1456, %v1456
  %v1459 = vcombine.high %v1457, %v1457
  %v1461 = vsel %vm203, %v1457, 0.0
  %v1462 = vrot.slane %v1461, 4
  %v1463 = vadd.f32 %v1461, %v1462
  %v1464 = vrot.slane %v1463, 2
  %v1465 = vadd.f32 %v1463, %v1464
  %v1466 = vrot.slane %v1465, 1
  %v1467 = vadd.f32 %v1465, %v1466
  %v1468 = vsel %vm203, %v1459, 0.0
  %v1469 = vrot.slane %v1468, 4
  %v1470 = vadd.f32 %v1468, %v1469
  %v1471 = vrot.slane %v1470, 2
  %v1472 = vadd.f32 %v1470, %v1471
  %v1473 = vrot.slane %v1472, 1
  %v1474 = vadd.f32 %v1472, %v1473
  %v1475 = vmul.f32 %v1467, %v218
  %v1476 = vmul.f32 %v1474, %v218
  %v1477 = vadd.f32 %v1475, 1e-06
  %v1478 = vadd.f32 %v1476, 1e-06
  %v1479 = vrsqrt.pop %v1477
  %v1480 = vrsqrt.pop %v1478
  %v1483 = vcombine.low %v1479, %v1480
  %v1485 = vmul.f32 %v1456, %v1483
  %1487 = vset.pattern.permute.xlu0 0
  %1488 = vperm.xlu0 %1487, %v184
  %v1489 = vpop.permute.xlu0 %1488
  %v1491 = vunpack.c.l.s4 839922192
  %v1492 = vunpack.c.0.s8 %v1491
  %v1493 = vlaneseq
  %v1494 = vshrl.u32 %v1493, 7
  %v1495 = vsub.s32 %v1492, %v1494
  %v1496 = vrot.slane %v1489, %v1495
  %v1498 = vmul.f32 %v1485, %v1496
  %1500 = vset.pattern.permute.xlu0 0
  %1501 = vperm.xlu0 %1500, %v186
  %v1502 = vpop.permute.xlu0 %1501
  %v1504 = vunpack.c.l.s4 839922192
  %v1505 = vunpack.c.0.s8 %v1504
  %v1506 = vlaneseq
  %v1507 = vshrl.u32 %v1506, 7
  %v1508 = vsub.s32 %v1505, %v1507
  %v1509 = vrot.slane %v1502, %v1508
  %v1511 = vadd.f32 %v1498, %v1509
  %1513 = vset.pattern.permute.xlu0 0
  %1514 = vperm.xlu0 %1513, %v166
  %v1515 = vpop.permute.xlu0 %1514
  %v1518 = vlaneseq
  %v1519 = vshrl.u32 %v1518, 7
  %v1520 = vsub.s32 0, %v1519
  %v1521 = vrot.slane %v1511, %v1520
  %v1522 = vlaneseq
  %v1523 = vshrl.u32 %v1522, 7
  %v1524 = vsub.s32 4, %v1523
  %v1525 = vrot.slane %v1511, %v1524
  %v1528 = vlaneseq
  %v1529 = vshrl.u32 %v1528, 7
  %v1530 = vsub.s32 0, %v1529
  %v1531 = vrot.slane %v1521, %v1530
  %v1532 = vlaneseq
  %v1533 = vshrl.u32 %v1532, 7
  %v1534 = vsub.s32 0, %v1533
  %v1535 = vrot.slane %v1525, %v1534
  %v1536 = vmul.f32 %v1515, %v1531
  %v1537 = vmul.f32 %v1515, %v1535
  %1538 = vset.pattern.permute.xlu0 1
  %1539 = vperm.xlu0 %1538, %v166
  %v1540 = vpop.permute.xlu0 %1539
  %v1542 = vlaneseq
  %v1543 = vshrl.u32 %v1542, 7
  %v1544 = vsub.s32 1, %v1543
  %v1545 = vrot.slane %v1511, %v1544
  %v1546 = vlaneseq
  %v1547 = vshrl.u32 %v1546, 7
  %v1548 = vsub.s32 5, %v1547
  %v1549 = vrot.slane %v1511, %v1548
  %v1552 = vlaneseq
  %v1553 = vshrl.u32 %v1552, 7
  %v1554 = vsub.s32 1, %v1553
  %v1555 = vrot.slane %v1545, %v1554
  %v1556 = vlaneseq
  %v1557 = vshrl.u32 %v1556, 7
  %v1558 = vsub.s32 1, %v1557
  %v1559 = vrot.slane %v1549, %v1558
  %v1560 = vmul.f32 %v1540, %v1555
  %v1561 = vmul.f32 %v1540, %v1559
  %v1562 = vadd.f32 %v1536, %v1560
  %v1563 = vadd.f32 %v1537, %v1561
  %1564 = vset.pattern.permute.xlu0 2
  %1565 = vperm.xlu0 %1564, %v166
  %v1566 = vpop.permute.xlu0 %1565
  %v1568 = vlaneseq
  %v1569 = vshrl.u32 %v1568, 7
  %v1570 = vsub.s32 2, %v1569
  %v1571 = vrot.slane %v1511, %v1570
  %v1572 = vlaneseq
  %v1573 = vshrl.u32 %v1572, 7
  %v1574 = vsub.s32 6, %v1573
  %v1575 = vrot.slane %v1511, %v1574
  %v1578 = vlaneseq
  %v1579 = vshrl.u32 %v1578, 7
  %v1580 = vsub.s32 2, %v1579
  %v1581 = vrot.slane %v1571, %v1580
  %v1582 = vlaneseq
  %v1583 = vshrl.u32 %v1582, 7
  %v1584 = vsub.s32 2, %v1583
  %v1585 = vrot.slane %v1575, %v1584
  %v1586 = vmul.f32 %v1566, %v1581
  %v1587 = vmul.f32 %v1566, %v1585
  %v1588 = vadd.f32 %v1562, %v1586
  %v1589 = vadd.f32 %v1563, %v1587
  %1590 = vset.pattern.permute.xlu0 3
  %1591 = vperm.xlu0 %1590, %v166
  %v1592 = vpop.permute.xlu0 %1591
  %v1594 = vlaneseq
  %v1595 = vshrl.u32 %v1594, 7
  %v1596 = vsub.s32 3, %v1595
  %v1597 = vrot.slane %v1511, %v1596
  %v1598 = vlaneseq
  %v1599 = vshrl.u32 %v1598, 7
  %v1600 = vsub.s32 7, %v1599
  %v1601 = vrot.slane %v1511, %v1600
  %v1604 = vlaneseq
  %v1605 = vshrl.u32 %v1604, 7
  %v1606 = vsub.s32 3, %v1605
  %v1607 = vrot.slane %v1597, %v1606
  %v1608 = vlaneseq
  %v1609 = vshrl.u32 %v1608, 7
  %v1610 = vsub.s32 3, %v1609
  %v1611 = vrot.slane %v1601, %v1610
  %v1612 = vmul.f32 %v1592, %v1607
  %v1613 = vmul.f32 %v1592, %v1611
  %v1614 = vadd.f32 %v1588, %v1612
  %v1615 = vadd.f32 %v1589, %v1613
  %1617 = vset.pattern.permute.xlu0 0
  %1618 = vperm.xlu0 %1617, %v178
  %v1619 = vpop.permute.xlu0 %1618
  %v1621 = vadd.f32 %v1614, %v1619
  %v1622 = vadd.f32 %v1615, %v1619
  %v1625 = vrot.slane %v1621, 4
  %v1626 = vrot.slane %v1622, 4
  %v1629 = vmul.f32 %v1621, %v1625
  %v1630 = vmul.f32 %v1622, %v1626
  %1632 = vset.pattern.permute.xlu0 0
  %1633 = vperm.xlu0 %1632, %v172
  %v1634 = vpop.permute.xlu0 %1633
  %v1636 = vlaneseq
  %v1637 = vshrl.u32 %v1636, 7
  %v1638 = vsub.s32 0, %v1637
  %v1639 = vrot.slane %v1629, %v1638
  %v1640 = vlaneseq
  %v1641 = vshrl.u32 %v1640, 7
  %v1642 = vsub.s32 0, %v1641
  %v1643 = vrot.slane %v1630, %v1642
  %v1644 = vmul.f32 %v1634, %v1639
  %v1645 = vmul.f32 %v1634, %v1643
  %1646 = vset.pattern.permute.xlu0 1
  %1647 = vperm.xlu0 %1646, %v172
  %v1648 = vpop.permute.xlu0 %1647
  %v1650 = vlaneseq
  %v1651 = vshrl.u32 %v1650, 7
  %v1652 = vsub.s32 1, %v1651
  %v1653 = vrot.slane %v1629, %v1652
  %v1654 = vlaneseq
  %v1655 = vshrl.u32 %v1654, 7
  %v1656 = vsub.s32 1, %v1655
  %v1657 = vrot.slane %v1630, %v1656
  %v1658 = vmul.f32 %v1648, %v1653
  %v1659 = vmul.f32 %v1648, %v1657
  %v1660 = vadd.f32 %v1644, %v1658
  %v1661 = vadd.f32 %v1645, %v1659
  %1662 = vset.pattern.permute.xlu0 2
  %1663 = vperm.xlu0 %1662, %v172
  %v1664 = vpop.permute.xlu0 %1663
  %v1666 = vlaneseq
  %v1667 = vshrl.u32 %v1666, 7
  %v1668 = vsub.s32 2, %v1667
  %v1669 = vrot.slane %v1629, %v1668
  %v1670 = vlaneseq
  %v1671 = vshrl.u32 %v1670, 7
  %v1672 = vsub.s32 2, %v1671
  %v1673 = vrot.slane %v1630, %v1672
  %v1674 = vmul.f32 %v1664, %v1669
  %v1675 = vmul.f32 %v1664, %v1673
  %v1676 = vadd.f32 %v1660, %v1674
  %v1677 = vadd.f32 %v1661, %v1675
  %1678 = vset.pattern.permute.xlu0 3
  %1679 = vperm.xlu0 %1678, %v172
  %v1680 = vpop.permute.xlu0 %1679
  %v1682 = vlaneseq
  %v1683 = vshrl.u32 %v1682, 7
  %v1684 = vsub.s32 3, %v1683
  %v1685 = vrot.slane %v1629, %v1684
  %v1686 = vlaneseq
  %v1687 = vshrl.u32 %v1686, 7
  %v1688 = vsub.s32 3, %v1687
  %v1689 = vrot.slane %v1630, %v1688
  %v1690 = vmul.f32 %v1680, %v1685
  %v1691 = vmul.f32 %v1680, %v1689
  %v1692 = vadd.f32 %v1676, %v1690
  %v1693 = vadd.f32 %v1677, %v1691
  %1695 = vset.pattern.permute.xlu0 0
  %1696 = vperm.xlu0 %1695, %v192
  %v1697 = vpop.permute.xlu0 %1696
  %v1699 = vadd.f32 %v1692, %v1697
  %v1700 = vadd.f32 %v1693, %v1697
  %1702 = vset.pattern.permute.xlu0 0
  %1703 = vperm.xlu0 %1702, %v196
  %v1704 = vpop.permute.xlu0 %1703
  %v1706 = vmul.f32 %v1699, %v1704
  %v1707 = vmul.f32 %v1700, %v1704
  %v1710 = vcombine.low %v1706, %v1707
  %v1712 = vadd.f32 %v1432, %v1710
  %1713 = vst [vmem:[%s6] sm:$0xff] %v1712
  %s1714 = scalar_lea.vmem %s0, 8
  %v1715 = vld [vmem:[%s1714] sm:$0xff]
  %v1717 = vcombine.high %v1715, %v1715
  %v1719 = vsel %vm203, %v1715, 0.0
  %v1720 = vrot.slane %v1719, 4
  %v1721 = vadd.f32 %v1719, %v1720
  %v1722 = vrot.slane %v1721, 2
  %v1723 = vadd.f32 %v1721, %v1722
  %v1724 = vrot.slane %v1723, 1
  %v1725 = vadd.f32 %v1723, %v1724
  %v1726 = vsel %vm203, %v1717, 0.0
  %v1727 = vrot.slane %v1726, 4
  %v1728 = vadd.f32 %v1726, %v1727
  %v1729 = vrot.slane %v1728, 2
  %v1730 = vadd.f32 %v1728, %v1729
  %v1731 = vrot.slane %v1730, 1
  %v1732 = vadd.f32 %v1730, %v1731
  %v1733 = vmul.f32 %v1725, %v218
  %v1734 = vmul.f32 %v1732, %v218
  %v1737 = vcombine.low %v1733, %v1734
  %v1739 = vsub.f32 %v1715, %v1737
  %v1740 = vmul.f32 %v1739, %v1739
  %v1742 = vcombine.high %v1740, %v1740
  %v1744 = vsel %vm203, %v1740, 0.0
  %v1745 = vrot.slane %v1744, 4
  %v1746 = vadd.f32 %v1744, %v1745
  %v1747 = vrot.slane %v1746, 2
  %v1748 = vadd.f32 %v1746, %v1747
  %v1749 = vrot.slane %v1748, 1
  %v1750 = vadd.f32 %v1748, %v1749
  %v1751 = vsel %vm203, %v1742, 0.0
  %v1752 = vrot.slane %v1751, 4
  %v1753 = vadd.f32 %v1751, %v1752
  %v1754 = vrot.slane %v1753, 2
  %v1755 = vadd.f32 %v1753, %v1754
  %v1756 = vrot.slane %v1755, 1
  %v1757 = vadd.f32 %v1755, %v1756
  %v1758 = vmul.f32 %v1750, %v218
  %v1759 = vmul.f32 %v1757, %v218
  %v1760 = vadd.f32 %v1758, 1e-06
  %v1761 = vadd.f32 %v1759, 1e-06
  %v1762 = vrsqrt.pop %v1760
  %v1763 = vrsqrt.pop %v1761
  %v1766 = vcombine.low %v1762, %v1763
  %v1768 = vmul.f32 %v1739, %v1766
  %v1769 = vmul.f32 %v1768, %v265
  %v1770 = vadd.f32 %v1769, %v278
  %v1772 = vlaneseq
  %v1773 = vshrl.u32 %v1772, 7
  %v1774 = vsub.s32 0, %v1773
  %v1775 = vrot.slane %v1770, %v1774
  %v1776 = vlaneseq
  %v1777 = vshrl.u32 %v1776, 7
  %v1778 = vsub.s32 4, %v1777
  %v1779 = vrot.slane %v1770, %v1778
  %v1782 = vlaneseq
  %v1783 = vshrl.u32 %v1782, 7
  %v1784 = vsub.s32 0, %v1783
  %v1785 = vrot.slane %v1775, %v1784
  %v1786 = vlaneseq
  %v1787 = vshrl.u32 %v1786, 7
  %v1788 = vsub.s32 0, %v1787
  %v1789 = vrot.slane %v1779, %v1788
  %v1790 = vmul.f32 %v284, %v1785
  %v1791 = vmul.f32 %v284, %v1789
  %v1792 = vlaneseq
  %v1793 = vshrl.u32 %v1792, 7
  %v1794 = vsub.s32 1, %v1793
  %v1795 = vrot.slane %v1770, %v1794
  %v1796 = vlaneseq
  %v1797 = vshrl.u32 %v1796, 7
  %v1798 = vsub.s32 5, %v1797
  %v1799 = vrot.slane %v1770, %v1798
  %v1802 = vlaneseq
  %v1803 = vshrl.u32 %v1802, 7
  %v1804 = vsub.s32 1, %v1803
  %v1805 = vrot.slane %v1795, %v1804
  %v1806 = vlaneseq
  %v1807 = vshrl.u32 %v1806, 7
  %v1808 = vsub.s32 1, %v1807
  %v1809 = vrot.slane %v1799, %v1808
  %v1810 = vmul.f32 %v309, %v1805
  %v1811 = vmul.f32 %v309, %v1809
  %v1812 = vadd.f32 %v1790, %v1810
  %v1813 = vadd.f32 %v1791, %v1811
  %v1814 = vlaneseq
  %v1815 = vshrl.u32 %v1814, 7
  %v1816 = vsub.s32 2, %v1815
  %v1817 = vrot.slane %v1770, %v1816
  %v1818 = vlaneseq
  %v1819 = vshrl.u32 %v1818, 7
  %v1820 = vsub.s32 6, %v1819
  %v1821 = vrot.slane %v1770, %v1820
  %v1824 = vlaneseq
  %v1825 = vshrl.u32 %v1824, 7
  %v1826 = vsub.s32 2, %v1825
  %v1827 = vrot.slane %v1817, %v1826
  %v1828 = vlaneseq
  %v1829 = vshrl.u32 %v1828, 7
  %v1830 = vsub.s32 2, %v1829
  %v1831 = vrot.slane %v1821, %v1830
  %v1832 = vmul.f32 %v335, %v1827
  %v1833 = vmul.f32 %v335, %v1831
  %v1834 = vadd.f32 %v1812, %v1832
  %v1835 = vadd.f32 %v1813, %v1833
  %v1836 = vlaneseq
  %v1837 = vshrl.u32 %v1836, 7
  %v1838 = vsub.s32 3, %v1837
  %v1839 = vrot.slane %v1770, %v1838
  %v1840 = vlaneseq
  %v1841 = vshrl.u32 %v1840, 7
  %v1842 = vsub.s32 7, %v1841
  %v1843 = vrot.slane %v1770, %v1842
  %v1846 = vlaneseq
  %v1847 = vshrl.u32 %v1846, 7
  %v1848 = vsub.s32 3, %v1847
  %v1849 = vrot.slane %v1839, %v1848
  %v1850 = vlaneseq
  %v1851 = vshrl.u32 %v1850, 7
  %v1852 = vsub.s32 3, %v1851
  %v1853 = vrot.slane %v1843, %v1852
  %v1854 = vmul.f32 %v361, %v1849
  %v1855 = vmul.f32 %v361, %v1853
  %v1856 = vadd.f32 %v1834, %v1854
  %v1857 = vadd.f32 %v1835, %v1855
  %v1858 = vadd.f32 %v1856, %v388
  %v1859 = vadd.f32 %v1857, %v388
  %1860 = vrot.lane.b32.xlu0 %v1858, 17
  %v1861 = vpop.permute.xlu0 %1860
  %1862 = vrot.lane.b32.xlu0 %v1859, 17
  %v1863 = vpop.permute.xlu0 %1862
  %v1864 = vsel %vm396, %v1861, %v1863
  %v1865 = vsel %vm396, %v1863, %v1861
  %v1866 = vmul.f32 %v1865, %v50
  %v1867 = vmul.f32 %v1864, %v51
  %v1868 = vmul.f32 %v1866, %v404
  %v1869 = vmul.f32 %v1867, %v404
  %1870 = vrot.lane.b32.xlu0 %v1858, 16
  %v1871 = vpop.permute.xlu0 %1870
  %1872 = vrot.lane.b32.xlu0 %v1859, 16
  %v1873 = vpop.permute.xlu0 %1872
  %v1874 = vsel %vm412, %v1871, %v1873
  %v1875 = vsel %vm412, %v1873, %v1871
  %v1876 = vmul.f32 %v1875, %v62
  %v1877 = vmul.f32 %v1874, %v63
  %v1878 = vmul.f32 %v1876, %v419
  %v1879 = vmul.f32 %v1877, %v419
  %v1880 = vadd.f32 %v1868, %v1878
  %v1881 = vadd.f32 %v1869, %v1879
  %1882 = vrot.lane.b32.xlu0 %v1858, 15
  %v1883 = vpop.permute.xlu0 %1882
  %1884 = vrot.lane.b32.xlu0 %v1859, 15
  %v1885 = vpop.permute.xlu0 %1884
  %v1886 = vsel %vm429, %v1883, %v1885
  %v1887 = vsel %vm429, %v1885, %v1883
  %v1888 = vmul.f32 %v1887, %v76
  %v1889 = vmul.f32 %v1886, %v77
  %v1890 = vmul.f32 %v1888, %v436
  %v1891 = vmul.f32 %v1889, %v436
  %v1892 = vadd.f32 %v1880, %v1890
  %v1893 = vadd.f32 %v1881, %v1891
  %1894 = vrot.lane.b32.xlu0 %v1858, 1
  %v1895 = vpop.permute.xlu0 %1894
  %1896 = vrot.lane.b32.xlu0 %v1859, 1
  %v1897 = vpop.permute.xlu0 %1896
  %v1898 = vsel %vm446, %v1895, %v1897
  %v1899 = vsel %vm446, %v1897, %v1895
  %v1900 = vmul.f32 %v1899, %v90
  %v1901 = vmul.f32 %v1898, %v91
  %v1902 = vmul.f32 %v1900, %v453
  %v1903 = vmul.f32 %v1901, %v453
  %v1904 = vadd.f32 %v1892, %v1902
  %v1905 = vadd.f32 %v1893, %v1903
  %v1906 = vmul.f32 %v1858, %v461
  %v1907 = vmul.f32 %v1859, %v461
  %v1908 = vadd.f32 %v1904, %v1906
  %v1909 = vadd.f32 %v1905, %v1907
  %1910 = vrot.lane.b32.xlu0 %v1858, 127
  %v1911 = vpop.permute.xlu0 %1910
  %1912 = vrot.lane.b32.xlu0 %v1859, 127
  %v1913 = vpop.permute.xlu0 %1912
  %v1914 = vsel %vm471, %v1911, %v1913
  %v1915 = vsel %vm471, %v1913, %v1911
  %v1916 = vmul.f32 %v1914, %v98
  %v1917 = vmul.f32 %v1915, %v99
  %v1918 = vmul.f32 %v1916, %v478
  %v1919 = vmul.f32 %v1917, %v478
  %v1920 = vadd.f32 %v1908, %v1918
  %v1921 = vadd.f32 %v1909, %v1919
  %1922 = vrot.lane.b32.xlu0 %v1858, 113
  %v1923 = vpop.permute.xlu0 %1922
  %1924 = vrot.lane.b32.xlu0 %v1859, 113
  %v1925 = vpop.permute.xlu0 %1924
  %v1926 = vsel %vm488, %v1923, %v1925
  %v1927 = vsel %vm488, %v1925, %v1923
  %v1928 = vmul.f32 %v1926, %v114
  %v1929 = vmul.f32 %v1927, %v115
  %v1930 = vmul.f32 %v1928, %v495
  %v1931 = vmul.f32 %v1929, %v495
  %v1932 = vadd.f32 %v1920, %v1930
  %v1933 = vadd.f32 %v1921, %v1931
  %1934 = vrot.lane.b32.xlu0 %v1858, 112
  %v1935 = vpop.permute.xlu0 %1934
  %1936 = vrot.lane.b32.xlu0 %v1859, 112
  %v1937 = vpop.permute.xlu0 %1936
  %v1938 = vsel %vm505, %v1935, %v1937
  %v1939 = vsel %vm505, %v1937, %v1935
  %v1940 = vmul.f32 %v1938, %v122
  %v1941 = vmul.f32 %v1939, %v123
  %v1942 = vmul.f32 %v1940, %v512
  %v1943 = vmul.f32 %v1941, %v512
  %v1944 = vadd.f32 %v1932, %v1942
  %v1945 = vadd.f32 %v1933, %v1943
  %1946 = vrot.lane.b32.xlu0 %v1858, 111
  %v1947 = vpop.permute.xlu0 %1946
  %1948 = vrot.lane.b32.xlu0 %v1859, 111
  %v1949 = vpop.permute.xlu0 %1948
  %v1950 = vsel %vm522, %v1947, %v1949
  %v1951 = vsel %vm522, %v1949, %v1947
  %v1952 = vmul.f32 %v1950, %v130
  %v1953 = vmul.f32 %v1951, %v131
  %v1954 = vmul.f32 %v1952, %v529
  %v1955 = vmul.f32 %v1953, %v529
  %v1956 = vadd.f32 %v1944, %v1954
  %v1957 = vadd.f32 %v1945, %v1955
  %v1958 = vadd.f32 %v1956, %v538
  %v1959 = vadd.f32 %v1957, %v538
  %v1962 = vrot.slane %v1958, 4
  %v1963 = vrot.slane %v1959, 4
  %v1966 = vmul.f32 %v1958, %v1962
  %v1967 = vmul.f32 %v1959, %v1963
  %v1968 = vsel %vm203, %v1966, 0.0
  %v1969 = vsel %vm203, %v1967, 0.0
  %v1970 = vadd.f32 %v1968, %v1969
  %1971 = vadd.xlane.f32.xlu0 %v1970
  %v1972 = vpop.xlane.xlu0 %1971
  %v1973 = vmul.f32 %v1972, %v555
  %v1974 = vlaneseq
  %v1975 = vshrl.u32 %v1974, 7
  %v1976 = vsub.s32 0, %v1975
  %v1977 = vrot.slane %v1973, %v1976
  %v1978 = vmul.f32 %v135, %v1977
  %v1979 = vlaneseq
  %v1980 = vshrl.u32 %v1979, 7
  %v1981 = vsub.s32 1, %v1980
  %v1982 = vrot.slane %v1973, %v1981
  %v1983 = vmul.f32 %v135, %v1982
  %1985 = vrot.lane.b32.xlu0 %v1983, 127
  %v1986 = vpop.permute.xlu0 %1985
  %v1988 = vadd.f32 %v1978, %v1986
  %v1989 = vlaneseq
  %v1990 = vshrl.u32 %v1989, 7
  %v1991 = vsub.s32 2, %v1990
  %v1992 = vrot.slane %v1973, %v1991
  %v1993 = vmul.f32 %v135, %v1992
  %1995 = vrot.lane.b32.xlu0 %v1993, 126
  %v1996 = vpop.permute.xlu0 %1995
  %v1998 = vadd.f32 %v1988, %v1996
  %v1999 = vlaneseq
  %v2000 = vshrl.u32 %v1999, 7
  %v2001 = vsub.s32 3, %v2000
  %v2002 = vrot.slane %v1973, %v2001
  %v2003 = vmul.f32 %v135, %v2002
  %2005 = vrot.lane.b32.xlu0 %v2003, 125
  %v2006 = vpop.permute.xlu0 %2005
  %v2008 = vadd.f32 %v1998, %v2006
  %v2009 = vadd.f32 %v2008, %v153
  %2011 = vset.pattern.permute.xlu0 0
  %2012 = vperm.xlu0 %2011, %v2009
  %v2013 = vpop.permute.xlu0 %2012
  %v2015 = vmul.f32 %v1966, %v2013
  %v2016 = vmul.f32 %v1967, %v2013
  %v2017 = vlaneseq
  %v2018 = vshrl.u32 %v2017, 7
  %v2019 = vsub.s32 0, %v2018
  %v2020 = vrot.slane %v2015, %v2019
  %v2021 = vlaneseq
  %v2022 = vshrl.u32 %v2021, 7
  %v2023 = vsub.s32 0, %v2022
  %v2024 = vrot.slane %v2016, %v2023
  %v2025 = vmul.f32 %v603, %v2020
  %v2026 = vmul.f32 %v603, %v2024
  %v2027 = vlaneseq
  %v2028 = vshrl.u32 %v2027, 7
  %v2029 = vsub.s32 1, %v2028
  %v2030 = vrot.slane %v2015, %v2029
  %v2031 = vlaneseq
  %v2032 = vshrl.u32 %v2031, 7
  %v2033 = vsub.s32 1, %v2032
  %v2034 = vrot.slane %v2016, %v2033
  %v2035 = vmul.f32 %v617, %v2030
  %v2036 = vmul.f32 %v617, %v2034
  %v2037 = vadd.f32 %v2025, %v2035
  %v2038 = vadd.f32 %v2026, %v2036
  %v2039 = vlaneseq
  %v2040 = vshrl.u32 %v2039, 7
  %v2041 = vsub.s32 2, %v2040
  %v2042 = vrot.slane %v2015, %v2041
  %v2043 = vlaneseq
  %v2044 = vshrl.u32 %v2043, 7
  %v2045 = vsub.s32 2, %v2044
  %v2046 = vrot.slane %v2016, %v2045
  %v2047 = vmul.f32 %v633, %v2042
  %v2048 = vmul.f32 %v633, %v2046
  %v2049 = vadd.f32 %v2037, %v2047
  %v2050 = vadd.f32 %v2038, %v2048
  %v2051 = vlaneseq
  %v2052 = vshrl.u32 %v2051, 7
  %v2053 = vsub.s32 3, %v2052
  %v2054 = vrot.slane %v2015, %v2053
  %v2055 = vlaneseq
  %v2056 = vshrl.u32 %v2055, 7
  %v2057 = vsub.s32 3, %v2056
  %v2058 = vrot.slane %v2016, %v2057
  %v2059 = vmul.f32 %v649, %v2054
  %v2060 = vmul.f32 %v649, %v2058
  %v2061 = vadd.f32 %v2049, %v2059
  %v2062 = vadd.f32 %v2050, %v2060
  %v2063 = vadd.f32 %v2061, %v666
  %v2064 = vadd.f32 %v2062, %v666
  %v2065 = vmul.f32 %v2063, %v673
  %v2066 = vmul.f32 %v2064, %v673
  %v2069 = vcombine.low %v2065, %v2066
  %v2071 = vadd.f32 %v1715, %v2069
  %v2073 = vcombine.high %v2071, %v2071
  %v2075 = vsel %vm203, %v2071, 0.0
  %v2076 = vrot.slane %v2075, 4
  %v2077 = vadd.f32 %v2075, %v2076
  %v2078 = vrot.slane %v2077, 2
  %v2079 = vadd.f32 %v2077, %v2078
  %v2080 = vrot.slane %v2079, 1
  %v2081 = vadd.f32 %v2079, %v2080
  %v2082 = vsel %vm203, %v2073, 0.0
  %v2083 = vrot.slane %v2082, 4
  %v2084 = vadd.f32 %v2082, %v2083
  %v2085 = vrot.slane %v2084, 2
  %v2086 = vadd.f32 %v2084, %v2085
  %v2087 = vrot.slane %v2086, 1
  %v2088 = vadd.f32 %v2086, %v2087
  %v2089 = vmul.f32 %v2081, %v218
  %v2090 = vmul.f32 %v2088, %v218
  %v2093 = vcombine.low %v2089, %v2090
  %v2095 = vsub.f32 %v2071, %v2093
  %v2096 = vmul.f32 %v2095, %v2095
  %v2098 = vcombine.high %v2096, %v2096
  %v2100 = vsel %vm203, %v2096, 0.0
  %v2101 = vrot.slane %v2100, 4
  %v2102 = vadd.f32 %v2100, %v2101
  %v2103 = vrot.slane %v2102, 2
  %v2104 = vadd.f32 %v2102, %v2103
  %v2105 = vrot.slane %v2104, 1
  %v2106 = vadd.f32 %v2104, %v2105
  %v2107 = vsel %vm203, %v2098, 0.0
  %v2108 = vrot.slane %v2107, 4
  %v2109 = vadd.f32 %v2107, %v2108
  %v2110 = vrot.slane %v2109, 2
  %v2111 = vadd.f32 %v2109, %v2110
  %v2112 = vrot.slane %v2111, 1
  %v2113 = vadd.f32 %v2111, %v2112
  %v2114 = vmul.f32 %v2106, %v218
  %v2115 = vmul.f32 %v2113, %v218
  %v2116 = vadd.f32 %v2114, 1e-06
  %v2117 = vadd.f32 %v2115, 1e-06
  %v2118 = vrsqrt.pop %v2116
  %v2119 = vrsqrt.pop %v2117
  %v2122 = vcombine.low %v2118, %v2119
  %v2124 = vmul.f32 %v2095, %v2122
  %v2125 = vmul.f32 %v2124, %v745
  %v2126 = vadd.f32 %v2125, %v758
  %v2128 = vlaneseq
  %v2129 = vshrl.u32 %v2128, 7
  %v2130 = vsub.s32 0, %v2129
  %v2131 = vrot.slane %v2126, %v2130
  %v2132 = vlaneseq
  %v2133 = vshrl.u32 %v2132, 7
  %v2134 = vsub.s32 4, %v2133
  %v2135 = vrot.slane %v2126, %v2134
  %v2138 = vlaneseq
  %v2139 = vshrl.u32 %v2138, 7
  %v2140 = vsub.s32 0, %v2139
  %v2141 = vrot.slane %v2131, %v2140
  %v2142 = vlaneseq
  %v2143 = vshrl.u32 %v2142, 7
  %v2144 = vsub.s32 0, %v2143
  %v2145 = vrot.slane %v2135, %v2144
  %v2146 = vmul.f32 %v764, %v2141
  %v2147 = vmul.f32 %v764, %v2145
  %v2148 = vlaneseq
  %v2149 = vshrl.u32 %v2148, 7
  %v2150 = vsub.s32 1, %v2149
  %v2151 = vrot.slane %v2126, %v2150
  %v2152 = vlaneseq
  %v2153 = vshrl.u32 %v2152, 7
  %v2154 = vsub.s32 5, %v2153
  %v2155 = vrot.slane %v2126, %v2154
  %v2158 = vlaneseq
  %v2159 = vshrl.u32 %v2158, 7
  %v2160 = vsub.s32 1, %v2159
  %v2161 = vrot.slane %v2151, %v2160
  %v2162 = vlaneseq
  %v2163 = vshrl.u32 %v2162, 7
  %v2164 = vsub.s32 1, %v2163
  %v2165 = vrot.slane %v2155, %v2164
  %v2166 = vmul.f32 %v789, %v2161
  %v2167 = vmul.f32 %v789, %v2165
  %v2168 = vadd.f32 %v2146, %v2166
  %v2169 = vadd.f32 %v2147, %v2167
  %v2170 = vlaneseq
  %v2171 = vshrl.u32 %v2170, 7
  %v2172 = vsub.s32 2, %v2171
  %v2173 = vrot.slane %v2126, %v2172
  %v2174 = vlaneseq
  %v2175 = vshrl.u32 %v2174, 7
  %v2176 = vsub.s32 6, %v2175
  %v2177 = vrot.slane %v2126, %v2176
  %v2180 = vlaneseq
  %v2181 = vshrl.u32 %v2180, 7
  %v2182 = vsub.s32 2, %v2181
  %v2183 = vrot.slane %v2173, %v2182
  %v2184 = vlaneseq
  %v2185 = vshrl.u32 %v2184, 7
  %v2186 = vsub.s32 2, %v2185
  %v2187 = vrot.slane %v2177, %v2186
  %v2188 = vmul.f32 %v815, %v2183
  %v2189 = vmul.f32 %v815, %v2187
  %v2190 = vadd.f32 %v2168, %v2188
  %v2191 = vadd.f32 %v2169, %v2189
  %v2192 = vlaneseq
  %v2193 = vshrl.u32 %v2192, 7
  %v2194 = vsub.s32 3, %v2193
  %v2195 = vrot.slane %v2126, %v2194
  %v2196 = vlaneseq
  %v2197 = vshrl.u32 %v2196, 7
  %v2198 = vsub.s32 7, %v2197
  %v2199 = vrot.slane %v2126, %v2198
  %v2202 = vlaneseq
  %v2203 = vshrl.u32 %v2202, 7
  %v2204 = vsub.s32 3, %v2203
  %v2205 = vrot.slane %v2195, %v2204
  %v2206 = vlaneseq
  %v2207 = vshrl.u32 %v2206, 7
  %v2208 = vsub.s32 3, %v2207
  %v2209 = vrot.slane %v2199, %v2208
  %v2210 = vmul.f32 %v841, %v2205
  %v2211 = vmul.f32 %v841, %v2209
  %v2212 = vadd.f32 %v2190, %v2210
  %v2213 = vadd.f32 %v2191, %v2211
  %v2214 = vadd.f32 %v2212, %v868
  %v2215 = vadd.f32 %v2213, %v868
  %v2218 = vrot.slane %v2214, 4
  %v2219 = vrot.slane %v2215, 4
  %v2222 = vmul.f32 %v2214, %v2218
  %v2223 = vmul.f32 %v2215, %v2219
  %v2224 = vlaneseq
  %v2225 = vshrl.u32 %v2224, 7
  %v2226 = vsub.s32 0, %v2225
  %v2227 = vrot.slane %v2222, %v2226
  %v2228 = vlaneseq
  %v2229 = vshrl.u32 %v2228, 7
  %v2230 = vsub.s32 0, %v2229
  %v2231 = vrot.slane %v2223, %v2230
  %v2232 = vmul.f32 %v883, %v2227
  %v2233 = vmul.f32 %v883, %v2231
  %v2234 = vlaneseq
  %v2235 = vshrl.u32 %v2234, 7
  %v2236 = vsub.s32 1, %v2235
  %v2237 = vrot.slane %v2222, %v2236
  %v2238 = vlaneseq
  %v2239 = vshrl.u32 %v2238, 7
  %v2240 = vsub.s32 1, %v2239
  %v2241 = vrot.slane %v2223, %v2240
  %v2242 = vmul.f32 %v897, %v2237
  %v2243 = vmul.f32 %v897, %v2241
  %v2244 = vadd.f32 %v2232, %v2242
  %v2245 = vadd.f32 %v2233, %v2243
  %v2246 = vlaneseq
  %v2247 = vshrl.u32 %v2246, 7
  %v2248 = vsub.s32 2, %v2247
  %v2249 = vrot.slane %v2222, %v2248
  %v2250 = vlaneseq
  %v2251 = vshrl.u32 %v2250, 7
  %v2252 = vsub.s32 2, %v2251
  %v2253 = vrot.slane %v2223, %v2252
  %v2254 = vmul.f32 %v913, %v2249
  %v2255 = vmul.f32 %v913, %v2253
  %v2256 = vadd.f32 %v2244, %v2254
  %v2257 = vadd.f32 %v2245, %v2255
  %v2258 = vlaneseq
  %v2259 = vshrl.u32 %v2258, 7
  %v2260 = vsub.s32 3, %v2259
  %v2261 = vrot.slane %v2222, %v2260
  %v2262 = vlaneseq
  %v2263 = vshrl.u32 %v2262, 7
  %v2264 = vsub.s32 3, %v2263
  %v2265 = vrot.slane %v2223, %v2264
  %v2266 = vmul.f32 %v929, %v2261
  %v2267 = vmul.f32 %v929, %v2265
  %v2268 = vadd.f32 %v2256, %v2266
  %v2269 = vadd.f32 %v2257, %v2267
  %v2270 = vadd.f32 %v2268, %v946
  %v2271 = vadd.f32 %v2269, %v946
  %v2272 = vmul.f32 %v2270, %v953
  %v2273 = vmul.f32 %v2271, %v953
  %v2276 = vcombine.low %v2272, %v2273
  %v2278 = vadd.f32 %v2071, %v2276
  %v2280 = vcombine.high %v2278, %v2278
  %v2282 = vsel %vm203, %v2278, 0.0
  %v2283 = vrot.slane %v2282, 4
  %v2284 = vadd.f32 %v2282, %v2283
  %v2285 = vrot.slane %v2284, 2
  %v2286 = vadd.f32 %v2284, %v2285
  %v2287 = vrot.slane %v2286, 1
  %v2288 = vadd.f32 %v2286, %v2287
  %v2289 = vsel %vm203, %v2280, 0.0
  %v2290 = vrot.slane %v2289, 4
  %v2291 = vadd.f32 %v2289, %v2290
  %v2292 = vrot.slane %v2291, 2
  %v2293 = vadd.f32 %v2291, %v2292
  %v2294 = vrot.slane %v2293, 1
  %v2295 = vadd.f32 %v2293, %v2294
  %v2296 = vmul.f32 %v2288, %v218
  %v2297 = vmul.f32 %v2295, %v218
  %v2300 = vcombine.low %v2296, %v2297
  %v2302 = vsub.f32 %v2278, %v2300
  %v2303 = vmul.f32 %v2302, %v2302
  %v2305 = vcombine.high %v2303, %v2303
  %v2307 = vsel %vm203, %v2303, 0.0
  %v2308 = vrot.slane %v2307, 4
  %v2309 = vadd.f32 %v2307, %v2308
  %v2310 = vrot.slane %v2309, 2
  %v2311 = vadd.f32 %v2309, %v2310
  %v2312 = vrot.slane %v2311, 1
  %v2313 = vadd.f32 %v2311, %v2312
  %v2314 = vsel %vm203, %v2305, 0.0
  %v2315 = vrot.slane %v2314, 4
  %v2316 = vadd.f32 %v2314, %v2315
  %v2317 = vrot.slane %v2316, 2
  %v2318 = vadd.f32 %v2316, %v2317
  %v2319 = vrot.slane %v2318, 1
  %v2320 = vadd.f32 %v2318, %v2319
  %v2321 = vmul.f32 %v2313, %v218
  %v2322 = vmul.f32 %v2320, %v218
  %v2323 = vadd.f32 %v2321, 1e-06
  %v2324 = vadd.f32 %v2322, 1e-06
  %v2325 = vrsqrt.pop %v2323
  %v2326 = vrsqrt.pop %v2324
  %v2329 = vcombine.low %v2325, %v2326
  %v2331 = vmul.f32 %v2302, %v2329
  %v2332 = vmul.f32 %v2331, %v1025
  %v2333 = vadd.f32 %v2332, %v1038
  %v2335 = vlaneseq
  %v2336 = vshrl.u32 %v2335, 7
  %v2337 = vsub.s32 0, %v2336
  %v2338 = vrot.slane %v2333, %v2337
  %v2339 = vlaneseq
  %v2340 = vshrl.u32 %v2339, 7
  %v2341 = vsub.s32 4, %v2340
  %v2342 = vrot.slane %v2333, %v2341
  %v2345 = vlaneseq
  %v2346 = vshrl.u32 %v2345, 7
  %v2347 = vsub.s32 0, %v2346
  %v2348 = vrot.slane %v2338, %v2347
  %v2349 = vlaneseq
  %v2350 = vshrl.u32 %v2349, 7
  %v2351 = vsub.s32 0, %v2350
  %v2352 = vrot.slane %v2342, %v2351
  %v2353 = vmul.f32 %v1044, %v2348
  %v2354 = vmul.f32 %v1044, %v2352
  %v2355 = vlaneseq
  %v2356 = vshrl.u32 %v2355, 7
  %v2357 = vsub.s32 1, %v2356
  %v2358 = vrot.slane %v2333, %v2357
  %v2359 = vlaneseq
  %v2360 = vshrl.u32 %v2359, 7
  %v2361 = vsub.s32 5, %v2360
  %v2362 = vrot.slane %v2333, %v2361
  %v2365 = vlaneseq
  %v2366 = vshrl.u32 %v2365, 7
  %v2367 = vsub.s32 1, %v2366
  %v2368 = vrot.slane %v2358, %v2367
  %v2369 = vlaneseq
  %v2370 = vshrl.u32 %v2369, 7
  %v2371 = vsub.s32 1, %v2370
  %v2372 = vrot.slane %v2362, %v2371
  %v2373 = vmul.f32 %v1069, %v2368
  %v2374 = vmul.f32 %v1069, %v2372
  %v2375 = vadd.f32 %v2353, %v2373
  %v2376 = vadd.f32 %v2354, %v2374
  %v2377 = vlaneseq
  %v2378 = vshrl.u32 %v2377, 7
  %v2379 = vsub.s32 2, %v2378
  %v2380 = vrot.slane %v2333, %v2379
  %v2381 = vlaneseq
  %v2382 = vshrl.u32 %v2381, 7
  %v2383 = vsub.s32 6, %v2382
  %v2384 = vrot.slane %v2333, %v2383
  %v2387 = vlaneseq
  %v2388 = vshrl.u32 %v2387, 7
  %v2389 = vsub.s32 2, %v2388
  %v2390 = vrot.slane %v2380, %v2389
  %v2391 = vlaneseq
  %v2392 = vshrl.u32 %v2391, 7
  %v2393 = vsub.s32 2, %v2392
  %v2394 = vrot.slane %v2384, %v2393
  %v2395 = vmul.f32 %v1095, %v2390
  %v2396 = vmul.f32 %v1095, %v2394
  %v2397 = vadd.f32 %v2375, %v2395
  %v2398 = vadd.f32 %v2376, %v2396
  %v2399 = vlaneseq
  %v2400 = vshrl.u32 %v2399, 7
  %v2401 = vsub.s32 3, %v2400
  %v2402 = vrot.slane %v2333, %v2401
  %v2403 = vlaneseq
  %v2404 = vshrl.u32 %v2403, 7
  %v2405 = vsub.s32 7, %v2404
  %v2406 = vrot.slane %v2333, %v2405
  %v2409 = vlaneseq
  %v2410 = vshrl.u32 %v2409, 7
  %v2411 = vsub.s32 3, %v2410
  %v2412 = vrot.slane %v2402, %v2411
  %v2413 = vlaneseq
  %v2414 = vshrl.u32 %v2413, 7
  %v2415 = vsub.s32 3, %v2414
  %v2416 = vrot.slane %v2406, %v2415
  %v2417 = vmul.f32 %v1121, %v2412
  %v2418 = vmul.f32 %v1121, %v2416
  %v2419 = vadd.f32 %v2397, %v2417
  %v2420 = vadd.f32 %v2398, %v2418
  %v2421 = vadd.f32 %v2419, %v1148
  %v2422 = vadd.f32 %v2420, %v1148
  %2423 = vrot.lane.b32.xlu0 %v2421, 17
  %v2424 = vpop.permute.xlu0 %2423
  %2425 = vrot.lane.b32.xlu0 %v2422, 17
  %v2426 = vpop.permute.xlu0 %2425
  %v2427 = vsel %vm396, %v2424, %v2426
  %v2428 = vsel %vm396, %v2426, %v2424
  %v2429 = vmul.f32 %v2428, %v50
  %v2430 = vmul.f32 %v2427, %v51
  %v2431 = vmul.f32 %v2429, %v1163
  %v2432 = vmul.f32 %v2430, %v1163
  %2433 = vrot.lane.b32.xlu0 %v2421, 16
  %v2434 = vpop.permute.xlu0 %2433
  %2435 = vrot.lane.b32.xlu0 %v2422, 16
  %v2436 = vpop.permute.xlu0 %2435
  %v2437 = vsel %vm412, %v2434, %v2436
  %v2438 = vsel %vm412, %v2436, %v2434
  %v2439 = vmul.f32 %v2438, %v62
  %v2440 = vmul.f32 %v2437, %v63
  %v2441 = vmul.f32 %v2439, %v1177
  %v2442 = vmul.f32 %v2440, %v1177
  %v2443 = vadd.f32 %v2431, %v2441
  %v2444 = vadd.f32 %v2432, %v2442
  %2445 = vrot.lane.b32.xlu0 %v2421, 15
  %v2446 = vpop.permute.xlu0 %2445
  %2447 = vrot.lane.b32.xlu0 %v2422, 15
  %v2448 = vpop.permute.xlu0 %2447
  %v2449 = vsel %vm429, %v2446, %v2448
  %v2450 = vsel %vm429, %v2448, %v2446
  %v2451 = vmul.f32 %v2450, %v76
  %v2452 = vmul.f32 %v2449, %v77
  %v2453 = vmul.f32 %v2451, %v1193
  %v2454 = vmul.f32 %v2452, %v1193
  %v2455 = vadd.f32 %v2443, %v2453
  %v2456 = vadd.f32 %v2444, %v2454
  %2457 = vrot.lane.b32.xlu0 %v2421, 1
  %v2458 = vpop.permute.xlu0 %2457
  %2459 = vrot.lane.b32.xlu0 %v2422, 1
  %v2460 = vpop.permute.xlu0 %2459
  %v2461 = vsel %vm446, %v2458, %v2460
  %v2462 = vsel %vm446, %v2460, %v2458
  %v2463 = vmul.f32 %v2462, %v90
  %v2464 = vmul.f32 %v2461, %v91
  %v2465 = vmul.f32 %v2463, %v1209
  %v2466 = vmul.f32 %v2464, %v1209
  %v2467 = vadd.f32 %v2455, %v2465
  %v2468 = vadd.f32 %v2456, %v2466
  %v2469 = vmul.f32 %v2421, %v1217
  %v2470 = vmul.f32 %v2422, %v1217
  %v2471 = vadd.f32 %v2467, %v2469
  %v2472 = vadd.f32 %v2468, %v2470
  %2473 = vrot.lane.b32.xlu0 %v2421, 127
  %v2474 = vpop.permute.xlu0 %2473
  %2475 = vrot.lane.b32.xlu0 %v2422, 127
  %v2476 = vpop.permute.xlu0 %2475
  %v2477 = vsel %vm471, %v2474, %v2476
  %v2478 = vsel %vm471, %v2476, %v2474
  %v2479 = vmul.f32 %v2477, %v98
  %v2480 = vmul.f32 %v2478, %v99
  %v2481 = vmul.f32 %v2479, %v1233
  %v2482 = vmul.f32 %v2480, %v1233
  %v2483 = vadd.f32 %v2471, %v2481
  %v2484 = vadd.f32 %v2472, %v2482
  %2485 = vrot.lane.b32.xlu0 %v2421, 113
  %v2486 = vpop.permute.xlu0 %2485
  %2487 = vrot.lane.b32.xlu0 %v2422, 113
  %v2488 = vpop.permute.xlu0 %2487
  %v2489 = vsel %vm488, %v2486, %v2488
  %v2490 = vsel %vm488, %v2488, %v2486
  %v2491 = vmul.f32 %v2489, %v114
  %v2492 = vmul.f32 %v2490, %v115
  %v2493 = vmul.f32 %v2491, %v1249
  %v2494 = vmul.f32 %v2492, %v1249
  %v2495 = vadd.f32 %v2483, %v2493
  %v2496 = vadd.f32 %v2484, %v2494
  %2497 = vrot.lane.b32.xlu0 %v2421, 112
  %v2498 = vpop.permute.xlu0 %2497
  %2499 = vrot.lane.b32.xlu0 %v2422, 112
  %v2500 = vpop.permute.xlu0 %2499
  %v2501 = vsel %vm505, %v2498, %v2500
  %v2502 = vsel %vm505, %v2500, %v2498
  %v2503 = vmul.f32 %v2501, %v122
  %v2504 = vmul.f32 %v2502, %v123
  %v2505 = vmul.f32 %v2503, %v1265
  %v2506 = vmul.f32 %v2504, %v1265
  %v2507 = vadd.f32 %v2495, %v2505
  %v2508 = vadd.f32 %v2496, %v2506
  %2509 = vrot.lane.b32.xlu0 %v2421, 111
  %v2510 = vpop.permute.xlu0 %2509
  %2511 = vrot.lane.b32.xlu0 %v2422, 111
  %v2512 = vpop.permute.xlu0 %2511
  %v2513 = vsel %vm522, %v2510, %v2512
  %v2514 = vsel %vm522, %v2512, %v2510
  %v2515 = vmul.f32 %v2513, %v130
  %v2516 = vmul.f32 %v2514, %v131
  %v2517 = vmul.f32 %v2515, %v1281
  %v2518 = vmul.f32 %v2516, %v1281
  %v2519 = vadd.f32 %v2507, %v2517
  %v2520 = vadd.f32 %v2508, %v2518
  %v2521 = vadd.f32 %v2519, %v1290
  %v2522 = vadd.f32 %v2520, %v1290
  %v2525 = vrot.slane %v2521, 4
  %v2526 = vrot.slane %v2522, 4
  %v2529 = vmul.f32 %v2521, %v2525
  %v2530 = vmul.f32 %v2522, %v2526
  %v2531 = vsel %vm203, %v2529, 0.0
  %v2532 = vsel %vm203, %v2530, 0.0
  %v2533 = vadd.f32 %v2531, %v2532
  %2534 = vadd.xlane.f32.xlu0 %v2533
  %v2535 = vpop.xlane.xlu0 %2534
  %v2536 = vmul.f32 %v2535, %v555
  %v2537 = vlaneseq
  %v2538 = vshrl.u32 %v2537, 7
  %v2539 = vsub.s32 0, %v2538
  %v2540 = vrot.slane %v2536, %v2539
  %v2541 = vmul.f32 %v168, %v2540
  %v2542 = vlaneseq
  %v2543 = vshrl.u32 %v2542, 7
  %v2544 = vsub.s32 1, %v2543
  %v2545 = vrot.slane %v2536, %v2544
  %v2546 = vmul.f32 %v168, %v2545
  %2548 = vrot.lane.b32.xlu0 %v2546, 127
  %v2549 = vpop.permute.xlu0 %2548
  %v2551 = vadd.f32 %v2541, %v2549
  %v2552 = vlaneseq
  %v2553 = vshrl.u32 %v2552, 7
  %v2554 = vsub.s32 2, %v2553
  %v2555 = vrot.slane %v2536, %v2554
  %v2556 = vmul.f32 %v168, %v2555
  %2558 = vrot.lane.b32.xlu0 %v2556, 126
  %v2559 = vpop.permute.xlu0 %2558
  %v2561 = vadd.f32 %v2551, %v2559
  %v2562 = vlaneseq
  %v2563 = vshrl.u32 %v2562, 7
  %v2564 = vsub.s32 3, %v2563
  %v2565 = vrot.slane %v2536, %v2564
  %v2566 = vmul.f32 %v168, %v2565
  %2568 = vrot.lane.b32.xlu0 %v2566, 125
  %v2569 = vpop.permute.xlu0 %2568
  %v2571 = vadd.f32 %v2561, %v2569
  %v2572 = vadd.f32 %v2571, %v188
  %2574 = vset.pattern.permute.xlu0 0
  %2575 = vperm.xlu0 %2574, %v2572
  %v2576 = vpop.permute.xlu0 %2575
  %v2578 = vmul.f32 %v2529, %v2576
  %v2579 = vmul.f32 %v2530, %v2576
  %v2580 = vlaneseq
  %v2581 = vshrl.u32 %v2580, 7
  %v2582 = vsub.s32 0, %v2581
  %v2583 = vrot.slane %v2578, %v2582
  %v2584 = vlaneseq
  %v2585 = vshrl.u32 %v2584, 7
  %v2586 = vsub.s32 0, %v2585
  %v2587 = vrot.slane %v2579, %v2586
  %v2588 = vmul.f32 %v1354, %v2583
  %v2589 = vmul.f32 %v1354, %v2587
  %v2590 = vlaneseq
  %v2591 = vshrl.u32 %v2590, 7
  %v2592 = vsub.s32 1, %v2591
  %v2593 = vrot.slane %v2578, %v2592
  %v2594 = vlaneseq
  %v2595 = vshrl.u32 %v2594, 7
  %v2596 = vsub.s32 1, %v2595
  %v2597 = vrot.slane %v2579, %v2596
  %v2598 = vmul.f32 %v1368, %v2593
  %v2599 = vmul.f32 %v1368, %v2597
  %v2600 = vadd.f32 %v2588, %v2598
  %v2601 = vadd.f32 %v2589, %v2599
  %v2602 = vlaneseq
  %v2603 = vshrl.u32 %v2602, 7
  %v2604 = vsub.s32 2, %v2603
  %v2605 = vrot.slane %v2578, %v2604
  %v2606 = vlaneseq
  %v2607 = vshrl.u32 %v2606, 7
  %v2608 = vsub.s32 2, %v2607
  %v2609 = vrot.slane %v2579, %v2608
  %v2610 = vmul.f32 %v1384, %v2605
  %v2611 = vmul.f32 %v1384, %v2609
  %v2612 = vadd.f32 %v2600, %v2610
  %v2613 = vadd.f32 %v2601, %v2611
  %v2614 = vlaneseq
  %v2615 = vshrl.u32 %v2614, 7
  %v2616 = vsub.s32 3, %v2615
  %v2617 = vrot.slane %v2578, %v2616
  %v2618 = vlaneseq
  %v2619 = vshrl.u32 %v2618, 7
  %v2620 = vsub.s32 3, %v2619
  %v2621 = vrot.slane %v2579, %v2620
  %v2622 = vmul.f32 %v1400, %v2617
  %v2623 = vmul.f32 %v1400, %v2621
  %v2624 = vadd.f32 %v2612, %v2622
  %v2625 = vadd.f32 %v2613, %v2623
  %v2626 = vadd.f32 %v2624, %v1417
  %v2627 = vadd.f32 %v2625, %v1417
  %v2628 = vmul.f32 %v2626, %v1424
  %v2629 = vmul.f32 %v2627, %v1424
  %v2632 = vcombine.low %v2628, %v2629
  %v2634 = vadd.f32 %v2278, %v2632
  %v2636 = vcombine.high %v2634, %v2634
  %v2638 = vsel %vm203, %v2634, 0.0
  %v2639 = vrot.slane %v2638, 4
  %v2640 = vadd.f32 %v2638, %v2639
  %v2641 = vrot.slane %v2640, 2
  %v2642 = vadd.f32 %v2640, %v2641
  %v2643 = vrot.slane %v2642, 1
  %v2644 = vadd.f32 %v2642, %v2643
  %v2645 = vsel %vm203, %v2636, 0.0
  %v2646 = vrot.slane %v2645, 4
  %v2647 = vadd.f32 %v2645, %v2646
  %v2648 = vrot.slane %v2647, 2
  %v2649 = vadd.f32 %v2647, %v2648
  %v2650 = vrot.slane %v2649, 1
  %v2651 = vadd.f32 %v2649, %v2650
  %v2652 = vmul.f32 %v2644, %v218
  %v2653 = vmul.f32 %v2651, %v218
  %v2656 = vcombine.low %v2652, %v2653
  %v2658 = vsub.f32 %v2634, %v2656
  %v2659 = vmul.f32 %v2658, %v2658
  %v2661 = vcombine.high %v2659, %v2659
  %v2663 = vsel %vm203, %v2659, 0.0
  %v2664 = vrot.slane %v2663, 4
  %v2665 = vadd.f32 %v2663, %v2664
  %v2666 = vrot.slane %v2665, 2
  %v2667 = vadd.f32 %v2665, %v2666
  %v2668 = vrot.slane %v2667, 1
  %v2669 = vadd.f32 %v2667, %v2668
  %v2670 = vsel %vm203, %v2661, 0.0
  %v2671 = vrot.slane %v2670, 4
  %v2672 = vadd.f32 %v2670, %v2671
  %v2673 = vrot.slane %v2672, 2
  %v2674 = vadd.f32 %v2672, %v2673
  %v2675 = vrot.slane %v2674, 1
  %v2676 = vadd.f32 %v2674, %v2675
  %v2677 = vmul.f32 %v2669, %v218
  %v2678 = vmul.f32 %v2676, %v218
  %v2679 = vadd.f32 %v2677, 1e-06
  %v2680 = vadd.f32 %v2678, 1e-06
  %v2681 = vrsqrt.pop %v2679
  %v2682 = vrsqrt.pop %v2680
  %v2685 = vcombine.low %v2681, %v2682
  %v2687 = vmul.f32 %v2658, %v2685
  %v2688 = vmul.f32 %v2687, %v1496
  %v2689 = vadd.f32 %v2688, %v1509
  %v2691 = vlaneseq
  %v2692 = vshrl.u32 %v2691, 7
  %v2693 = vsub.s32 0, %v2692
  %v2694 = vrot.slane %v2689, %v2693
  %v2695 = vlaneseq
  %v2696 = vshrl.u32 %v2695, 7
  %v2697 = vsub.s32 4, %v2696
  %v2698 = vrot.slane %v2689, %v2697
  %v2701 = vlaneseq
  %v2702 = vshrl.u32 %v2701, 7
  %v2703 = vsub.s32 0, %v2702
  %v2704 = vrot.slane %v2694, %v2703
  %v2705 = vlaneseq
  %v2706 = vshrl.u32 %v2705, 7
  %v2707 = vsub.s32 0, %v2706
  %v2708 = vrot.slane %v2698, %v2707
  %v2709 = vmul.f32 %v1515, %v2704
  %v2710 = vmul.f32 %v1515, %v2708
  %v2711 = vlaneseq
  %v2712 = vshrl.u32 %v2711, 7
  %v2713 = vsub.s32 1, %v2712
  %v2714 = vrot.slane %v2689, %v2713
  %v2715 = vlaneseq
  %v2716 = vshrl.u32 %v2715, 7
  %v2717 = vsub.s32 5, %v2716
  %v2718 = vrot.slane %v2689, %v2717
  %v2721 = vlaneseq
  %v2722 = vshrl.u32 %v2721, 7
  %v2723 = vsub.s32 1, %v2722
  %v2724 = vrot.slane %v2714, %v2723
  %v2725 = vlaneseq
  %v2726 = vshrl.u32 %v2725, 7
  %v2727 = vsub.s32 1, %v2726
  %v2728 = vrot.slane %v2718, %v2727
  %v2729 = vmul.f32 %v1540, %v2724
  %v2730 = vmul.f32 %v1540, %v2728
  %v2731 = vadd.f32 %v2709, %v2729
  %v2732 = vadd.f32 %v2710, %v2730
  %v2733 = vlaneseq
  %v2734 = vshrl.u32 %v2733, 7
  %v2735 = vsub.s32 2, %v2734
  %v2736 = vrot.slane %v2689, %v2735
  %v2737 = vlaneseq
  %v2738 = vshrl.u32 %v2737, 7
  %v2739 = vsub.s32 6, %v2738
  %v2740 = vrot.slane %v2689, %v2739
  %v2743 = vlaneseq
  %v2744 = vshrl.u32 %v2743, 7
  %v2745 = vsub.s32 2, %v2744
  %v2746 = vrot.slane %v2736, %v2745
  %v2747 = vlaneseq
  %v2748 = vshrl.u32 %v2747, 7
  %v2749 = vsub.s32 2, %v2748
  %v2750 = vrot.slane %v2740, %v2749
  %v2751 = vmul.f32 %v1566, %v2746
  %v2752 = vmul.f32 %v1566, %v2750
  %v2753 = vadd.f32 %v2731, %v2751
  %v2754 = vadd.f32 %v2732, %v2752
  %v2755 = vlaneseq
  %v2756 = vshrl.u32 %v2755, 7
  %v2757 = vsub.s32 3, %v2756
  %v2758 = vrot.slane %v2689, %v2757
  %v2759 = vlaneseq
  %v2760 = vshrl.u32 %v2759, 7
  %v2761 = vsub.s32 7, %v2760
  %v2762 = vrot.slane %v2689, %v2761
  %v2765 = vlaneseq
  %v2766 = vshrl.u32 %v2765, 7
  %v2767 = vsub.s32 3, %v2766
  %v2768 = vrot.slane %v2758, %v2767
  %v2769 = vlaneseq
  %v2770 = vshrl.u32 %v2769, 7
  %v2771 = vsub.s32 3, %v2770
  %v2772 = vrot.slane %v2762, %v2771
  %v2773 = vmul.f32 %v1592, %v2768
  %v2774 = vmul.f32 %v1592, %v2772
  %v2775 = vadd.f32 %v2753, %v2773
  %v2776 = vadd.f32 %v2754, %v2774
  %v2777 = vadd.f32 %v2775, %v1619
  %v2778 = vadd.f32 %v2776, %v1619
  %v2781 = vrot.slane %v2777, 4
  %v2782 = vrot.slane %v2778, 4
  %v2785 = vmul.f32 %v2777, %v2781
  %v2786 = vmul.f32 %v2778, %v2782
  %v2787 = vlaneseq
  %v2788 = vshrl.u32 %v2787, 7
  %v2789 = vsub.s32 0, %v2788
  %v2790 = vrot.slane %v2785, %v2789
  %v2791 = vlaneseq
  %v2792 = vshrl.u32 %v2791, 7
  %v2793 = vsub.s32 0, %v2792
  %v2794 = vrot.slane %v2786, %v2793
  %v2795 = vmul.f32 %v1634, %v2790
  %v2796 = vmul.f32 %v1634, %v2794
  %v2797 = vlaneseq
  %v2798 = vshrl.u32 %v2797, 7
  %v2799 = vsub.s32 1, %v2798
  %v2800 = vrot.slane %v2785, %v2799
  %v2801 = vlaneseq
  %v2802 = vshrl.u32 %v2801, 7
  %v2803 = vsub.s32 1, %v2802
  %v2804 = vrot.slane %v2786, %v2803
  %v2805 = vmul.f32 %v1648, %v2800
  %v2806 = vmul.f32 %v1648, %v2804
  %v2807 = vadd.f32 %v2795, %v2805
  %v2808 = vadd.f32 %v2796, %v2806
  %v2809 = vlaneseq
  %v2810 = vshrl.u32 %v2809, 7
  %v2811 = vsub.s32 2, %v2810
  %v2812 = vrot.slane %v2785, %v2811
  %v2813 = vlaneseq
  %v2814 = vshrl.u32 %v2813, 7
  %v2815 = vsub.s32 2, %v2814
  %v2816 = vrot.slane %v2786, %v2815
  %v2817 = vmul.f32 %v1664, %v2812
  %v2818 = vmul.f32 %v1664, %v2816
  %v2819 = vadd.f32 %v2807, %v2817
  %v2820 = vadd.f32 %v2808, %v2818
  %v2821 = vlaneseq
  %v2822 = vshrl.u32 %v2821, 7
  %v2823 = vsub.s32 3, %v2822
  %v2824 = vrot.slane %v2785, %v2823
  %v2825 = vlaneseq
  %v2826 = vshrl.u32 %v2825, 7
  %v2827 = vsub.s32 3, %v2826
  %v2828 = vrot.slane %v2786, %v2827
  %v2829 = vmul.f32 %v1680, %v2824
  %v2830 = vmul.f32 %v1680, %v2828
  %v2831 = vadd.f32 %v2819, %v2829
  %v2832 = vadd.f32 %v2820, %v2830
  %v2833 = vadd.f32 %v2831, %v1697
  %v2834 = vadd.f32 %v2832, %v1697
  %v2835 = vmul.f32 %v2833, %v1704
  %v2836 = vmul.f32 %v2834, %v1704
  %v2839 = vcombine.low %v2835, %v2836
  %v2841 = vadd.f32 %v2634, %v2839
  %s2842 = scalar_lea.vmem %s6, 8
  %2843 = vst [vmem:[%s2842] sm:$0xff] %v2841
  // Predicated region
  $region26: #{naf_stn_block_forward.2} parent=0 // pred_check
    _
  $region27: #{naf_stn_block_forward.2} parent=0 // pred_check_branch
    %2845 = sbr.rel (0) target = $region29
  $region28: #{naf_stn_block_forward.2} parent=0 // pred_region
    _
  $region29: #{naf_stn_block_forward.2} parent=0 // pred_fallthru
    _
  // Predicated region
  $region30: #{naf_stn_block_forward.2} parent=0 // pred_check
    _
  $region31: #{naf_stn_block_forward.2} parent=0 // pred_check_branch
    %2847 = sbr.rel (0) target = $region33
  $region32: #{naf_stn_block_forward.2} parent=0 // pred_region
    _
  $region33: #{naf_stn_block_forward.2} parent=0 // pred_fallthru
    _

</llo_original>
